<compile_context>
chip_gen: v6e
topology: v6e:2x2x1
jax: 0.10.0
libtpu: 0.0.40
codegen_flags: <defaults>
</compile_context>

<pallas_src>
import functools

import numpy as np
import jax
import jax.numpy as jnp
from jax import lax
from jax.experimental import pallas as pl
from jax.experimental.pallas import tpu as pltpu


# --------------------------------------------------------------------------------------
# helpers
# --------------------------------------------------------------------------------------
def _vspec(shape):
    """Full-array BlockSpec for a grid=(1,) pallas_call."""
    n = len(shape)
    return pl.BlockSpec(shape, lambda i, _n=n: (0,) * _n)


def _sel_matrices(T, B):
    """Constant selection matrices for the flat (T*B, .) layout: row i <-> (t=i//B, b=i%B)."""
    i = np.arange(T * B)
    b = i % B
    sel = (b[:, None] == np.arange(B)[None, :]).astype(np.float32)    # (R, B)
    selT = np.ascontiguousarray(sel.T)                                # (B, R)
    t_col = (i // B).astype(np.float32)[:, None]                      # (R, 1)
    return jnp.asarray(sel), jnp.asarray(selT), jnp.asarray(t_col)


# --------------------------------------------------------------------------------------
# kernel 1: one-hot gather (embedding lookup / order_notes), as an MXU matmul
# --------------------------------------------------------------------------------------
def _onehot_gather_kernel(ids_ref, table_ref, out_ref, *, one_based):
    ids = ids_ref[...]                                           # (R, 1) int32
    R = ids.shape[0]
    V = table_ref.shape[0]
    cols = lax.broadcasted_iota(jnp.int32, (R, V), 1)
    if one_based:
        # order_notes: id 0 selects the (implicit) zero row, id k selects table row k-1.
        hit = jnp.logical_and(cols == (ids - 1), ids > 0)
    else:
        hit = cols == ids
    onehot = hit.astype(table_ref.dtype)
    out_ref[...] = jnp.dot(onehot, table_ref[...],
                           preferred_element_type=jnp.float32).astype(out_ref.dtype)


def onehot_gather(ids_col, table, *, one_based):
    R = ids_col.shape[0]
    V, E = table.shape
    return pl.pallas_call(
        functools.partial(_onehot_gather_kernel, one_based=one_based),
        out_shape=jax.ShapeDtypeStruct((R, E), table.dtype),
        grid=(1,),
        in_specs=[_vspec((R, 1)), _vspec((V, E))],
        out_specs=_vspec((R, E)),
        compiler_params=pltpu.CompilerParams(dimension_semantics=("arbitrary",)),
    )(ids_col, table)


# --------------------------------------------------------------------------------------
# kernel 2: bidirectional GRU layer with packed-sequence (length-masked) semantics
# --------------------------------------------------------------------------------------
def _bigru_kernel(x_ref, len_ref,
                  wih_f_ref, whh_f_ref, bih_f_ref, bhh_f_ref,
                  wih_b_ref, whh_b_ref, bih_b_ref, bhh_b_ref,
                  out_ref, hf_ref, hb_ref):
    T = x_ref.shape[0]
    B = len_ref.shape[0]
    H = whh_f_ref.shape[0]
    cdt = x_ref.dtype

    lens = len_ref[...]                                          # (B, 1) int32
    wih_f = wih_f_ref[...]
    whh_f = whh_f_ref[...]
    bih_f = bih_f_ref[...].astype(jnp.float32)
    bhh_f = bhh_f_ref[...].astype(jnp.float32)
    wih_b = wih_b_ref[...]
    whh_b = whh_b_ref[...]
    bih_b = bih_b_ref[...].astype(jnp.float32)
    bhh_b = bhh_b_ref[...].astype(jnp.float32)

    def cell(x_t, h, wih, whh, bih, bhh):
        # gates packed [r | z | n] on the lane axis -> one matmul per operand, f32 accum.
        gi = jnp.dot(x_t, wih, preferred_element_type=jnp.float32) + bih
        gh = jnp.dot(h.astype(cdt), whh, preferred_element_type=jnp.float32) + bhh
        r = jax.nn.sigmoid(gi[:, 0:H] + gh[:, 0:H])
        z = jax.nn.sigmoid(gi[:, H:2 * H] + gh[:, H:2 * H])
        n = jnp.tanh(gi[:, 2 * H:3 * H] + r * gh[:, 2 * H:3 * H])
        return (1.0 - z) * n + z * h

    h0 = jnp.zeros((B, H), jnp.float32)

    def fwd_step(t, h):
        h_new = cell(x_ref[t], h, wih_f, whh_f, bih_f, bhh_f)
        valid = (t < lens).astype(jnp.float32)                   # (B, 1)
        h_new = valid * h_new + (1.0 - valid) * h                # freeze at padded steps
        hf_ref[t] = valid * h_new                                # zero output at padding
        return h_new

    lax.fori_loop(0, T, fwd_step, h0)

    def bwd_step(i, h):
        t = T - 1 - i
        h_new = cell(x_ref[t], h, wih_b, whh_b, bih_b, bhh_b)
        valid = (t < lens).astype(jnp.float32)
        h_new = valid * h_new + (1.0 - valid) * h                # h stays 0 until t==len-1
        hb_ref[t] = valid * h_new
        return h_new

    lax.fori_loop(0, T, bwd_step, h0)

    out_ref[:, :, 0:H] = hf_ref[...].astype(out_ref.dtype)
    out_ref[:, :, H:2 * H] = hb_ref[...].astype(out_ref.dtype)


def bigru_layer(x_tbd, lengths_col, gru_p, compute_dtype):
    T, B, D = x_tbd.shape
    H = gru_p["whh_f"].shape[0]
    dt = x_tbd.dtype
    isz = jnp.dtype(compute_dtype).itemsize
    flops = 2 * 2 * T * (B * D * 3 * H + B * H * 3 * H)          # 2 dirs, ih+hh matmuls
    bytes_acc = (T * B * D + T * B * 2 * H) * isz + 2 * (D + H + 2) * 3 * H * 4

    return pl.pallas_call(
        _bigru_kernel,
        out_shape=jax.ShapeDtypeStruct((T, B, 2 * H), dt),
        grid=(1,),
        in_specs=[_vspec((T, B, D)), _vspec((B, 1)),
                  _vspec((D, 3 * H)), _vspec((H, 3 * H)), _vspec((1, 3 * H)), _vspec((1, 3 * H)),
                  _vspec((D, 3 * H)), _vspec((H, 3 * H)), _vspec((1, 3 * H)), _vspec((1, 3 * H))],
        out_specs=_vspec((T, B, 2 * H)),
        scratch_shapes=[pltpu.VMEM((T, B, H), jnp.float32),
                        pltpu.VMEM((T, B, H), jnp.float32)],
        compiler_params=pltpu.CompilerParams(dimension_semantics=("arbitrary",)),
        cost_estimate=pl.CostEstimate(flops=flops,
                                      transcendentals=2 * T * B * 3 * H,
                                      bytes_accessed=bytes_acc),
    )(x_tbd, lengths_col,
      gru_p["wih_f"].astype(compute_dtype), gru_p["whh_f"].astype(compute_dtype),
      gru_p["bih_f"], gru_p["bhh_f"],
      gru_p["wih_b"].astype(compute_dtype), gru_p["whh_b"].astype(compute_dtype),
      gru_p["bih_b"], gru_p["bhh_b"])


# --------------------------------------------------------------------------------------
# kernel 3: AttentionWithContext pooling (masked softmax), optionally fused with the FC head
# --------------------------------------------------------------------------------------
def _attention_pool_body(x_ref, len_ref, sel_ref, selT_ref, tcol_ref,
                         wl_ref, bl_ref, wc_ref, bc_ref):
    x = x_ref[...]                                               # (R, F), R = T*B
    xf = x.astype(jnp.float32)

    # att = context(tanh(linear(x))) over all (t, b) rows at once.
    u = jnp.tanh(jnp.dot(x, wl_ref[...], preferred_element_type=jnp.float32)
                 + bl_ref[...].astype(jnp.float32))              # (R, A)
    att = (jnp.dot(u.astype(wc_ref.dtype), wc_ref[...],
                   preferred_element_type=jnp.float32)
           + bc_ref[...].astype(jnp.float32))                    # (R, 1)

    sel = sel_ref[...]                                           # (R, B) one-hot of b(i)
    selT = selT_ref[...]                                         # (B, R)

    # masked softmax over t per sequence b (exp without max-sub, as in the PyTorch module)
    lens_f = len_ref[...].astype(jnp.float32)                    # (B, 1)
    len_row = jnp.dot(sel, lens_f, preferred_element_type=jnp.float32)       # (R, 1)
    mask = (tcol_ref[...] < len_row).astype(jnp.float32)
    score = jnp.exp(att) * mask                                  # (R, 1)
    denom = jnp.dot(selT, score, preferred_element_type=jnp.float32)         # (B, 1)
    inv_row = jnp.dot(sel, 1.0 / denom, preferred_element_type=jnp.float32)  # (R, 1)
    w = score * inv_row

    # ft[b, :] = sum_t w[t, b] * x[t, b, :]   as a single (B, R) x (R, F) matmul.
    return jnp.dot(selT, w * xf, preferred_element_type=jnp.float32)         # (B, F) f32


def _attention_kernel(x_ref, len_ref, sel_ref, selT_ref, tcol_ref,
                      wl_ref, bl_ref, wc_ref, bc_ref, ft_ref):
    ft = _attention_pool_body(x_ref, len_ref, sel_ref, selT_ref, tcol_ref,
                              wl_ref, bl_ref, wc_ref, bc_ref)
    ft_ref[...] = ft.astype(ft_ref.dtype)


def _attention_fc_kernel(x_ref, len_ref, sel_ref, selT_ref, tcol_ref,
                         wl_ref, bl_ref, wc_ref, bc_ref, wfc_ref, bfc_ref, y_ref):
    ft = _attention_pool_body(x_ref, len_ref, sel_ref, selT_ref, tcol_ref,
                              wl_ref, bl_ref, wc_ref, bc_ref)
    y = (jnp.dot(ft.astype(wfc_ref.dtype), wfc_ref[...],
                 preferred_element_type=jnp.float32)
         + bfc_ref[...].astype(jnp.float32))
    if y_ref.shape[-1] == 1:                                     # HANModelRNN: relu iff Y == 1
        y = jnp.maximum(y, 0.0)
    y_ref[...] = y.astype(y_ref.dtype)


def attention_pool(x_flat, lengths_col, att_p, compute_dtype):
    R, F = x_flat.shape
    B = lengths_col.shape[0]
    A = att_p["wl"].shape[1]
    sel, selT, t_col = _sel_matrices(R // B, B)
    return pl.pallas_call(
        _attention_kernel,
        out_shape=jax.ShapeDtypeStruct((B, F), x_flat.dtype),
        grid=(1,),
        in_specs=[_vspec((R, F)), _vspec((B, 1)),
                  _vspec((R, B)), _vspec((B, R)), _vspec((R, 1)),
                  _vspec((F, A)), _vspec((1, A)), _vspec((A, 1)), _vspec((1, 1))],
        out_specs=_vspec((B, F)),
        compiler_params=pltpu.CompilerParams(dimension_semantics=("arbitrary",)),
    )(x_flat, lengths_col, sel, selT, t_col,
      att_p["wl"].astype(compute_dtype), att_p["bl"],
      att_p["wc"].astype(compute_dtype), att_p["bc"])


def attention_fc(x_flat, lengths_col, att_p, fc_p, compute_dtype):
    R, F = x_flat.shape
    B = lengths_col.shape[0]
    A = att_p["wl"].shape[1]
    Y = fc_p["w"].shape[1]
    sel, selT, t_col = _sel_matrices(R // B, B)
    return pl.pallas_call(
        _attention_fc_kernel,
        out_shape=jax.ShapeDtypeStruct((B, Y), jnp.float32),
        grid=(1,),
        in_specs=[_vspec((R, F)), _vspec((B, 1)),
                  _vspec((R, B)), _vspec((B, R)), _vspec((R, 1)),
                  _vspec((F, A)), _vspec((1, A)), _vspec((A, 1)), _vspec((1, 1)),
                  _vspec((F, Y)), _vspec((1, Y))],
        out_specs=_vspec((B, Y)),
        compiler_params=pltpu.CompilerParams(dimension_semantics=("arbitrary",)),
    )(x_flat, lengths_col, sel, selT, t_col,
      att_p["wl"].astype(compute_dtype), att_p["bl"],
      att_p["wc"].astype(compute_dtype), att_p["bc"],
      fc_p["w"].astype(compute_dtype), fc_p["b"])


# --------------------------------------------------------------------------------------
# full HANModelRNN forward (eval mode)
# --------------------------------------------------------------------------------------
@functools.partial(jax.jit, static_argnames=("hidden", "num_layers", "Y", "compute_dtype"))
def han_forward(params, notes, note_lengths, stay_lengths, stay_order,
                *, hidden, num_layers, Y, compute_dtype=jnp.float32):
    H = hidden
    cdt = compute_dtype
    N, Tn = notes.shape
    S, P = stay_order.shape
    E = params["embed"].shape[1]
    F = 2 * H

    # ---- token embedding (one-hot x table on the MXU; no HBM gather / pad) ----
    ids_col = jnp.transpose(notes).reshape(Tn * N, 1).astype(jnp.int32)      # time-major rows
    emb_flat = onehot_gather(ids_col, params["embed"].astype(cdt), one_based=False)
    x = emb_flat.reshape(Tn, N, E)                         # free row-major reshape in XLA
    # word_dropout: identity in eval mode

    # ---- note encoder: num_layers x bidirectional GRU + attention ----
    note_len = note_lengths.reshape(N, 1).astype(jnp.int32)
    for _l in range(num_layers):
        x = bigru_layer(x, note_len, params["note_gru"][_l], cdt)
        # inter-layer GRU dropout: identity in eval mode
    ft_note = attention_pool(x.reshape(Tn * N, F), note_len, params["note_att"], cdt)  # (N, F)

    # ---- order_notes: leading zero row folded into the one-hot mask (ids are 1-based) ----
    order_col = jnp.transpose(stay_order).reshape(P * S, 1).astype(jnp.int32)
    stays_flat = onehot_gather(order_col, ft_note, one_based=True)           # (P*S, F)
    z = stays_flat.reshape(P, S, F)

    # ---- stay encoder: bidirectional GRU + attention fused with the FC head ----
    stay_len = stay_lengths.reshape(S, 1).astype(jnp.int32)
    z = bigru_layer(z, stay_len, params["stay_gru"], cdt)
    y = attention_fc(z.reshape(P * S, F), stay_len, params["stay_att"], params["fc"], cdt)

    if Y == 1:                                             # torch: relu(y).squeeze()
        y = y.reshape(S)
    return y


# --------------------------------------------------------------------------------------
# pure-JAX reference (eval mode), used to validate the f32 kernel path
# --------------------------------------------------------------------------------------
_HI = jax.lax.Precision.HIGHEST


def _mm(a, b):
    return jnp.dot(a, b, precision=_HI)


def _bigru_ref(x_tbd, lengths, p, H):
    T, B, _ = x_tbd.shape

    def cell(x_t, h, wih, whh, bih, bhh):
        gi = _mm(x_t, wih) + bih[0]
        gh = _mm(h, whh) + bhh[0]
        r = jax.nn.sigmoid(gi[:, :H] + gh[:, :H])
        z = jax.nn.sigmoid(gi[:, H:2 * H] + gh[:, H:2 * H])
        n = jnp.tanh(gi[:, 2 * H:] + r * gh[:, 2 * H:])
        return (1.0 - z) * n + z * h

    def make_step(wih, whh, bih, bhh):
        def f(h, inp):
            t, x_t = inp
            h_new = cell(x_t, h, wih, whh, bih, bhh)
            valid = (t < lengths).astype(jnp.float32)[:, None]
            h_new = valid * h_new + (1.0 - valid) * h
            return h_new, valid * h_new
        return f

    ts = jnp.arange(T)
    h0 = jnp.zeros((B, H), jnp.float32)
    _, of = lax.scan(make_step(p["wih_f"], p["whh_f"], p["bih_f"], p["bhh_f"]),
                     h0, (ts, x_tbd))
    _, ob = lax.scan(make_step(p["wih_b"], p["whh_b"], p["bih_b"], p["bhh_b"]),
                     h0, (ts[::-1], x_tbd[::-1]))
    return jnp.concatenate([of, ob[::-1]], axis=-1)


def _attention_ref(x_tbd, lengths, p):
    T, _B, _F = x_tbd.shape
    u = jnp.tanh(jnp.einsum("tbf,fa->tba", x_tbd, p["wl"], precision=_HI) + p["bl"][0])
    att = jnp.einsum("tba,ac->tbc", u, p["wc"], precision=_HI)[..., 0] + p["bc"][0, 0]
    mask = (jnp.arange(T)[:, None] < lengths[None, :]).astype(jnp.float32)
    score = jnp.exp(att) * mask
    w = score / jnp.sum(score, axis=0, keepdims=True)
    return jnp.sum(w[:, :, None] * x_tbd, axis=0)


def han_reference(params, notes, note_lengths, stay_lengths, stay_order,
                  *, hidden, num_layers, Y):
    H = hidden
    emb = params["embed"][notes]                           # (N, Tn, E)
    x = jnp.transpose(emb, (1, 0, 2)).astype(jnp.float32)
    nl = note_lengths.astype(jnp.int32)
    for _l in range(num_layers):
        x = _bigru_ref(x, nl, params["note_gru"][_l], H)
    ft_note = _attention_ref(x, nl, params["note_att"])    # (N, 2H)

    padded = jnp.concatenate([jnp.zeros((1, ft_note.shape[-1]), ft_note.dtype), ft_note], 0)
    stays = padded[stay_order]                             # (S, P, 2H)
    sl = stay_lengths.astype(jnp.int32)
    z = _bigru_ref(jnp.transpose(stays, (1, 0, 2)), sl, params["stay_gru"], H)
    ft_stay = _attention_ref(z, sl, params["stay_att"])

    y = _mm(ft_stay, params["fc"]["w"]) + params["fc"]["b"][0]
    if Y == 1:
        y = jax.nn.relu(y).reshape(-1)
    return y


# --------------------------------------------------------------------------------------
if __name__ == "__main__":
    V, E, H, NL, Y = 64, 32, 32, 2, 1
    N_notes, T_note = 6, 8
    S_stays, P_stay = 2, 4

    key = jax.random.PRNGKey(0)
    kit = iter(jax.random.split(key, 64))

    def nrm(shape, scale=0.2):
        return scale * jax.random.normal(next(kit), shape, jnp.float32)

    def gru_params(din, h):
        return {"wih_f": nrm((din, 3 * h)), "whh_f": nrm((h, 3 * h)),
                "bih_f": nrm((1, 3 * h), 0.1), "bhh_f": nrm((1, 3 * h), 0.1),
                "wih_b": nrm((din, 3 * h)), "whh_b": nrm((h, 3 * h)),
                "bih_b": nrm((1, 3 * h), 0.1), "bhh_b": nrm((1, 3 * h), 0.1)}

    def att_params(f, a):
        return {"wl": nrm((f, a)), "bl": nrm((1, a), 0.1),
                "wc": nrm((a, 1)), "bc": nrm((1, 1), 0.1)}

    params = {
        "embed": nrm((V, E), 0.5),
        "note_gru": [gru_params(E if l == 0 else 2 * H, H) for l in range(NL)],
        "note_att": att_params(2 * H, 2 * H),
        "stay_gru": gru_params(2 * H, H),
        "stay_att": att_params(2 * H, 2 * H),
        "fc": {"w": nrm((2 * H, Y)), "b": nrm((1, Y), 0.1)},
    }

    notes = jax.random.randint(next(kit), (N_notes, T_note), 0, V, dtype=jnp.int32)
    note_lengths = jnp.array([8, 5, 3, 8, 6, 2], dtype=jnp.int32)
    stay_lengths = jnp.array([4, 2], dtype=jnp.int32)
    stay_order = jnp.array([[1, 2, 3, 4],
                            [5, 6, 0, 0]], dtype=jnp.int32)     # 1-based note ids, 0 = pad

    # f32 run, checked against the pure-JAX reference.
    y = jax.block_until_ready(
        han_forward(params, notes, note_lengths, stay_lengths, stay_order,
                    hidden=H, num_layers=NL, Y=Y, compute_dtype=jnp.float32))
    y_ref = jax.block_until_ready(
        han_reference(params, notes, note_lengths, stay_lengths, stay_order,
                      hidden=H, num_layers=NL, Y=Y))
    err = float(jnp.max(jnp.abs(y - y_ref)))
    assert y.shape == y_ref.shape, (y.shape, y_ref.shape)
    # loose-ish tolerance: covers possible reduced-precision f32 MXU passes while still
    # catching any structural/semantic bug (those show up as O(0.1)+ differences).
    assert jnp.allclose(y, y_ref, atol=2e-2, rtol=2e-2), err

    # bf16 MXU path (v6e / v7x performance configuration) — sanity check only.
    y_bf16 = jax.block_until_ready(
        han_forward(params, notes, note_lengths, stay_lengths, stay_order,
                    hidden=H, num_layers=NL, Y=Y, compute_dtype=jnp.bfloat16))
    assert y_bf16.shape == y.shape
    assert bool(jnp.all(jnp.isfinite(y_bf16)))

    print("KERNEL_OK")
</pallas_src>

<mosaic_0001>
module attributes {stable_mosaic.version = 11 : i64} {
  func.func @_onehot_gather_kernel(%arg0: i32, %arg1: memref<48x1xi32, #tpu.memory_space<vmem>>, %arg2: memref<64x32xf32, #tpu.memory_space<vmem>>, %arg3: memref<48x32xf32, #tpu.memory_space<vmem>>) attributes {dimension_semantics = [#tpu.dimension_semantics<arbitrary>], iteration_bounds = array<i64: 1>, scalar_prefetch = 0 : i64, scratch_operands = 0 : i64, tpu.core_type = #tpu.core_type<tc>, window_params = [{pipeline_mode = #tpu.pipeline_mode<synchronous>, transform_indices = @transform_0, window_bounds = array<i64: 48, 1>}, {pipeline_mode = #tpu.pipeline_mode<synchronous>, transform_indices = @transform_1, window_bounds = array<i64: 64, 32>}, {pipeline_mode = #tpu.pipeline_mode<synchronous>, transform_indices = @transform_2, window_bounds = array<i64: 48, 32>}]} {
    %c0 = arith.constant 0 : index
    %c0_0 = arith.constant 0 : index
    %0 = vector.load %arg1[%c0, %c0_0] : memref<48x1xi32, #tpu.memory_space<vmem>>, vector<48x1xi32>
    %1 = tpu.iota {dimensions = array<i32: 1>} : vector<48x64xi32>
    %2 = vector.broadcast %0 : vector<48x1xi32> to vector<48x64xi32>
    %3 = arith.cmpi eq, %1, %2 : vector<48x64xi32>
    %4 = arith.extui %3 : vector<48x64xi1> to vector<48x64xi32>
    %5 = arith.sitofp %4 : vector<48x64xi32> to vector<48x64xf32>
    %c0_1 = arith.constant 0 : index
    %c0_2 = arith.constant 0 : index
    %6 = vector.load %arg2[%c0_1, %c0_2] : memref<64x32xf32, #tpu.memory_space<vmem>>, vector<64x32xf32>
    %cst = arith.constant dense<0.000000e+00> : vector<48x32xf32>
    %7 = tpu.matmul %5, %6, %cst {dimension_numbers = #tpu.dot_dimension_numbers<[1], [0], [0], [1], [0, 0, 1, 1], [], []>} : vector<48x64xf32>, vector<64x32xf32>, vector<48x32xf32> -> vector<48x32xf32>
    %c0_3 = arith.constant 0 : index
    %c0_4 = arith.constant 0 : index
    %8 = vector.load %arg3[%c0_3, %c0_4] : memref<48x32xf32, #tpu.memory_space<vmem>>, vector<48x32xf32>
    tpu.vector_store %arg3[%c0_3, %c0_4], %7 {strides = array<i32>} : memref<48x32xf32, #tpu.memory_space<vmem>>, vector<48x32xf32>,
    return
  }
  func.func @transform_0(%arg0: i32) -> (i32, i32) {
    %c0_i32 = arith.constant 0 : i32
    %c0_i32_0 = arith.constant 0 : i32
    %c0_i32_1 = arith.constant 0 : i32
    return %c0_i32, %c0_i32_0 : i32, i32
  }
  func.func @transform_1(%arg0: i32) -> (i32, i32) {
    %c0_i32 = arith.constant 0 : i32
    %c0_i32_0 = arith.constant 0 : i32
    %c0_i32_1 = arith.constant 0 : i32
    return %c0_i32, %c0_i32_0 : i32, i32
  }
  func.func @transform_2(%arg0: i32) -> (i32, i32) {
    %c0_i32 = arith.constant 0 : i32
    %c0_i32_0 = arith.constant 0 : i32
    %c0_i32_1 = arith.constant 0 : i32
    return %c0_i32, %c0_i32_0 : i32, i32
  }
}

module attributes {stable_mosaic.version = 11 : i64} {
  func.func @_bigru_kernel(%arg0: i32, %arg1: memref<8x6x64xf32, #tpu.memory_space<vmem>>, %arg2: memref<6x1xi32, #tpu.memory_space<vmem>>, %arg3: memref<64x96xf32, #tpu.memory_space<vmem>>, %arg4: memref<32x96xf32, #tpu.memory_space<vmem>>, %arg5: memref<1x96xf32, #tpu.memory_space<vmem>>, %arg6: memref<1x96xf32, #tpu.memory_space<vmem>>, %arg7: memref<64x96xf32, #tpu.memory_space<vmem>>, %arg8: memref<32x96xf32, #tpu.memory_space<vmem>>, %arg9: memref<1x96xf32, #tpu.memory_space<vmem>>, %arg10: memref<1x96xf32, #tpu.memory_space<vmem>>, %arg11: memref<8x6x64xf32, #tpu.memory_space<vmem>>, %arg12: memref<8x6x32xf32, #tpu.memory_space<vmem>>, %arg13: memref<8x6x32xf32, #tpu.memory_space<vmem>>) attributes {dimension_semantics = [#tpu.dimension_semantics<arbitrary>], iteration_bounds = array<i64: 1>, scalar_prefetch = 0 : i64, scratch_operands = 2 : i64, tpu.core_type = #tpu.core_type<tc>, window_params = [{pipeline_mode = #tpu.pipeline_mode<synchronous>, transform_indices = @transform_0, window_bounds = array<i64: 8, 6, 64>}, {pipeline_mode = #tpu.pipeline_mode<synchronous>, transform_indices = @transform_1, window_bounds = array<i64: 6, 1>}, {pipeline_mode = #tpu.pipeline_mode<synchronous>, transform_indices = @transform_2, window_bounds = array<i64: 64, 96>}, {pipeline_mode = #tpu.pipeline_mode<synchronous>, transform_indices = @transform_3, window_bounds = array<i64: 32, 96>}, {pipeline_mode = #tpu.pipeline_mode<synchronous>, transform_indices = @transform_4, window_bounds = array<i64: 1, 96>}, {pipeline_mode = #tpu.pipeline_mode<synchronous>, transform_indices = @transform_5, window_bounds = array<i64: 1, 96>}, {pipeline_mode = #tpu.pipeline_mode<synchronous>, transform_indices = @transform_6, window_bounds = array<i64: 64, 96>}, {pipeline_mode = #tpu.pipeline_mode<synchronous>, transform_indices = @transform_7, window_bounds = array<i64: 32, 96>}, {pipeline_mode = #tpu.pipeline_mode<synchronous>, transform_indices = @transform_8, window_bounds = array<i64: 1, 96>}, {pipeline_mode = #tpu.pipeline_mode<synchronous>, transform_indices = @transform_9, window_bounds = array<i64: 1, 96>}, {pipeline_mode = #tpu.pipeline_mode<synchronous>, transform_indices = @transform_10, window_bounds = array<i64: 8, 6, 64>}]} {
    %c0 = arith.constant 0 : index
    %c0_0 = arith.constant 0 : index
    %0 = vector.load %arg2[%c0, %c0_0] : memref<6x1xi32, #tpu.memory_space<vmem>>, vector<6x1xi32>
    %c0_1 = arith.constant 0 : index
    %c0_2 = arith.constant 0 : index
    %1 = vector.load %arg3[%c0_1, %c0_2] : memref<64x96xf32, #tpu.memory_space<vmem>>, vector<64x96xf32>
    %c0_3 = arith.constant 0 : index
    %c0_4 = arith.constant 0 : index
    %2 = vector.load %arg4[%c0_3, %c0_4] : memref<32x96xf32, #tpu.memory_space<vmem>>, vector<32x96xf32>
    %c0_5 = arith.constant 0 : index
    %c0_6 = arith.constant 0 : index
    %3 = vector.load %arg5[%c0_5, %c0_6] : memref<1x96xf32, #tpu.memory_space<vmem>>, vector<1x96xf32>
    %c0_7 = arith.constant 0 : index
    %c0_8 = arith.constant 0 : index
    %4 = vector.load %arg6[%c0_7, %c0_8] : memref<1x96xf32, #tpu.memory_space<vmem>>, vector<1x96xf32>
    %c0_9 = arith.constant 0 : index
    %c0_10 = arith.constant 0 : index
    %5 = vector.load %arg7[%c0_9, %c0_10] : memref<64x96xf32, #tpu.memory_space<vmem>>, vector<64x96xf32>
    %c0_11 = arith.constant 0 : index
    %c0_12 = arith.constant 0 : index
    %6 = vector.load %arg8[%c0_11, %c0_12] : memref<32x96xf32, #tpu.memory_space<vmem>>, vector<32x96xf32>
    %c0_13 = arith.constant 0 : index
    %c0_14 = arith.constant 0 : index
    %7 = vector.load %arg9[%c0_13, %c0_14] : memref<1x96xf32, #tpu.memory_space<vmem>>, vector<1x96xf32>
    %c0_15 = arith.constant 0 : index
    %c0_16 = arith.constant 0 : index
    %8 = vector.load %arg10[%c0_15, %c0_16] : memref<1x96xf32, #tpu.memory_space<vmem>>, vector<1x96xf32>
    %cst = arith.constant 0.000000e+00 : f32
    %9 = vector.broadcast %cst : f32 to vector<6x32xf32>
    %c0_i32 = arith.constant 0 : i32
    %c8_i32 = arith.constant 8 : i32
    %10 = arith.addi %c0_i32, %c8_i32 : i32
    %c1_i32 = arith.constant 1 : i32
    %11 = scf.for %arg14 = %c0_i32 to %10 step %c1_i32 iter_args(%arg15 = %9) -> (vector<6x32xf32>)  : i32 {
      %18 = arith.index_cast %arg14 : i32 to index
      %c0_33 = arith.constant 0 : index
      %c0_34 = arith.constant 0 : index
      %19 = vector.load %arg1[%18, %c0_33, %c0_34] : memref<8x6x64xf32, #tpu.memory_space<vmem>>, vector<1x6x64xf32>
      %20 = vector.shape_cast %19 : vector<1x6x64xf32> to vector<6x64xf32>
      %cst_35 = arith.constant dense<0.000000e+00> : vector<6x96xf32>
      %21 = tpu.matmul %20, %1, %cst_35 {dimension_numbers = #tpu.dot_dimension_numbers<[1], [0], [0], [1], [0, 0, 1, 1], [], []>} : vector<6x64xf32>, vector<64x96xf32>, vector<6x96xf32> -> vector<6x96xf32>
      %22 = vector.broadcast %3 : vector<1x96xf32> to vector<6x96xf32>
      %23 = arith.addf %21, %22 : vector<6x96xf32>
      %cst_36 = arith.constant dense<0.000000e+00> : vector<6x96xf32>
      %24 = tpu.matmul %arg15, %2, %cst_36 {dimension_numbers = #tpu.dot_dimension_numbers<[1], [0], [0], [1], [0, 0, 1, 1], [], []>} : vector<6x32xf32>, vector<32x96xf32>, vector<6x96xf32> -> vector<6x96xf32>
      %25 = vector.broadcast %4 : vector<1x96xf32> to vector<6x96xf32>
      %26 = arith.addf %24, %25 : vector<6x96xf32>
      %27 = vector.extract_strided_slice %23 {offsets = [0, 0], sizes = [6, 32], strides = [1, 1]} : vector<6x96xf32> to vector<6x32xf32>
      %28 = vector.extract_strided_slice %26 {offsets = [0, 0], sizes = [6, 32], strides = [1, 1]} : vector<6x96xf32> to vector<6x32xf32>
      %29 = arith.addf %27, %28 : vector<6x32xf32>
      %30 = arith.negf %29 : vector<6x32xf32>
      %31 = math.exp %30 : vector<6x32xf32>
      %cst_37 = arith.constant 1.000000e+00 : f32
      %32 = vector.broadcast %cst_37 : f32 to vector<6x32xf32>
      %33 = arith.addf %32, %31 : vector<6x32xf32>
      %34 = arith.divf %32, %33 : vector<6x32xf32>
      %35 = vector.extract_strided_slice %23 {offsets = [0, 32], sizes = [6, 32], strides = [1, 1]} : vector<6x96xf32> to vector<6x32xf32>
      %36 = vector.extract_strided_slice %26 {offsets = [0, 32], sizes = [6, 32], strides = [1, 1]} : vector<6x96xf32> to vector<6x32xf32>
      %37 = arith.addf %35, %36 : vector<6x32xf32>
      %38 = arith.negf %37 : vector<6x32xf32>
      %39 = math.exp %38 : vector<6x32xf32>
      %cst_38 = arith.constant 1.000000e+00 : f32
      %40 = vector.broadcast %cst_38 : f32 to vector<6x32xf32>
      %41 = arith.addf %40, %39 : vector<6x32xf32>
      %42 = arith.divf %40, %41 : vector<6x32xf32>
      %43 = vector.extract_strided_slice %23 {offsets = [0, 64], sizes = [6, 32], strides = [1, 1]} : vector<6x96xf32> to vector<6x32xf32>
      %44 = vector.extract_strided_slice %26 {offsets = [0, 64], sizes = [6, 32], strides = [1, 1]} : vector<6x96xf32> to vector<6x32xf32>
      %45 = arith.mulf %34, %44 : vector<6x32xf32>
      %46 = arith.addf %43, %45 : vector<6x32xf32>
      %47 = math.tanh %46 : vector<6x32xf32>
      %cst_39 = arith.constant 1.000000e+00 : f32
      %48 = vector.broadcast %cst_39 : f32 to vector<6x32xf32>
      %49 = arith.subf %48, %42 : vector<6x32xf32>
      %50 = arith.mulf %49, %47 : vector<6x32xf32>
      %51 = arith.mulf %42, %arg15 : vector<6x32xf32>
      %52 = arith.addf %50, %51 : vector<6x32xf32>
      %53 = vector.broadcast %arg14 : i32 to vector<6x1xi32>
      %54 = arith.cmpi slt, %53, %0 : vector<6x1xi32>
      %55 = arith.extui %54 : vector<6x1xi1> to vector<6x1xi32>
      %56 = arith.sitofp %55 : vector<6x1xi32> to vector<6x1xf32>
      %57 = vector.broadcast %56 : vector<6x1xf32> to vector<6x32xf32>
      %58 = arith.mulf %57, %52 : vector<6x32xf32>
      %cst_40 = arith.constant 1.000000e+00 : f32
      %59 = vector.broadcast %cst_40 : f32 to vector<6x1xf32>
      %60 = arith.subf %59, %56 : vector<6x1xf32>
      %61 = vector.broadcast %60 : vector<6x1xf32> to vector<6x32xf32>
      %62 = arith.mulf %61, %arg15 : vector<6x32xf32>
      %63 = arith.addf %58, %62 : vector<6x32xf32>
      %64 = vector.broadcast %56 : vector<6x1xf32> to vector<6x32xf32>
      %65 = arith.mulf %64, %63 : vector<6x32xf32>
      %66 = arith.index_cast %arg14 : i32 to index
      %c0_41 = arith.constant 0 : index
      %c0_42 = arith.constant 0 : index
      %67 = vector.load %arg12[%66, %c0_41, %c0_42] : memref<8x6x32xf32, #tpu.memory_space<vmem>>, vector<1x6x32xf32>
      %68 = vector.shape_cast %67 : vector<1x6x32xf32> to vector<6x32xf32>
      %69 = vector.shape_cast %65 : vector<6x32xf32> to vector<1x6x32xf32>
      tpu.vector_store %arg12[%66, %c0_41, %c0_42], %69 {strides = array<i32>} : memref<8x6x32xf32, #tpu.memory_space<vmem>>, vector<1x6x32xf32>,
      scf.yield %63 : vector<6x32xf32>
    }
    %c8_i32_17 = arith.constant 8 : i32
    %c0_i32_18 = arith.constant 0 : i32
    %c8_i32_19 = arith.constant 8 : i32
    %12 = arith.addi %c0_i32_18, %c8_i32_19 : i32
    %c1_i32_20 = arith.constant 1 : i32
    %13 = scf.for %arg14 = %c0_i32_18 to %12 step %c1_i32_20 iter_args(%arg15 = %9) -> (vector<6x32xf32>)  : i32 {
      %c7_i32 = arith.constant 7 : i32
      %18 = arith.subi %c7_i32, %arg14 : i32
      %19 = arith.index_cast %18 : i32 to index
      %c0_33 = arith.constant 0 : index
      %c0_34 = arith.constant 0 : index
      %20 = vector.load %arg1[%19, %c0_33, %c0_34] : memref<8x6x64xf32, #tpu.memory_space<vmem>>, vector<1x6x64xf32>
      %21 = vector.shape_cast %20 : vector<1x6x64xf32> to vector<6x64xf32>
      %cst_35 = arith.constant dense<0.000000e+00> : vector<6x96xf32>
      %22 = tpu.matmul %21, %5, %cst_35 {dimension_numbers = #tpu.dot_dimension_numbers<[1], [0], [0], [1], [0, 0, 1, 1], [], []>} : vector<6x64xf32>, vector<64x96xf32>, vector<6x96xf32> -> vector<6x96xf32>
      %23 = vector.broadcast %7 : vector<1x96xf32> to vector<6x96xf32>
      %24 = arith.addf %22, %23 : vector<6x96xf32>
      %cst_36 = arith.constant dense<0.000000e+00> : vector<6x96xf32>
      %25 = tpu.matmul %arg15, %6, %cst_36 {dimension_numbers = #tpu.dot_dimension_numbers<[1], [0], [0], [1], [0, 0, 1, 1], [], []>} : vector<6x32xf32>, vector<32x96xf32>, vector<6x96xf32> -> vector<6x96xf32>
      %26 = vector.broadcast %8 : vector<1x96xf32> to vector<6x96xf32>
      %27 = arith.addf %25, %26 : vector<6x96xf32>
      %28 = vector.extract_strided_slice %24 {offsets = [0, 0], sizes = [6, 32], strides = [1, 1]} : vector<6x96xf32> to vector<6x32xf32>
      %29 = vector.extract_strided_slice %27 {offsets = [0, 0], sizes = [6, 32], strides = [1, 1]} : vector<6x96xf32> to vector<6x32xf32>
      %30 = arith.addf %28, %29 : vector<6x32xf32>
      %31 = arith.negf %30 : vector<6x32xf32>
      %32 = math.exp %31 : vector<6x32xf32>
      %cst_37 = arith.constant 1.000000e+00 : f32
      %33 = vector.broadcast %cst_37 : f32 to vector<6x32xf32>
      %34 = arith.addf %33, %32 : vector<6x32xf32>
      %35 = arith.divf %33, %34 : vector<6x32xf32>
      %36 = vector.extract_strided_slice %24 {offsets = [0, 32], sizes = [6, 32], strides = [1, 1]} : vector<6x96xf32> to vector<6x32xf32>
      %37 = vector.extract_strided_slice %27 {offsets = [0, 32], sizes = [6, 32], strides = [1, 1]} : vector<6x96xf32> to vector<6x32xf32>
      %38 = arith.addf %36, %37 : vector<6x32xf32>
      %39 = arith.negf %38 : vector<6x32xf32>
      %40 = math.exp %39 : vector<6x32xf32>
      %cst_38 = arith.constant 1.000000e+00 : f32
      %41 = vector.broadcast %cst_38 : f32 to vector<6x32xf32>
      %42 = arith.addf %41, %40 : vector<6x32xf32>
      %43 = arith.divf %41, %42 : vector<6x32xf32>
      %44 = vector.extract_strided_slice %24 {offsets = [0, 64], sizes = [6, 32], strides = [1, 1]} : vector<6x96xf32> to vector<6x32xf32>
      %45 = vector.extract_strided_slice %27 {offsets = [0, 64], sizes = [6, 32], strides = [1, 1]} : vector<6x96xf32> to vector<6x32xf32>
      %46 = arith.mulf %35, %45 : vector<6x32xf32>
      %47 = arith.addf %44, %46 : vector<6x32xf32>
      %48 = math.tanh %47 : vector<6x32xf32>
      %cst_39 = arith.constant 1.000000e+00 : f32
      %49 = vector.broadcast %cst_39 : f32 to vector<6x32xf32>
      %50 = arith.subf %49, %43 : vector<6x32xf32>
      %51 = arith.mulf %50, %48 : vector<6x32xf32>
      %52 = arith.mulf %43, %arg15 : vector<6x32xf32>
      %53 = arith.addf %51, %52 : vector<6x32xf32>
      %54 = vector.broadcast %18 : i32 to vector<6x1xi32>
      %55 = arith.cmpi slt, %54, %0 : vector<6x1xi32>
      %56 = arith.extui %55 : vector<6x1xi1> to vector<6x1xi32>
      %57 = arith.sitofp %56 : vector<6x1xi32> to vector<6x1xf32>
      %58 = vector.broadcast %57 : vector<6x1xf32> to vector<6x32xf32>
      %59 = arith.mulf %58, %53 : vector<6x32xf32>
      %cst_40 = arith.constant 1.000000e+00 : f32
      %60 = vector.broadcast %cst_40 : f32 to vector<6x1xf32>
      %61 = arith.subf %60, %57 : vector<6x1xf32>
      %62 = vector.broadcast %61 : vector<6x1xf32> to vector<6x32xf32>
      %63 = arith.mulf %62, %arg15 : vector<6x32xf32>
      %64 = arith.addf %59, %63 : vector<6x32xf32>
      %65 = vector.broadcast %57 : vector<6x1xf32> to vector<6x32xf32>
      %66 = arith.mulf %65, %64 : vector<6x32xf32>
      %67 = arith.index_cast %18 : i32 to index
      %c0_41 = arith.constant 0 : index
      %c0_42 = arith.constant 0 : index
      %68 = vector.load %arg13[%67, %c0_41, %c0_42] : memref<8x6x32xf32, #tpu.memory_space<vmem>>, vector<1x6x32xf32>
      %69 = vector.shape_cast %68 : vector<1x6x32xf32> to vector<6x32xf32>
      %70 = vector.shape_cast %66 : vector<6x32xf32> to vector<1x6x32xf32>
      tpu.vector_store %arg13[%67, %c0_41, %c0_42], %70 {strides = array<i32>} : memref<8x6x32xf32, #tpu.memory_space<vmem>>, vector<1x6x32xf32>,
      scf.yield %64 : vector<6x32xf32>
    }
    %c8_i32_21 = arith.constant 8 : i32
    %c0_22 = arith.constant 0 : index
    %c0_23 = arith.constant 0 : index
    %c0_24 = arith.constant 0 : index
    %14 = vector.load %arg12[%c0_22, %c0_23, %c0_24] : memref<8x6x32xf32, #tpu.memory_space<vmem>>, vector<8x6x32xf32>
    %c0_25 = arith.constant 0 : index
    %c0_26 = arith.constant 0 : index
    %c0_27 = arith.constant 0 : index
    %15 = vector.load %arg11[%c0_25, %c0_26, %c0_27] : memref<8x6x64xf32, #tpu.memory_space<vmem>>, vector<8x6x32xf32>
    tpu.vector_store %arg11[%c0_25, %c0_26, %c0_27], %14 {strides = array<i32>} : memref<8x6x64xf32, #tpu.memory_space<vmem>>, vector<8x6x32xf32>,
    %c0_28 = arith.constant 0 : index
    %c0_29 = arith.constant 0 : index
    %c0_30 = arith.constant 0 : index
    %16 = vector.load %arg13[%c0_28, %c0_29, %c0_30] : memref<8x6x32xf32, #tpu.memory_space<vmem>>, vector<8x6x32xf32>
    %c0_31 = arith.constant 0 : index
    %c0_32 = arith.constant 0 : index
    %c32 = arith.constant 32 : index
    %17 = vector.load %arg11[%c0_31, %c0_32, %c32] : memref<8x6x64xf32, #tpu.memory_space<vmem>>, vector<8x6x32xf32>
    tpu.vector_store %arg11[%c0_31, %c0_32, %c32], %16 {strides = array<i32>} : memref<8x6x64xf32, #tpu.memory_space<vmem>>, vector<8x6x32xf32>,
    return
  }
  func.func @transform_0(%arg0: i32) -> (i32, i32, i32) {
    %c0_i32 = arith.constant 0 : i32
    %c0_i32_0 = arith.constant 0 : i32
    %c0_i32_1 = arith.constant 0 : i32
    %c0_i32_2 = arith.constant 0 : i32
    return %c0_i32, %c0_i32_0, %c0_i32_1 : i32, i32, i32
  }
  func.func @transform_1(%arg0: i32) -> (i32, i32) {
    %c0_i32 = arith.constant 0 : i32
    %c0_i32_0 = arith.constant 0 : i32
    %c0_i32_1 = arith.constant 0 : i32
    return %c0_i32, %c0_i32_0 : i32, i32
  }
  func.func @transform_2(%arg0: i32) -> (i32, i32) {
    %c0_i32 = arith.constant 0 : i32
    %c0_i32_0 = arith.constant 0 : i32
    %c0_i32_1 = arith.constant 0 : i32
    return %c0_i32, %c0_i32_0 : i32, i32
  }
  func.func @transform_3(%arg0: i32) -> (i32, i32) {
    %c0_i32 = arith.constant 0 : i32
    %c0_i32_0 = arith.constant 0 : i32
    %c0_i32_1 = arith.constant 0 : i32
    return %c0_i32, %c0_i32_0 : i32, i32
  }
  func.func @transform_4(%arg0: i32) -> (i32, i32) {
    %c0_i32 = arith.constant 0 : i32
    %c0_i32_0 = arith.constant 0 : i32
    %c0_i32_1 = arith.constant 0 : i32
    return %c0_i32, %c0_i32_0 : i32, i32
  }
  func.func @transform_5(%arg0: i32) -> (i32, i32) {
    %c0_i32 = arith.constant 0 : i32
    %c0_i32_0 = arith.constant 0 : i32
    %c0_i32_1 = arith.constant 0 : i32
    return %c0_i32, %c0_i32_0 : i32, i32
  }
  func.func @transform_6(%arg0: i32) -> (i32, i32) {
    %c0_i32 = arith.constant 0 : i32
    %c0_i32_0 = arith.constant 0 : i32
    %c0_i32_1 = arith.constant 0 : i32
    return %c0_i32, %c0_i32_0 : i32, i32
  }
  func.func @transform_7(%arg0: i32) -> (i32, i32) {
    %c0_i32 = arith.constant 0 : i32
    %c0_i32_0 = arith.constant 0 : i32
    %c0_i32_1 = arith.constant 0 : i32
    return %c0_i32, %c0_i32_0 : i32, i32
  }
  func.func @transform_8(%arg0: i32) -> (i32, i32) {
    %c0_i32 = arith.constant 0 : i32
    %c0_i32_0 = arith.constant 0 : i32
    %c0_i32_1 = arith.constant 0 : i32
    return %c0_i32, %c0_i32_0 : i32, i32
  }
  func.func @transform_9(%arg0: i32) -> (i32, i32) {
    %c0_i32 = arith.constant 0 : i32
    %c0_i32_0 = arith.constant 0 : i32
    %c0_i32_1 = arith.constant 0 : i32
    return %c0_i32, %c0_i32_0 : i32, i32
  }
  func.func @transform_10(%arg0: i32) -> (i32, i32, i32) {
    %c0_i32 = arith.constant 0 : i32
    %c0_i32_0 = arith.constant 0 : i32
    %c0_i32_1 = arith.constant 0 : i32
    %c0_i32_2 = arith.constant 0 : i32
    return %c0_i32, %c0_i32_0, %c0_i32_1 : i32, i32, i32
  }
}

module attributes {stable_mosaic.version = 11 : i64} {
  func.func @_bigru_kernel(%arg0: i32, %arg1: memref<8x6x32xf32, #tpu.memory_space<vmem>>, %arg2: memref<6x1xi32, #tpu.memory_space<vmem>>, %arg3: memref<32x96xf32, #tpu.memory_space<vmem>>, %arg4: memref<32x96xf32, #tpu.memory_space<vmem>>, %arg5: memref<1x96xf32, #tpu.memory_space<vmem>>, %arg6: memref<1x96xf32, #tpu.memory_space<vmem>>, %arg7: memref<32x96xf32, #tpu.memory_space<vmem>>, %arg8: memref<32x96xf32, #tpu.memory_space<vmem>>, %arg9: memref<1x96xf32, #tpu.memory_space<vmem>>, %arg10: memref<1x96xf32, #tpu.memory_space<vmem>>, %arg11: memref<8x6x64xf32, #tpu.memory_space<vmem>>, %arg12: memref<8x6x32xf32, #tpu.memory_space<vmem>>, %arg13: memref<8x6x32xf32, #tpu.memory_space<vmem>>) attributes {dimension_semantics = [#tpu.dimension_semantics<arbitrary>], iteration_bounds = array<i64: 1>, scalar_prefetch = 0 : i64, scratch_operands = 2 : i64, tpu.core_type = #tpu.core_type<tc>, window_params = [{pipeline_mode = #tpu.pipeline_mode<synchronous>, transform_indices = @transform_0, window_bounds = array<i64: 8, 6, 32>}, {pipeline_mode = #tpu.pipeline_mode<synchronous>, transform_indices = @transform_1, window_bounds = array<i64: 6, 1>}, {pipeline_mode = #tpu.pipeline_mode<synchronous>, transform_indices = @transform_2, window_bounds = array<i64: 32, 96>}, {pipeline_mode = #tpu.pipeline_mode<synchronous>, transform_indices = @transform_3, window_bounds = array<i64: 32, 96>}, {pipeline_mode = #tpu.pipeline_mode<synchronous>, transform_indices = @transform_4, window_bounds = array<i64: 1, 96>}, {pipeline_mode = #tpu.pipeline_mode<synchronous>, transform_indices = @transform_5, window_bounds = array<i64: 1, 96>}, {pipeline_mode = #tpu.pipeline_mode<synchronous>, transform_indices = @transform_6, window_bounds = array<i64: 32, 96>}, {pipeline_mode = #tpu.pipeline_mode<synchronous>, transform_indices = @transform_7, window_bounds = array<i64: 32, 96>}, {pipeline_mode = #tpu.pipeline_mode<synchronous>, transform_indices = @transform_8, window_bounds = array<i64: 1, 96>}, {pipeline_mode = #tpu.pipeline_mode<synchronous>, transform_indices = @transform_9, window_bounds = array<i64: 1, 96>}, {pipeline_mode = #tpu.pipeline_mode<synchronous>, transform_indices = @transform_10, window_bounds = array<i64: 8, 6, 64>}]} {
    %c0 = arith.constant 0 : index
    %c0_0 = arith.constant 0 : index
    %0 = vector.load %arg2[%c0, %c0_0] : memref<6x1xi32, #tpu.memory_space<vmem>>, vector<6x1xi32>
    %c0_1 = arith.constant 0 : index
    %c0_2 = arith.constant 0 : index
    %1 = vector.load %arg3[%c0_1, %c0_2] : memref<32x96xf32, #tpu.memory_space<vmem>>, vector<32x96xf32>
    %c0_3 = arith.constant 0 : index
    %c0_4 = arith.constant 0 : index
    %2 = vector.load %arg4[%c0_3, %c0_4] : memref<32x96xf32, #tpu.memory_space<vmem>>, vector<32x96xf32>
    %c0_5 = arith.constant 0 : index
    %c0_6 = arith.constant 0 : index
    %3 = vector.load %arg5[%c0_5, %c0_6] : memref<1x96xf32, #tpu.memory_space<vmem>>, vector<1x96xf32>
    %c0_7 = arith.constant 0 : index
    %c0_8 = arith.constant 0 : index
    %4 = vector.load %arg6[%c0_7, %c0_8] : memref<1x96xf32, #tpu.memory_space<vmem>>, vector<1x96xf32>
    %c0_9 = arith.constant 0 : index
    %c0_10 = arith.constant 0 : index
    %5 = vector.load %arg7[%c0_9, %c0_10] : memref<32x96xf32, #tpu.memory_space<vmem>>, vector<32x96xf32>
    %c0_11 = arith.constant 0 : index
    %c0_12 = arith.constant 0 : index
    %6 = vector.load %arg8[%c0_11, %c0_12] : memref<32x96xf32, #tpu.memory_space<vmem>>, vector<32x96xf32>
    %c0_13 = arith.constant 0 : index
    %c0_14 = arith.constant 0 : index
    %7 = vector.load %arg9[%c0_13, %c0_14] : memref<1x96xf32, #tpu.memory_space<vmem>>, vector<1x96xf32>
    %c0_15 = arith.constant 0 : index
    %c0_16 = arith.constant 0 : index
    %8 = vector.load %arg10[%c0_15, %c0_16] : memref<1x96xf32, #tpu.memory_space<vmem>>, vector<1x96xf32>
    %cst = arith.constant 0.000000e+00 : f32
    %9 = vector.broadcast %cst : f32 to vector<6x32xf32>
    %c0_i32 = arith.constant 0 : i32
    %c8_i32 = arith.constant 8 : i32
    %10 = arith.addi %c0_i32, %c8_i32 : i32
    %c1_i32 = arith.constant 1 : i32
    %11 = scf.for %arg14 = %c0_i32 to %10 step %c1_i32 iter_args(%arg15 = %9) -> (vector<6x32xf32>)  : i32 {
      %18 = arith.index_cast %arg14 : i32 to index
      %c0_33 = arith.constant 0 : index
      %c0_34 = arith.constant 0 : index
      %19 = vector.load %arg1[%18, %c0_33, %c0_34] : memref<8x6x32xf32, #tpu.memory_space<vmem>>, vector<1x6x32xf32>
      %20 = vector.shape_cast %19 : vector<1x6x32xf32> to vector<6x32xf32>
      %cst_35 = arith.constant dense<0.000000e+00> : vector<6x96xf32>
      %21 = tpu.matmul %20, %1, %cst_35 {dimension_numbers = #tpu.dot_dimension_numbers<[1], [0], [0], [1], [0, 0, 1, 1], [], []>} : vector<6x32xf32>, vector<32x96xf32>, vector<6x96xf32> -> vector<6x96xf32>
      %22 = vector.broadcast %3 : vector<1x96xf32> to vector<6x96xf32>
      %23 = arith.addf %21, %22 : vector<6x96xf32>
      %cst_36 = arith.constant dense<0.000000e+00> : vector<6x96xf32>
      %24 = tpu.matmul %arg15, %2, %cst_36 {dimension_numbers = #tpu.dot_dimension_numbers<[1], [0], [0], [1], [0, 0, 1, 1], [], []>} : vector<6x32xf32>, vector<32x96xf32>, vector<6x96xf32> -> vector<6x96xf32>
      %25 = vector.broadcast %4 : vector<1x96xf32> to vector<6x96xf32>
      %26 = arith.addf %24, %25 : vector<6x96xf32>
      %27 = vector.extract_strided_slice %23 {offsets = [0, 0], sizes = [6, 32], strides = [1, 1]} : vector<6x96xf32> to vector<6x32xf32>
      %28 = vector.extract_strided_slice %26 {offsets = [0, 0], sizes = [6, 32], strides = [1, 1]} : vector<6x96xf32> to vector<6x32xf32>
      %29 = arith.addf %27, %28 : vector<6x32xf32>
      %30 = arith.negf %29 : vector<6x32xf32>
      %31 = math.exp %30 : vector<6x32xf32>
      %cst_37 = arith.constant 1.000000e+00 : f32
      %32 = vector.broadcast %cst_37 : f32 to vector<6x32xf32>
      %33 = arith.addf %32, %31 : vector<6x32xf32>
      %34 = arith.divf %32, %33 : vector<6x32xf32>
      %35 = vector.extract_strided_slice %23 {offsets = [0, 32], sizes = [6, 32], strides = [1, 1]} : vector<6x96xf32> to vector<6x32xf32>
      %36 = vector.extract_strided_slice %26 {offsets = [0, 32], sizes = [6, 32], strides = [1, 1]} : vector<6x96xf32> to vector<6x32xf32>
      %37 = arith.addf %35, %36 : vector<6x32xf32>
      %38 = arith.negf %37 : vector<6x32xf32>
      %39 = math.exp %38 : vector<6x32xf32>
      %cst_38 = arith.constant 1.000000e+00 : f32
      %40 = vector.broadcast %cst_38 : f32 to vector<6x32xf32>
      %41 = arith.addf %40, %39 : vector<6x32xf32>
      %42 = arith.divf %40, %41 : vector<6x32xf32>
      %43 = vector.extract_strided_slice %23 {offsets = [0, 64], sizes = [6, 32], strides = [1, 1]} : vector<6x96xf32> to vector<6x32xf32>
      %44 = vector.extract_strided_slice %26 {offsets = [0, 64], sizes = [6, 32], strides = [1, 1]} : vector<6x96xf32> to vector<6x32xf32>
      %45 = arith.mulf %34, %44 : vector<6x32xf32>
      %46 = arith.addf %43, %45 : vector<6x32xf32>
      %47 = math.tanh %46 : vector<6x32xf32>
      %cst_39 = arith.constant 1.000000e+00 : f32
      %48 = vector.broadcast %cst_39 : f32 to vector<6x32xf32>
      %49 = arith.subf %48, %42 : vector<6x32xf32>
      %50 = arith.mulf %49, %47 : vector<6x32xf32>
      %51 = arith.mulf %42, %arg15 : vector<6x32xf32>
      %52 = arith.addf %50, %51 : vector<6x32xf32>
      %53 = vector.broadcast %arg14 : i32 to vector<6x1xi32>
      %54 = arith.cmpi slt, %53, %0 : vector<6x1xi32>
      %55 = arith.extui %54 : vector<6x1xi1> to vector<6x1xi32>
      %56 = arith.sitofp %55 : vector<6x1xi32> to vector<6x1xf32>
      %57 = vector.broadcast %56 : vector<6x1xf32> to vector<6x32xf32>
      %58 = arith.mulf %57, %52 : vector<6x32xf32>
      %cst_40 = arith.constant 1.000000e+00 : f32
      %59 = vector.broadcast %cst_40 : f32 to vector<6x1xf32>
      %60 = arith.subf %59, %56 : vector<6x1xf32>
      %61 = vector.broadcast %60 : vector<6x1xf32> to vector<6x32xf32>
      %62 = arith.mulf %61, %arg15 : vector<6x32xf32>
      %63 = arith.addf %58, %62 : vector<6x32xf32>
      %64 = vector.broadcast %56 : vector<6x1xf32> to vector<6x32xf32>
      %65 = arith.mulf %64, %63 : vector<6x32xf32>
      %66 = arith.index_cast %arg14 : i32 to index
      %c0_41 = arith.constant 0 : index
      %c0_42 = arith.constant 0 : index
      %67 = vector.load %arg12[%66, %c0_41, %c0_42] : memref<8x6x32xf32, #tpu.memory_space<vmem>>, vector<1x6x32xf32>
      %68 = vector.shape_cast %67 : vector<1x6x32xf32> to vector<6x32xf32>
      %69 = vector.shape_cast %65 : vector<6x32xf32> to vector<1x6x32xf32>
      tpu.vector_store %arg12[%66, %c0_41, %c0_42], %69 {strides = array<i32>} : memref<8x6x32xf32, #tpu.memory_space<vmem>>, vector<1x6x32xf32>,
      scf.yield %63 : vector<6x32xf32>
    }
    %c8_i32_17 = arith.constant 8 : i32
    %c0_i32_18 = arith.constant 0 : i32
    %c8_i32_19 = arith.constant 8 : i32
    %12 = arith.addi %c0_i32_18, %c8_i32_19 : i32
    %c1_i32_20 = arith.constant 1 : i32
    %13 = scf.for %arg14 = %c0_i32_18 to %12 step %c1_i32_20 iter_args(%arg15 = %9) -> (vector<6x32xf32>)  : i32 {
      %c7_i32 = arith.constant 7 : i32
      %18 = arith.subi %c7_i32, %arg14 : i32
      %19 = arith.index_cast %18 : i32 to index
      %c0_33 = arith.constant 0 : index
      %c0_34 = arith.constant 0 : index
      %20 = vector.load %arg1[%19, %c0_33, %c0_34] : memref<8x6x32xf32, #tpu.memory_space<vmem>>, vector<1x6x32xf32>
      %21 = vector.shape_cast %20 : vector<1x6x32xf32> to vector<6x32xf32>
      %cst_35 = arith.constant dense<0.000000e+00> : vector<6x96xf32>
      %22 = tpu.matmul %21, %5, %cst_35 {dimension_numbers = #tpu.dot_dimension_numbers<[1], [0], [0], [1], [0, 0, 1, 1], [], []>} : vector<6x32xf32>, vector<32x96xf32>, vector<6x96xf32> -> vector<6x96xf32>
      %23 = vector.broadcast %7 : vector<1x96xf32> to vector<6x96xf32>
      %24 = arith.addf %22, %23 : vector<6x96xf32>
      %cst_36 = arith.constant dense<0.000000e+00> : vector<6x96xf32>
      %25 = tpu.matmul %arg15, %6, %cst_36 {dimension_numbers = #tpu.dot_dimension_numbers<[1], [0], [0], [1], [0, 0, 1, 1], [], []>} : vector<6x32xf32>, vector<32x96xf32>, vector<6x96xf32> -> vector<6x96xf32>
      %26 = vector.broadcast %8 : vector<1x96xf32> to vector<6x96xf32>
      %27 = arith.addf %25, %26 : vector<6x96xf32>
      %28 = vector.extract_strided_slice %24 {offsets = [0, 0], sizes = [6, 32], strides = [1, 1]} : vector<6x96xf32> to vector<6x32xf32>
      %29 = vector.extract_strided_slice %27 {offsets = [0, 0], sizes = [6, 32], strides = [1, 1]} : vector<6x96xf32> to vector<6x32xf32>
      %30 = arith.addf %28, %29 : vector<6x32xf32>
      %31 = arith.negf %30 : vector<6x32xf32>
      %32 = math.exp %31 : vector<6x32xf32>
      %cst_37 = arith.constant 1.000000e+00 : f32
      %33 = vector.broadcast %cst_37 : f32 to vector<6x32xf32>
      %34 = arith.addf %33, %32 : vector<6x32xf32>
      %35 = arith.divf %33, %34 : vector<6x32xf32>
      %36 = vector.extract_strided_slice %24 {offsets = [0, 32], sizes = [6, 32], strides = [1, 1]} : vector<6x96xf32> to vector<6x32xf32>
      %37 = vector.extract_strided_slice %27 {offsets = [0, 32], sizes = [6, 32], strides = [1, 1]} : vector<6x96xf32> to vector<6x32xf32>
      %38 = arith.addf %36, %37 : vector<6x32xf32>
      %39 = arith.negf %38 : vector<6x32xf32>
      %40 = math.exp %39 : vector<6x32xf32>
      %cst_38 = arith.constant 1.000000e+00 : f32
      %41 = vector.broadcast %cst_38 : f32 to vector<6x32xf32>
      %42 = arith.addf %41, %40 : vector<6x32xf32>
      %43 = arith.divf %41, %42 : vector<6x32xf32>
      %44 = vector.extract_strided_slice %24 {offsets = [0, 64], sizes = [6, 32], strides = [1, 1]} : vector<6x96xf32> to vector<6x32xf32>
      %45 = vector.extract_strided_slice %27 {offsets = [0, 64], sizes = [6, 32], strides = [1, 1]} : vector<6x96xf32> to vector<6x32xf32>
      %46 = arith.mulf %35, %45 : vector<6x32xf32>
      %47 = arith.addf %44, %46 : vector<6x32xf32>
      %48 = math.tanh %47 : vector<6x32xf32>
      %cst_39 = arith.constant 1.000000e+00 : f32
      %49 = vector.broadcast %cst_39 : f32 to vector<6x32xf32>
      %50 = arith.subf %49, %43 : vector<6x32xf32>
      %51 = arith.mulf %50, %48 : vector<6x32xf32>
      %52 = arith.mulf %43, %arg15 : vector<6x32xf32>
      %53 = arith.addf %51, %52 : vector<6x32xf32>
      %54 = vector.broadcast %18 : i32 to vector<6x1xi32>
      %55 = arith.cmpi slt, %54, %0 : vector<6x1xi32>
      %56 = arith.extui %55 : vector<6x1xi1> to vector<6x1xi32>
      %57 = arith.sitofp %56 : vector<6x1xi32> to vector<6x1xf32>
      %58 = vector.broadcast %57 : vector<6x1xf32> to vector<6x32xf32>
      %59 = arith.mulf %58, %53 : vector<6x32xf32>
      %cst_40 = arith.constant 1.000000e+00 : f32
      %60 = vector.broadcast %cst_40 : f32 to vector<6x1xf32>
      %61 = arith.subf %60, %57 : vector<6x1xf32>
      %62 = vector.broadcast %61 : vector<6x1xf32> to vector<6x32xf32>
      %63 = arith.mulf %62, %arg15 : vector<6x32xf32>
      %64 = arith.addf %59, %63 : vector<6x32xf32>
      %65 = vector.broadcast %57 : vector<6x1xf32> to vector<6x32xf32>
      %66 = arith.mulf %65, %64 : vector<6x32xf32>
      %67 = arith.index_cast %18 : i32 to index
      %c0_41 = arith.constant 0 : index
      %c0_42 = arith.constant 0 : index
      %68 = vector.load %arg13[%67, %c0_41, %c0_42] : memref<8x6x32xf32, #tpu.memory_space<vmem>>, vector<1x6x32xf32>
      %69 = vector.shape_cast %68 : vector<1x6x32xf32> to vector<6x32xf32>
      %70 = vector.shape_cast %66 : vector<6x32xf32> to vector<1x6x32xf32>
      tpu.vector_store %arg13[%67, %c0_41, %c0_42], %70 {strides = array<i32>} : memref<8x6x32xf32, #tpu.memory_space<vmem>>, vector<1x6x32xf32>,
      scf.yield %64 : vector<6x32xf32>
    }
    %c8_i32_21 = arith.constant 8 : i32
    %c0_22 = arith.constant 0 : index
    %c0_23 = arith.constant 0 : index
    %c0_24 = arith.constant 0 : index
    %14 = vector.load %arg12[%c0_22, %c0_23, %c0_24] : memref<8x6x32xf32, #tpu.memory_space<vmem>>, vector<8x6x32xf32>
    %c0_25 = arith.constant 0 : index
    %c0_26 = arith.constant 0 : index
    %c0_27 = arith.constant 0 : index
    %15 = vector.load %arg11[%c0_25, %c0_26, %c0_27] : memref<8x6x64xf32, #tpu.memory_space<vmem>>, vector<8x6x32xf32>
    tpu.vector_store %arg11[%c0_25, %c0_26, %c0_27], %14 {strides = array<i32>} : memref<8x6x64xf32, #tpu.memory_space<vmem>>, vector<8x6x32xf32>,
    %c0_28 = arith.constant 0 : index
    %c0_29 = arith.constant 0 : index
    %c0_30 = arith.constant 0 : index
    %16 = vector.load %arg13[%c0_28, %c0_29, %c0_30] : memref<8x6x32xf32, #tpu.memory_space<vmem>>, vector<8x6x32xf32>
    %c0_31 = arith.constant 0 : index
    %c0_32 = arith.constant 0 : index
    %c32 = arith.constant 32 : index
    %17 = vector.load %arg11[%c0_31, %c0_32, %c32] : memref<8x6x64xf32, #tpu.memory_space<vmem>>, vector<8x6x32xf32>
    tpu.vector_store %arg11[%c0_31, %c0_32, %c32], %16 {strides = array<i32>} : memref<8x6x64xf32, #tpu.memory_space<vmem>>, vector<8x6x32xf32>,
    return
  }
  func.func @transform_0(%arg0: i32) -> (i32, i32, i32) {
    %c0_i32 = arith.constant 0 : i32
    %c0_i32_0 = arith.constant 0 : i32
    %c0_i32_1 = arith.constant 0 : i32
    %c0_i32_2 = arith.constant 0 : i32
    return %c0_i32, %c0_i32_0, %c0_i32_1 : i32, i32, i32
  }
  func.func @transform_1(%arg0: i32) -> (i32, i32) {
    %c0_i32 = arith.constant 0 : i32
    %c0_i32_0 = arith.constant 0 : i32
    %c0_i32_1 = arith.constant 0 : i32
    return %c0_i32, %c0_i32_0 : i32, i32
  }
  func.func @transform_2(%arg0: i32) -> (i32, i32) {
    %c0_i32 = arith.constant 0 : i32
    %c0_i32_0 = arith.constant 0 : i32
    %c0_i32_1 = arith.constant 0 : i32
    return %c0_i32, %c0_i32_0 : i32, i32
  }
  func.func @transform_3(%arg0: i32) -> (i32, i32) {
    %c0_i32 = arith.constant 0 : i32
    %c0_i32_0 = arith.constant 0 : i32
    %c0_i32_1 = arith.constant 0 : i32
    return %c0_i32, %c0_i32_0 : i32, i32
  }
  func.func @transform_4(%arg0: i32) -> (i32, i32) {
    %c0_i32 = arith.constant 0 : i32
    %c0_i32_0 = arith.constant 0 : i32
    %c0_i32_1 = arith.constant 0 : i32
    return %c0_i32, %c0_i32_0 : i32, i32
  }
  func.func @transform_5(%arg0: i32) -> (i32, i32) {
    %c0_i32 = arith.constant 0 : i32
    %c0_i32_0 = arith.constant 0 : i32
    %c0_i32_1 = arith.constant 0 : i32
    return %c0_i32, %c0_i32_0 : i32, i32
  }
  func.func @transform_6(%arg0: i32) -> (i32, i32) {
    %c0_i32 = arith.constant 0 : i32
    %c0_i32_0 = arith.constant 0 : i32
    %c0_i32_1 = arith.constant 0 : i32
    return %c0_i32, %c0_i32_0 : i32, i32
  }
  func.func @transform_7(%arg0: i32) -> (i32, i32) {
    %c0_i32 = arith.constant 0 : i32
    %c0_i32_0 = arith.constant 0 : i32
    %c0_i32_1 = arith.constant 0 : i32
    return %c0_i32, %c0_i32_0 : i32, i32
  }
  func.func @transform_8(%arg0: i32) -> (i32, i32) {
    %c0_i32 = arith.constant 0 : i32
    %c0_i32_0 = arith.constant 0 : i32
    %c0_i32_1 = arith.constant 0 : i32
    return %c0_i32, %c0_i32_0 : i32, i32
  }
  func.func @transform_9(%arg0: i32) -> (i32, i32) {
    %c0_i32 = arith.constant 0 : i32
    %c0_i32_0 = arith.constant 0 : i32
    %c0_i32_1 = arith.constant 0 : i32
    return %c0_i32, %c0_i32_0 : i32, i32
  }
  func.func @transform_10(%arg0: i32) -> (i32, i32, i32) {
    %c0_i32 = arith.constant 0 : i32
    %c0_i32_0 = arith.constant 0 : i32
    %c0_i32_1 = arith.constant 0 : i32
    %c0_i32_2 = arith.constant 0 : i32
    return %c0_i32, %c0_i32_0, %c0_i32_1 : i32, i32, i32
  }
}

module attributes {stable_mosaic.version = 11 : i64} {
  func.func @_attention_kernel(%arg0: i32, %arg1: memref<48x64xf32, #tpu.memory_space<vmem>>, %arg2: memref<6x1xi32, #tpu.memory_space<vmem>>, %arg3: memref<48x6xf32, #tpu.memory_space<vmem>>, %arg4: memref<6x48xf32, #tpu.memory_space<vmem>>, %arg5: memref<48x1xf32, #tpu.memory_space<vmem>>, %arg6: memref<64x64xf32, #tpu.memory_space<vmem>>, %arg7: memref<1x64xf32, #tpu.memory_space<vmem>>, %arg8: memref<64x1xf32, #tpu.memory_space<vmem>>, %arg9: memref<1x1xf32, #tpu.memory_space<vmem>>, %arg10: memref<6x64xf32, #tpu.memory_space<vmem>>) attributes {dimension_semantics = [#tpu.dimension_semantics<arbitrary>], iteration_bounds = array<i64: 1>, scalar_prefetch = 0 : i64, scratch_operands = 0 : i64, tpu.core_type = #tpu.core_type<tc>, window_params = [{pipeline_mode = #tpu.pipeline_mode<synchronous>, transform_indices = @transform_0, window_bounds = array<i64: 48, 64>}, {pipeline_mode = #tpu.pipeline_mode<synchronous>, transform_indices = @transform_1, window_bounds = array<i64: 6, 1>}, {pipeline_mode = #tpu.pipeline_mode<synchronous>, transform_indices = @transform_2, window_bounds = array<i64: 48, 6>}, {pipeline_mode = #tpu.pipeline_mode<synchronous>, transform_indices = @transform_3, window_bounds = array<i64: 6, 48>}, {pipeline_mode = #tpu.pipeline_mode<synchronous>, transform_indices = @transform_4, window_bounds = array<i64: 48, 1>}, {pipeline_mode = #tpu.pipeline_mode<synchronous>, transform_indices = @transform_5, window_bounds = array<i64: 64, 64>}, {pipeline_mode = #tpu.pipeline_mode<synchronous>, transform_indices = @transform_6, window_bounds = array<i64: 1, 64>}, {pipeline_mode = #tpu.pipeline_mode<synchronous>, transform_indices = @transform_7, window_bounds = array<i64: 64, 1>}, {pipeline_mode = #tpu.pipeline_mode<synchronous>, transform_indices = @transform_8, window_bounds = array<i64: 1, 1>}, {pipeline_mode = #tpu.pipeline_mode<synchronous>, transform_indices = @transform_9, window_bounds = array<i64: 6, 64>}]} {
    %c0 = arith.constant 0 : index
    %c0_0 = arith.constant 0 : index
    %0 = vector.load %arg1[%c0, %c0_0] : memref<48x64xf32, #tpu.memory_space<vmem>>, vector<48x64xf32>
    %c0_1 = arith.constant 0 : index
    %c0_2 = arith.constant 0 : index
    %1 = vector.load %arg6[%c0_1, %c0_2] : memref<64x64xf32, #tpu.memory_space<vmem>>, vector<64x64xf32>
    %cst = arith.constant dense<0.000000e+00> : vector<48x64xf32>
    %2 = tpu.matmul %0, %1, %cst {dimension_numbers = #tpu.dot_dimension_numbers<[1], [0], [0], [1], [0, 0, 1, 1], [], []>} : vector<48x64xf32>, vector<64x64xf32>, vector<48x64xf32> -> vector<48x64xf32>
    %c0_3 = arith.constant 0 : index
    %c0_4 = arith.constant 0 : index
    %3 = vector.load %arg7[%c0_3, %c0_4] : memref<1x64xf32, #tpu.memory_space<vmem>>, vector<1x64xf32>
    %4 = vector.broadcast %3 : vector<1x64xf32> to vector<48x64xf32>
    %5 = arith.addf %2, %4 : vector<48x64xf32>
    %6 = math.tanh %5 : vector<48x64xf32>
    %c0_5 = arith.constant 0 : index
    %c0_6 = arith.constant 0 : index
    %7 = vector.load %arg8[%c0_5, %c0_6] : memref<64x1xf32, #tpu.memory_space<vmem>>, vector<64x1xf32>
    %cst_7 = arith.constant dense<0.000000e+00> : vector<48x1xf32>
    %8 = tpu.matmul %6, %7, %cst_7 {dimension_numbers = #tpu.dot_dimension_numbers<[1], [0], [0], [1], [0, 0, 1, 1], [], []>} : vector<48x64xf32>, vector<64x1xf32>, vector<48x1xf32> -> vector<48x1xf32>
    %c0_8 = arith.constant 0 : index
    %c0_9 = arith.constant 0 : index
    %9 = vector.load %arg9[%c0_8, %c0_9] : memref<1x1xf32, #tpu.memory_space<vmem>>, vector<1x1xf32>
    %10 = vector.broadcast %9 : vector<1x1xf32> to vector<48x1xf32>
    %11 = arith.addf %8, %10 : vector<48x1xf32>
    %c0_10 = arith.constant 0 : index
    %c0_11 = arith.constant 0 : index
    %12 = vector.load %arg3[%c0_10, %c0_11] : memref<48x6xf32, #tpu.memory_space<vmem>>, vector<48x6xf32>
    %c0_12 = arith.constant 0 : index
    %c0_13 = arith.constant 0 : index
    %13 = vector.load %arg4[%c0_12, %c0_13] : memref<6x48xf32, #tpu.memory_space<vmem>>, vector<6x48xf32>
    %c0_14 = arith.constant 0 : index
    %c0_15 = arith.constant 0 : index
    %14 = vector.load %arg2[%c0_14, %c0_15] : memref<6x1xi32, #tpu.memory_space<vmem>>, vector<6x1xi32>
    %15 = arith.sitofp %14 : vector<6x1xi32> to vector<6x1xf32>
    %cst_16 = arith.constant dense<0.000000e+00> : vector<48x1xf32>
    %16 = tpu.matmul %12, %15, %cst_16 {dimension_numbers = #tpu.dot_dimension_numbers<[1], [0], [0], [1], [0, 0, 1, 1], [], []>} : vector<48x6xf32>, vector<6x1xf32>, vector<48x1xf32> -> vector<48x1xf32>
    %c0_17 = arith.constant 0 : index
    %c0_18 = arith.constant 0 : index
    %17 = vector.load %arg5[%c0_17, %c0_18] : memref<48x1xf32, #tpu.memory_space<vmem>>, vector<48x1xf32>
    %18 = arith.cmpf olt, %17, %16 : vector<48x1xf32>
    %19 = arith.extui %18 : vector<48x1xi1> to vector<48x1xi32>
    %20 = arith.sitofp %19 : vector<48x1xi32> to vector<48x1xf32>
    %21 = math.exp %11 : vector<48x1xf32>
    %22 = arith.mulf %21, %20 : vector<48x1xf32>
    %cst_19 = arith.constant dense<0.000000e+00> : vector<6x1xf32>
    %23 = tpu.matmul %13, %22, %cst_19 {dimension_numbers = #tpu.dot_dimension_numbers<[1], [0], [0], [1], [0, 0, 1, 1], [], []>} : vector<6x48xf32>, vector<48x1xf32>, vector<6x1xf32> -> vector<6x1xf32>
    %cst_20 = arith.constant 1.000000e+00 : f32
    %24 = vector.broadcast %cst_20 : f32 to vector<6x1xf32>
    %25 = arith.divf %24, %23 : vector<6x1xf32>
    %cst_21 = arith.constant dense<0.000000e+00> : vector<48x1xf32>
    %26 = tpu.matmul %12, %25, %cst_21 {dimension_numbers = #tpu.dot_dimension_numbers<[1], [0], [0], [1], [0, 0, 1, 1], [], []>} : vector<48x6xf32>, vector<6x1xf32>, vector<48x1xf32> -> vector<48x1xf32>
    %27 = arith.mulf %22, %26 : vector<48x1xf32>
    %28 = vector.broadcast %27 : vector<48x1xf32> to vector<48x64xf32>
    %29 = arith.mulf %28, %0 : vector<48x64xf32>
    %cst_22 = arith.constant dense<0.000000e+00> : vector<6x64xf32>
    %30 = tpu.matmul %13, %29, %cst_22 {dimension_numbers = #tpu.dot_dimension_numbers<[1], [0], [0], [1], [0, 0, 1, 1], [], []>} : vector<6x48xf32>, vector<48x64xf32>, vector<6x64xf32> -> vector<6x64xf32>
    %c0_23 = arith.constant 0 : index
    %c0_24 = arith.constant 0 : index
    %31 = vector.load %arg10[%c0_23, %c0_24] : memref<6x64xf32, #tpu.memory_space<vmem>>, vector<6x64xf32>
    tpu.vector_store %arg10[%c0_23, %c0_24], %30 {strides = array<i32>} : memref<6x64xf32, #tpu.memory_space<vmem>>, vector<6x64xf32>,
    return
  }
  func.func @transform_0(%arg0: i32) -> (i32, i32) {
    %c0_i32 = arith.constant 0 : i32
    %c0_i32_0 = arith.constant 0 : i32
    %c0_i32_1 = arith.constant 0 : i32
    return %c0_i32, %c0_i32_0 : i32, i32
  }
  func.func @transform_1(%arg0: i32) -> (i32, i32) {
    %c0_i32 = arith.constant 0 : i32
    %c0_i32_0 = arith.constant 0 : i32
    %c0_i32_1 = arith.constant 0 : i32
    return %c0_i32, %c0_i32_0 : i32, i32
  }
  func.func @transform_2(%arg0: i32) -> (i32, i32) {
    %c0_i32 = arith.constant 0 : i32
    %c0_i32_0 = arith.constant 0 : i32
    %c0_i32_1 = arith.constant 0 : i32
    return %c0_i32, %c0_i32_0 : i32, i32
  }
  func.func @transform_3(%arg0: i32) -> (i32, i32) {
    %c0_i32 = arith.constant 0 : i32
    %c0_i32_0 = arith.constant 0 : i32
    %c0_i32_1 = arith.constant 0 : i32
    return %c0_i32, %c0_i32_0 : i32, i32
  }
  func.func @transform_4(%arg0: i32) -> (i32, i32) {
    %c0_i32 = arith.constant 0 : i32
    %c0_i32_0 = arith.constant 0 : i32
    %c0_i32_1 = arith.constant 0 : i32
    return %c0_i32, %c0_i32_0 : i32, i32
  }
  func.func @transform_5(%arg0: i32) -> (i32, i32) {
    %c0_i32 = arith.constant 0 : i32
    %c0_i32_0 = arith.constant 0 : i32
    %c0_i32_1 = arith.constant 0 : i32
    return %c0_i32, %c0_i32_0 : i32, i32
  }
  func.func @transform_6(%arg0: i32) -> (i32, i32) {
    %c0_i32 = arith.constant 0 : i32
    %c0_i32_0 = arith.constant 0 : i32
    %c0_i32_1 = arith.constant 0 : i32
    return %c0_i32, %c0_i32_0 : i32, i32
  }
  func.func @transform_7(%arg0: i32) -> (i32, i32) {
    %c0_i32 = arith.constant 0 : i32
    %c0_i32_0 = arith.constant 0 : i32
    %c0_i32_1 = arith.constant 0 : i32
    return %c0_i32, %c0_i32_0 : i32, i32
  }
  func.func @transform_8(%arg0: i32) -> (i32, i32) {
    %c0_i32 = arith.constant 0 : i32
    %c0_i32_0 = arith.constant 0 : i32
    %c0_i32_1 = arith.constant 0 : i32
    return %c0_i32, %c0_i32_0 : i32, i32
  }
  func.func @transform_9(%arg0: i32) -> (i32, i32) {
    %c0_i32 = arith.constant 0 : i32
    %c0_i32_0 = arith.constant 0 : i32
    %c0_i32_1 = arith.constant 0 : i32
    return %c0_i32, %c0_i32_0 : i32, i32
  }
}

module attributes {stable_mosaic.version = 11 : i64} {
  func.func @_onehot_gather_kernel(%arg0: i32, %arg1: memref<8x1xi32, #tpu.memory_space<vmem>>, %arg2: memref<6x64xf32, #tpu.memory_space<vmem>>, %arg3: memref<8x64xf32, #tpu.memory_space<vmem>>) attributes {dimension_semantics = [#tpu.dimension_semantics<arbitrary>], iteration_bounds = array<i64: 1>, scalar_prefetch = 0 : i64, scratch_operands = 0 : i64, tpu.core_type = #tpu.core_type<tc>, window_params = [{pipeline_mode = #tpu.pipeline_mode<synchronous>, transform_indices = @transform_0, window_bounds = array<i64: 8, 1>}, {pipeline_mode = #tpu.pipeline_mode<synchronous>, transform_indices = @transform_1, window_bounds = array<i64: 6, 64>}, {pipeline_mode = #tpu.pipeline_mode<synchronous>, transform_indices = @transform_2, window_bounds = array<i64: 8, 64>}]} {
    %c0 = arith.constant 0 : index
    %c0_0 = arith.constant 0 : index
    %0 = vector.load %arg1[%c0, %c0_0] : memref<8x1xi32, #tpu.memory_space<vmem>>, vector<8x1xi32>
    %1 = tpu.iota {dimensions = array<i32: 1>} : vector<8x6xi32>
    %c1_i32 = arith.constant 1 : i32
    %2 = vector.broadcast %c1_i32 : i32 to vector<8x1xi32>
    %3 = arith.subi %0, %2 : vector<8x1xi32>
    %4 = vector.broadcast %3 : vector<8x1xi32> to vector<8x6xi32>
    %5 = arith.cmpi eq, %1, %4 : vector<8x6xi32>
    %c0_i32 = arith.constant 0 : i32
    %6 = vector.broadcast %c0_i32 : i32 to vector<8x1xi32>
    %7 = arith.cmpi sgt, %0, %6 : vector<8x1xi32>
    %8 = vector.broadcast %7 : vector<8x1xi1> to vector<8x6xi1>
    %9 = arith.andi %5, %8 : vector<8x6xi1>
    %10 = arith.extui %9 : vector<8x6xi1> to vector<8x6xi32>
    %11 = arith.sitofp %10 : vector<8x6xi32> to vector<8x6xf32>
    %c0_1 = arith.constant 0 : index
    %c0_2 = arith.constant 0 : index
    %12 = vector.load %arg2[%c0_1, %c0_2] : memref<6x64xf32, #tpu.memory_space<vmem>>, vector<6x64xf32>
    %cst = arith.constant dense<0.000000e+00> : vector<8x64xf32>
    %13 = tpu.matmul %11, %12, %cst {dimension_numbers = #tpu.dot_dimension_numbers<[1], [0], [0], [1], [0, 0, 1, 1], [], []>} : vector<8x6xf32>, vector<6x64xf32>, vector<8x64xf32> -> vector<8x64xf32>
    %c0_3 = arith.constant 0 : index
    %c0_4 = arith.constant 0 : index
    %14 = vector.load %arg3[%c0_3, %c0_4] : memref<8x64xf32, #tpu.memory_space<vmem>>, vector<8x64xf32>
    tpu.vector_store %arg3[%c0_3, %c0_4], %13 {strides = array<i32>} : memref<8x64xf32, #tpu.memory_space<vmem>>, vector<8x64xf32>,
    return
  }
  func.func @transform_0(%arg0: i32) -> (i32, i32) {
    %c0_i32 = arith.constant 0 : i32
    %c0_i32_0 = arith.constant 0 : i32
    %c0_i32_1 = arith.constant 0 : i32
    return %c0_i32, %c0_i32_0 : i32, i32
  }
  func.func @transform_1(%arg0: i32) -> (i32, i32) {
    %c0_i32 = arith.constant 0 : i32
    %c0_i32_0 = arith.constant 0 : i32
    %c0_i32_1 = arith.constant 0 : i32
    return %c0_i32, %c0_i32_0 : i32, i32
  }
  func.func @transform_2(%arg0: i32) -> (i32, i32) {
    %c0_i32 = arith.constant 0 : i32
    %c0_i32_0 = arith.constant 0 : i32
    %c0_i32_1 = arith.constant 0 : i32
    return %c0_i32, %c0_i32_0 : i32, i32
  }
}

module attributes {stable_mosaic.version = 11 : i64} {
  func.func @_bigru_kernel(%arg0: i32, %arg1: memref<4x2x64xf32, #tpu.memory_space<vmem>>, %arg2: memref<2x1xi32, #tpu.memory_space<vmem>>, %arg3: memref<64x96xf32, #tpu.memory_space<vmem>>, %arg4: memref<32x96xf32, #tpu.memory_space<vmem>>, %arg5: memref<1x96xf32, #tpu.memory_space<vmem>>, %arg6: memref<1x96xf32, #tpu.memory_space<vmem>>, %arg7: memref<64x96xf32, #tpu.memory_space<vmem>>, %arg8: memref<32x96xf32, #tpu.memory_space<vmem>>, %arg9: memref<1x96xf32, #tpu.memory_space<vmem>>, %arg10: memref<1x96xf32, #tpu.memory_space<vmem>>, %arg11: memref<4x2x64xf32, #tpu.memory_space<vmem>>, %arg12: memref<4x2x32xf32, #tpu.memory_space<vmem>>, %arg13: memref<4x2x32xf32, #tpu.memory_space<vmem>>) attributes {dimension_semantics = [#tpu.dimension_semantics<arbitrary>], iteration_bounds = array<i64: 1>, scalar_prefetch = 0 : i64, scratch_operands = 2 : i64, tpu.core_type = #tpu.core_type<tc>, window_params = [{pipeline_mode = #tpu.pipeline_mode<synchronous>, transform_indices = @transform_0, window_bounds = array<i64: 4, 2, 64>}, {pipeline_mode = #tpu.pipeline_mode<synchronous>, transform_indices = @transform_1, window_bounds = array<i64: 2, 1>}, {pipeline_mode = #tpu.pipeline_mode<synchronous>, transform_indices = @transform_2, window_bounds = array<i64: 64, 96>}, {pipeline_mode = #tpu.pipeline_mode<synchronous>, transform_indices = @transform_3, window_bounds = array<i64: 32, 96>}, {pipeline_mode = #tpu.pipeline_mode<synchronous>, transform_indices = @transform_4, window_bounds = array<i64: 1, 96>}, {pipeline_mode = #tpu.pipeline_mode<synchronous>, transform_indices = @transform_5, window_bounds = array<i64: 1, 96>}, {pipeline_mode = #tpu.pipeline_mode<synchronous>, transform_indices = @transform_6, window_bounds = array<i64: 64, 96>}, {pipeline_mode = #tpu.pipeline_mode<synchronous>, transform_indices = @transform_7, window_bounds = array<i64: 32, 96>}, {pipeline_mode = #tpu.pipeline_mode<synchronous>, transform_indices = @transform_8, window_bounds = array<i64: 1, 96>}, {pipeline_mode = #tpu.pipeline_mode<synchronous>, transform_indices = @transform_9, window_bounds = array<i64: 1, 96>}, {pipeline_mode = #tpu.pipeline_mode<synchronous>, transform_indices = @transform_10, window_bounds = array<i64: 4, 2, 64>}]} {
    %c0 = arith.constant 0 : index
    %c0_0 = arith.constant 0 : index
    %0 = vector.load %arg2[%c0, %c0_0] : memref<2x1xi32, #tpu.memory_space<vmem>>, vector<2x1xi32>
    %c0_1 = arith.constant 0 : index
    %c0_2 = arith.constant 0 : index
    %1 = vector.load %arg3[%c0_1, %c0_2] : memref<64x96xf32, #tpu.memory_space<vmem>>, vector<64x96xf32>
    %c0_3 = arith.constant 0 : index
    %c0_4 = arith.constant 0 : index
    %2 = vector.load %arg4[%c0_3, %c0_4] : memref<32x96xf32, #tpu.memory_space<vmem>>, vector<32x96xf32>
    %c0_5 = arith.constant 0 : index
    %c0_6 = arith.constant 0 : index
    %3 = vector.load %arg5[%c0_5, %c0_6] : memref<1x96xf32, #tpu.memory_space<vmem>>, vector<1x96xf32>
    %c0_7 = arith.constant 0 : index
    %c0_8 = arith.constant 0 : index
    %4 = vector.load %arg6[%c0_7, %c0_8] : memref<1x96xf32, #tpu.memory_space<vmem>>, vector<1x96xf32>
    %c0_9 = arith.constant 0 : index
    %c0_10 = arith.constant 0 : index
    %5 = vector.load %arg7[%c0_9, %c0_10] : memref<64x96xf32, #tpu.memory_space<vmem>>, vector<64x96xf32>
    %c0_11 = arith.constant 0 : index
    %c0_12 = arith.constant 0 : index
    %6 = vector.load %arg8[%c0_11, %c0_12] : memref<32x96xf32, #tpu.memory_space<vmem>>, vector<32x96xf32>
    %c0_13 = arith.constant 0 : index
    %c0_14 = arith.constant 0 : index
    %7 = vector.load %arg9[%c0_13, %c0_14] : memref<1x96xf32, #tpu.memory_space<vmem>>, vector<1x96xf32>
    %c0_15 = arith.constant 0 : index
    %c0_16 = arith.constant 0 : index
    %8 = vector.load %arg10[%c0_15, %c0_16] : memref<1x96xf32, #tpu.memory_space<vmem>>, vector<1x96xf32>
    %cst = arith.constant 0.000000e+00 : f32
    %9 = vector.broadcast %cst : f32 to vector<2x32xf32>
    %c0_i32 = arith.constant 0 : i32
    %c4_i32 = arith.constant 4 : i32
    %10 = arith.addi %c0_i32, %c4_i32 : i32
    %c1_i32 = arith.constant 1 : i32
    %11 = scf.for %arg14 = %c0_i32 to %10 step %c1_i32 iter_args(%arg15 = %9) -> (vector<2x32xf32>)  : i32 {
      %18 = arith.index_cast %arg14 : i32 to index
      %c0_33 = arith.constant 0 : index
      %c0_34 = arith.constant 0 : index
      %19 = vector.load %arg1[%18, %c0_33, %c0_34] : memref<4x2x64xf32, #tpu.memory_space<vmem>>, vector<1x2x64xf32>
      %20 = vector.shape_cast %19 : vector<1x2x64xf32> to vector<2x64xf32>
      %cst_35 = arith.constant dense<0.000000e+00> : vector<2x96xf32>
      %21 = tpu.matmul %20, %1, %cst_35 {dimension_numbers = #tpu.dot_dimension_numbers<[1], [0], [0], [1], [0, 0, 1, 1], [], []>} : vector<2x64xf32>, vector<64x96xf32>, vector<2x96xf32> -> vector<2x96xf32>
      %22 = vector.broadcast %3 : vector<1x96xf32> to vector<2x96xf32>
      %23 = arith.addf %21, %22 : vector<2x96xf32>
      %cst_36 = arith.constant dense<0.000000e+00> : vector<2x96xf32>
      %24 = tpu.matmul %arg15, %2, %cst_36 {dimension_numbers = #tpu.dot_dimension_numbers<[1], [0], [0], [1], [0, 0, 1, 1], [], []>} : vector<2x32xf32>, vector<32x96xf32>, vector<2x96xf32> -> vector<2x96xf32>
      %25 = vector.broadcast %4 : vector<1x96xf32> to vector<2x96xf32>
      %26 = arith.addf %24, %25 : vector<2x96xf32>
      %27 = vector.extract_strided_slice %23 {offsets = [0, 0], sizes = [2, 32], strides = [1, 1]} : vector<2x96xf32> to vector<2x32xf32>
      %28 = vector.extract_strided_slice %26 {offsets = [0, 0], sizes = [2, 32], strides = [1, 1]} : vector<2x96xf32> to vector<2x32xf32>
      %29 = arith.addf %27, %28 : vector<2x32xf32>
      %30 = arith.negf %29 : vector<2x32xf32>
      %31 = math.exp %30 : vector<2x32xf32>
      %cst_37 = arith.constant 1.000000e+00 : f32
      %32 = vector.broadcast %cst_37 : f32 to vector<2x32xf32>
      %33 = arith.addf %32, %31 : vector<2x32xf32>
      %34 = arith.divf %32, %33 : vector<2x32xf32>
      %35 = vector.extract_strided_slice %23 {offsets = [0, 32], sizes = [2, 32], strides = [1, 1]} : vector<2x96xf32> to vector<2x32xf32>
      %36 = vector.extract_strided_slice %26 {offsets = [0, 32], sizes = [2, 32], strides = [1, 1]} : vector<2x96xf32> to vector<2x32xf32>
      %37 = arith.addf %35, %36 : vector<2x32xf32>
      %38 = arith.negf %37 : vector<2x32xf32>
      %39 = math.exp %38 : vector<2x32xf32>
      %cst_38 = arith.constant 1.000000e+00 : f32
      %40 = vector.broadcast %cst_38 : f32 to vector<2x32xf32>
      %41 = arith.addf %40, %39 : vector<2x32xf32>
      %42 = arith.divf %40, %41 : vector<2x32xf32>
      %43 = vector.extract_strided_slice %23 {offsets = [0, 64], sizes = [2, 32], strides = [1, 1]} : vector<2x96xf32> to vector<2x32xf32>
      %44 = vector.extract_strided_slice %26 {offsets = [0, 64], sizes = [2, 32], strides = [1, 1]} : vector<2x96xf32> to vector<2x32xf32>
      %45 = arith.mulf %34, %44 : vector<2x32xf32>
      %46 = arith.addf %43, %45 : vector<2x32xf32>
      %47 = math.tanh %46 : vector<2x32xf32>
      %cst_39 = arith.constant 1.000000e+00 : f32
      %48 = vector.broadcast %cst_39 : f32 to vector<2x32xf32>
      %49 = arith.subf %48, %42 : vector<2x32xf32>
      %50 = arith.mulf %49, %47 : vector<2x32xf32>
      %51 = arith.mulf %42, %arg15 : vector<2x32xf32>
      %52 = arith.addf %50, %51 : vector<2x32xf32>
      %53 = vector.broadcast %arg14 : i32 to vector<2x1xi32>
      %54 = arith.cmpi slt, %53, %0 : vector<2x1xi32>
      %55 = arith.extui %54 : vector<2x1xi1> to vector<2x1xi32>
      %56 = arith.sitofp %55 : vector<2x1xi32> to vector<2x1xf32>
      %57 = vector.broadcast %56 : vector<2x1xf32> to vector<2x32xf32>
      %58 = arith.mulf %57, %52 : vector<2x32xf32>
      %cst_40 = arith.constant 1.000000e+00 : f32
      %59 = vector.broadcast %cst_40 : f32 to vector<2x1xf32>
      %60 = arith.subf %59, %56 : vector<2x1xf32>
      %61 = vector.broadcast %60 : vector<2x1xf32> to vector<2x32xf32>
      %62 = arith.mulf %61, %arg15 : vector<2x32xf32>
      %63 = arith.addf %58, %62 : vector<2x32xf32>
      %64 = vector.broadcast %56 : vector<2x1xf32> to vector<2x32xf32>
      %65 = arith.mulf %64, %63 : vector<2x32xf32>
      %66 = arith.index_cast %arg14 : i32 to index
      %c0_41 = arith.constant 0 : index
      %c0_42 = arith.constant 0 : index
      %67 = vector.load %arg12[%66, %c0_41, %c0_42] : memref<4x2x32xf32, #tpu.memory_space<vmem>>, vector<1x2x32xf32>
      %68 = vector.shape_cast %67 : vector<1x2x32xf32> to vector<2x32xf32>
      %69 = vector.shape_cast %65 : vector<2x32xf32> to vector<1x2x32xf32>
      tpu.vector_store %arg12[%66, %c0_41, %c0_42], %69 {strides = array<i32>} : memref<4x2x32xf32, #tpu.memory_space<vmem>>, vector<1x2x32xf32>,
      scf.yield %63 : vector<2x32xf32>
    }
    %c4_i32_17 = arith.constant 4 : i32
    %c0_i32_18 = arith.constant 0 : i32
    %c4_i32_19 = arith.constant 4 : i32
    %12 = arith.addi %c0_i32_18, %c4_i32_19 : i32
    %c1_i32_20 = arith.constant 1 : i32
    %13 = scf.for %arg14 = %c0_i32_18 to %12 step %c1_i32_20 iter_args(%arg15 = %9) -> (vector<2x32xf32>)  : i32 {
      %c3_i32 = arith.constant 3 : i32
      %18 = arith.subi %c3_i32, %arg14 : i32
      %19 = arith.index_cast %18 : i32 to index
      %c0_33 = arith.constant 0 : index
      %c0_34 = arith.constant 0 : index
      %20 = vector.load %arg1[%19, %c0_33, %c0_34] : memref<4x2x64xf32, #tpu.memory_space<vmem>>, vector<1x2x64xf32>
      %21 = vector.shape_cast %20 : vector<1x2x64xf32> to vector<2x64xf32>
      %cst_35 = arith.constant dense<0.000000e+00> : vector<2x96xf32>
      %22 = tpu.matmul %21, %5, %cst_35 {dimension_numbers = #tpu.dot_dimension_numbers<[1], [0], [0], [1], [0, 0, 1, 1], [], []>} : vector<2x64xf32>, vector<64x96xf32>, vector<2x96xf32> -> vector<2x96xf32>
      %23 = vector.broadcast %7 : vector<1x96xf32> to vector<2x96xf32>
      %24 = arith.addf %22, %23 : vector<2x96xf32>
      %cst_36 = arith.constant dense<0.000000e+00> : vector<2x96xf32>
      %25 = tpu.matmul %arg15, %6, %cst_36 {dimension_numbers = #tpu.dot_dimension_numbers<[1], [0], [0], [1], [0, 0, 1, 1], [], []>} : vector<2x32xf32>, vector<32x96xf32>, vector<2x96xf32> -> vector<2x96xf32>
      %26 = vector.broadcast %8 : vector<1x96xf32> to vector<2x96xf32>
      %27 = arith.addf %25, %26 : vector<2x96xf32>
      %28 = vector.extract_strided_slice %24 {offsets = [0, 0], sizes = [2, 32], strides = [1, 1]} : vector<2x96xf32> to vector<2x32xf32>
      %29 = vector.extract_strided_slice %27 {offsets = [0, 0], sizes = [2, 32], strides = [1, 1]} : vector<2x96xf32> to vector<2x32xf32>
      %30 = arith.addf %28, %29 : vector<2x32xf32>
      %31 = arith.negf %30 : vector<2x32xf32>
      %32 = math.exp %31 : vector<2x32xf32>
      %cst_37 = arith.constant 1.000000e+00 : f32
      %33 = vector.broadcast %cst_37 : f32 to vector<2x32xf32>
      %34 = arith.addf %33, %32 : vector<2x32xf32>
      %35 = arith.divf %33, %34 : vector<2x32xf32>
      %36 = vector.extract_strided_slice %24 {offsets = [0, 32], sizes = [2, 32], strides = [1, 1]} : vector<2x96xf32> to vector<2x32xf32>
      %37 = vector.extract_strided_slice %27 {offsets = [0, 32], sizes = [2, 32], strides = [1, 1]} : vector<2x96xf32> to vector<2x32xf32>
      %38 = arith.addf %36, %37 : vector<2x32xf32>
      %39 = arith.negf %38 : vector<2x32xf32>
      %40 = math.exp %39 : vector<2x32xf32>
      %cst_38 = arith.constant 1.000000e+00 : f32
      %41 = vector.broadcast %cst_38 : f32 to vector<2x32xf32>
      %42 = arith.addf %41, %40 : vector<2x32xf32>
      %43 = arith.divf %41, %42 : vector<2x32xf32>
      %44 = vector.extract_strided_slice %24 {offsets = [0, 64], sizes = [2, 32], strides = [1, 1]} : vector<2x96xf32> to vector<2x32xf32>
      %45 = vector.extract_strided_slice %27 {offsets = [0, 64], sizes = [2, 32], strides = [1, 1]} : vector<2x96xf32> to vector<2x32xf32>
      %46 = arith.mulf %35, %45 : vector<2x32xf32>
      %47 = arith.addf %44, %46 : vector<2x32xf32>
      %48 = math.tanh %47 : vector<2x32xf32>
      %cst_39 = arith.constant 1.000000e+00 : f32
      %49 = vector.broadcast %cst_39 : f32 to vector<2x32xf32>
      %50 = arith.subf %49, %43 : vector<2x32xf32>
      %51 = arith.mulf %50, %48 : vector<2x32xf32>
      %52 = arith.mulf %43, %arg15 : vector<2x32xf32>
      %53 = arith.addf %51, %52 : vector<2x32xf32>
      %54 = vector.broadcast %18 : i32 to vector<2x1xi32>
      %55 = arith.cmpi slt, %54, %0 : vector<2x1xi32>
      %56 = arith.extui %55 : vector<2x1xi1> to vector<2x1xi32>
      %57 = arith.sitofp %56 : vector<2x1xi32> to vector<2x1xf32>
      %58 = vector.broadcast %57 : vector<2x1xf32> to vector<2x32xf32>
      %59 = arith.mulf %58, %53 : vector<2x32xf32>
      %cst_40 = arith.constant 1.000000e+00 : f32
      %60 = vector.broadcast %cst_40 : f32 to vector<2x1xf32>
      %61 = arith.subf %60, %57 : vector<2x1xf32>
      %62 = vector.broadcast %61 : vector<2x1xf32> to vector<2x32xf32>
      %63 = arith.mulf %62, %arg15 : vector<2x32xf32>
      %64 = arith.addf %59, %63 : vector<2x32xf32>
      %65 = vector.broadcast %57 : vector<2x1xf32> to vector<2x32xf32>
      %66 = arith.mulf %65, %64 : vector<2x32xf32>
      %67 = arith.index_cast %18 : i32 to index
      %c0_41 = arith.constant 0 : index
      %c0_42 = arith.constant 0 : index
      %68 = vector.load %arg13[%67, %c0_41, %c0_42] : memref<4x2x32xf32, #tpu.memory_space<vmem>>, vector<1x2x32xf32>
      %69 = vector.shape_cast %68 : vector<1x2x32xf32> to vector<2x32xf32>
      %70 = vector.shape_cast %66 : vector<2x32xf32> to vector<1x2x32xf32>
      tpu.vector_store %arg13[%67, %c0_41, %c0_42], %70 {strides = array<i32>} : memref<4x2x32xf32, #tpu.memory_space<vmem>>, vector<1x2x32xf32>,
      scf.yield %64 : vector<2x32xf32>
    }
    %c4_i32_21 = arith.constant 4 : i32
    %c0_22 = arith.constant 0 : index
    %c0_23 = arith.constant 0 : index
    %c0_24 = arith.constant 0 : index
    %14 = vector.load %arg12[%c0_22, %c0_23, %c0_24] : memref<4x2x32xf32, #tpu.memory_space<vmem>>, vector<4x2x32xf32>
    %c0_25 = arith.constant 0 : index
    %c0_26 = arith.constant 0 : index
    %c0_27 = arith.constant 0 : index
    %15 = vector.load %arg11[%c0_25, %c0_26, %c0_27] : memref<4x2x64xf32, #tpu.memory_space<vmem>>, vector<4x2x32xf32>
    tpu.vector_store %arg11[%c0_25, %c0_26, %c0_27], %14 {strides = array<i32>} : memref<4x2x64xf32, #tpu.memory_space<vmem>>, vector<4x2x32xf32>,
    %c0_28 = arith.constant 0 : index
    %c0_29 = arith.constant 0 : index
    %c0_30 = arith.constant 0 : index
    %16 = vector.load %arg13[%c0_28, %c0_29, %c0_30] : memref<4x2x32xf32, #tpu.memory_space<vmem>>, vector<4x2x32xf32>
    %c0_31 = arith.constant 0 : index
    %c0_32 = arith.constant 0 : index
    %c32 = arith.constant 32 : index
    %17 = vector.load %arg11[%c0_31, %c0_32, %c32] : memref<4x2x64xf32, #tpu.memory_space<vmem>>, vector<4x2x32xf32>
    tpu.vector_store %arg11[%c0_31, %c0_32, %c32], %16 {strides = array<i32>} : memref<4x2x64xf32, #tpu.memory_space<vmem>>, vector<4x2x32xf32>,
    return
  }
  func.func @transform_0(%arg0: i32) -> (i32, i32, i32) {
    %c0_i32 = arith.constant 0 : i32
    %c0_i32_0 = arith.constant 0 : i32
    %c0_i32_1 = arith.constant 0 : i32
    %c0_i32_2 = arith.constant 0 : i32
    return %c0_i32, %c0_i32_0, %c0_i32_1 : i32, i32, i32
  }
  func.func @transform_1(%arg0: i32) -> (i32, i32) {
    %c0_i32 = arith.constant 0 : i32
    %c0_i32_0 = arith.constant 0 : i32
    %c0_i32_1 = arith.constant 0 : i32
    return %c0_i32, %c0_i32_0 : i32, i32
  }
  func.func @transform_2(%arg0: i32) -> (i32, i32) {
    %c0_i32 = arith.constant 0 : i32
    %c0_i32_0 = arith.constant 0 : i32
    %c0_i32_1 = arith.constant 0 : i32
    return %c0_i32, %c0_i32_0 : i32, i32
  }
  func.func @transform_3(%arg0: i32) -> (i32, i32) {
    %c0_i32 = arith.constant 0 : i32
    %c0_i32_0 = arith.constant 0 : i32
    %c0_i32_1 = arith.constant 0 : i32
    return %c0_i32, %c0_i32_0 : i32, i32
  }
  func.func @transform_4(%arg0: i32) -> (i32, i32) {
    %c0_i32 = arith.constant 0 : i32
    %c0_i32_0 = arith.constant 0 : i32
    %c0_i32_1 = arith.constant 0 : i32
    return %c0_i32, %c0_i32_0 : i32, i32
  }
  func.func @transform_5(%arg0: i32) -> (i32, i32) {
    %c0_i32 = arith.constant 0 : i32
    %c0_i32_0 = arith.constant 0 : i32
    %c0_i32_1 = arith.constant 0 : i32
    return %c0_i32, %c0_i32_0 : i32, i32
  }
  func.func @transform_6(%arg0: i32) -> (i32, i32) {
    %c0_i32 = arith.constant 0 : i32
    %c0_i32_0 = arith.constant 0 : i32
    %c0_i32_1 = arith.constant 0 : i32
    return %c0_i32, %c0_i32_0 : i32, i32
  }
  func.func @transform_7(%arg0: i32) -> (i32, i32) {
    %c0_i32 = arith.constant 0 : i32
    %c0_i32_0 = arith.constant 0 : i32
    %c0_i32_1 = arith.constant 0 : i32
    return %c0_i32, %c0_i32_0 : i32, i32
  }
  func.func @transform_8(%arg0: i32) -> (i32, i32) {
    %c0_i32 = arith.constant 0 : i32
    %c0_i32_0 = arith.constant 0 : i32
    %c0_i32_1 = arith.constant 0 : i32
    return %c0_i32, %c0_i32_0 : i32, i32
  }
  func.func @transform_9(%arg0: i32) -> (i32, i32) {
    %c0_i32 = arith.constant 0 : i32
    %c0_i32_0 = arith.constant 0 : i32
    %c0_i32_1 = arith.constant 0 : i32
    return %c0_i32, %c0_i32_0 : i32, i32
  }
  func.func @transform_10(%arg0: i32) -> (i32, i32, i32) {
    %c0_i32 = arith.constant 0 : i32
    %c0_i32_0 = arith.constant 0 : i32
    %c0_i32_1 = arith.constant 0 : i32
    %c0_i32_2 = arith.constant 0 : i32
    return %c0_i32, %c0_i32_0, %c0_i32_1 : i32, i32, i32
  }
}

module attributes {stable_mosaic.version = 11 : i64} {
  func.func @_attention_fc_kernel(%arg0: i32, %arg1: memref<8x64xf32, #tpu.memory_space<vmem>>, %arg2: memref<2x1xi32, #tpu.memory_space<vmem>>, %arg3: memref<8x2xf32, #tpu.memory_space<vmem>>, %arg4: memref<2x8xf32, #tpu.memory_space<vmem>>, %arg5: memref<8x1xf32, #tpu.memory_space<vmem>>, %arg6: memref<64x64xf32, #tpu.memory_space<vmem>>, %arg7: memref<1x64xf32, #tpu.memory_space<vmem>>, %arg8: memref<64x1xf32, #tpu.memory_space<vmem>>, %arg9: memref<1x1xf32, #tpu.memory_space<vmem>>, %arg10: memref<64x1xf32, #tpu.memory_space<vmem>>, %arg11: memref<1x1xf32, #tpu.memory_space<vmem>>, %arg12: memref<2x1xf32, #tpu.memory_space<vmem>>) attributes {dimension_semantics = [#tpu.dimension_semantics<arbitrary>], iteration_bounds = array<i64: 1>, scalar_prefetch = 0 : i64, scratch_operands = 0 : i64, tpu.core_type = #tpu.core_type<tc>, window_params = [{pipeline_mode = #tpu.pipeline_mode<synchronous>, transform_indices = @transform_0, window_bounds = array<i64: 8, 64>}, {pipeline_mode = #tpu.pipeline_mode<synchronous>, transform_indices = @transform_1, window_bounds = array<i64: 2, 1>}, {pipeline_mode = #tpu.pipeline_mode<synchronous>, transform_indices = @transform_2, window_bounds = array<i64: 8, 2>}, {pipeline_mode = #tpu.pipeline_mode<synchronous>, transform_indices = @transform_3, window_bounds = array<i64: 2, 8>}, {pipeline_mode = #tpu.pipeline_mode<synchronous>, transform_indices = @transform_4, window_bounds = array<i64: 8, 1>}, {pipeline_mode = #tpu.pipeline_mode<synchronous>, transform_indices = @transform_5, window_bounds = array<i64: 64, 64>}, {pipeline_mode = #tpu.pipeline_mode<synchronous>, transform_indices = @transform_6, window_bounds = array<i64: 1, 64>}, {pipeline_mode = #tpu.pipeline_mode<synchronous>, transform_indices = @transform_7, window_bounds = array<i64: 64, 1>}, {pipeline_mode = #tpu.pipeline_mode<synchronous>, transform_indices = @transform_8, window_bounds = array<i64: 1, 1>}, {pipeline_mode = #tpu.pipeline_mode<synchronous>, transform_indices = @transform_9, window_bounds = array<i64: 64, 1>}, {pipeline_mode = #tpu.pipeline_mode<synchronous>, transform_indices = @transform_10, window_bounds = array<i64: 1, 1>}, {pipeline_mode = #tpu.pipeline_mode<synchronous>, transform_indices = @transform_11, window_bounds = array<i64: 2, 1>}]} {
    %c0 = arith.constant 0 : index
    %c0_0 = arith.constant 0 : index
    %0 = vector.load %arg1[%c0, %c0_0] : memref<8x64xf32, #tpu.memory_space<vmem>>, vector<8x64xf32>
    %c0_1 = arith.constant 0 : index
    %c0_2 = arith.constant 0 : index
    %1 = vector.load %arg6[%c0_1, %c0_2] : memref<64x64xf32, #tpu.memory_space<vmem>>, vector<64x64xf32>
    %cst = arith.constant dense<0.000000e+00> : vector<8x64xf32>
    %2 = tpu.matmul %0, %1, %cst {dimension_numbers = #tpu.dot_dimension_numbers<[1], [0], [0], [1], [0, 0, 1, 1], [], []>} : vector<8x64xf32>, vector<64x64xf32>, vector<8x64xf32> -> vector<8x64xf32>
    %c0_3 = arith.constant 0 : index
    %c0_4 = arith.constant 0 : index
    %3 = vector.load %arg7[%c0_3, %c0_4] : memref<1x64xf32, #tpu.memory_space<vmem>>, vector<1x64xf32>
    %4 = vector.broadcast %3 : vector<1x64xf32> to vector<8x64xf32>
    %5 = arith.addf %2, %4 : vector<8x64xf32>
    %6 = math.tanh %5 : vector<8x64xf32>
    %c0_5 = arith.constant 0 : index
    %c0_6 = arith.constant 0 : index
    %7 = vector.load %arg8[%c0_5, %c0_6] : memref<64x1xf32, #tpu.memory_space<vmem>>, vector<64x1xf32>
    %cst_7 = arith.constant dense<0.000000e+00> : vector<8x1xf32>
    %8 = tpu.matmul %6, %7, %cst_7 {dimension_numbers = #tpu.dot_dimension_numbers<[1], [0], [0], [1], [0, 0, 1, 1], [], []>} : vector<8x64xf32>, vector<64x1xf32>, vector<8x1xf32> -> vector<8x1xf32>
    %c0_8 = arith.constant 0 : index
    %c0_9 = arith.constant 0 : index
    %9 = vector.load %arg9[%c0_8, %c0_9] : memref<1x1xf32, #tpu.memory_space<vmem>>, vector<1x1xf32>
    %10 = vector.broadcast %9 : vector<1x1xf32> to vector<8x1xf32>
    %11 = arith.addf %8, %10 : vector<8x1xf32>
    %c0_10 = arith.constant 0 : index
    %c0_11 = arith.constant 0 : index
    %12 = vector.load %arg3[%c0_10, %c0_11] : memref<8x2xf32, #tpu.memory_space<vmem>>, vector<8x2xf32>
    %c0_12 = arith.constant 0 : index
    %c0_13 = arith.constant 0 : index
    %13 = vector.load %arg4[%c0_12, %c0_13] : memref<2x8xf32, #tpu.memory_space<vmem>>, vector<2x8xf32>
    %c0_14 = arith.constant 0 : index
    %c0_15 = arith.constant 0 : index
    %14 = vector.load %arg2[%c0_14, %c0_15] : memref<2x1xi32, #tpu.memory_space<vmem>>, vector<2x1xi32>
    %15 = arith.sitofp %14 : vector<2x1xi32> to vector<2x1xf32>
    %cst_16 = arith.constant dense<0.000000e+00> : vector<8x1xf32>
    %16 = tpu.matmul %12, %15, %cst_16 {dimension_numbers = #tpu.dot_dimension_numbers<[1], [0], [0], [1], [0, 0, 1, 1], [], []>} : vector<8x2xf32>, vector<2x1xf32>, vector<8x1xf32> -> vector<8x1xf32>
    %c0_17 = arith.constant 0 : index
    %c0_18 = arith.constant 0 : index
    %17 = vector.load %arg5[%c0_17, %c0_18] : memref<8x1xf32, #tpu.memory_space<vmem>>, vector<8x1xf32>
    %18 = arith.cmpf olt, %17, %16 : vector<8x1xf32>
    %19 = arith.extui %18 : vector<8x1xi1> to vector<8x1xi32>
    %20 = arith.sitofp %19 : vector<8x1xi32> to vector<8x1xf32>
    %21 = math.exp %11 : vector<8x1xf32>
    %22 = arith.mulf %21, %20 : vector<8x1xf32>
    %cst_19 = arith.constant dense<0.000000e+00> : vector<2x1xf32>
    %23 = tpu.matmul %13, %22, %cst_19 {dimension_numbers = #tpu.dot_dimension_numbers<[1], [0], [0], [1], [0, 0, 1, 1], [], []>} : vector<2x8xf32>, vector<8x1xf32>, vector<2x1xf32> -> vector<2x1xf32>
    %cst_20 = arith.constant 1.000000e+00 : f32
    %24 = vector.broadcast %cst_20 : f32 to vector<2x1xf32>
    %25 = arith.divf %24, %23 : vector<2x1xf32>
    %cst_21 = arith.constant dense<0.000000e+00> : vector<8x1xf32>
    %26 = tpu.matmul %12, %25, %cst_21 {dimension_numbers = #tpu.dot_dimension_numbers<[1], [0], [0], [1], [0, 0, 1, 1], [], []>} : vector<8x2xf32>, vector<2x1xf32>, vector<8x1xf32> -> vector<8x1xf32>
    %27 = arith.mulf %22, %26 : vector<8x1xf32>
    %28 = vector.broadcast %27 : vector<8x1xf32> to vector<8x64xf32>
    %29 = arith.mulf %28, %0 : vector<8x64xf32>
    %cst_22 = arith.constant dense<0.000000e+00> : vector<2x64xf32>
    %30 = tpu.matmul %13, %29, %cst_22 {dimension_numbers = #tpu.dot_dimension_numbers<[1], [0], [0], [1], [0, 0, 1, 1], [], []>} : vector<2x8xf32>, vector<8x64xf32>, vector<2x64xf32> -> vector<2x64xf32>
    %c0_23 = arith.constant 0 : index
    %c0_24 = arith.constant 0 : index
    %31 = vector.load %arg10[%c0_23, %c0_24] : memref<64x1xf32, #tpu.memory_space<vmem>>, vector<64x1xf32>
    %cst_25 = arith.constant dense<0.000000e+00> : vector<2x1xf32>
    %32 = tpu.matmul %30, %31, %cst_25 {dimension_numbers = #tpu.dot_dimension_numbers<[1], [0], [0], [1], [0, 0, 1, 1], [], []>} : vector<2x64xf32>, vector<64x1xf32>, vector<2x1xf32> -> vector<2x1xf32>
    %c0_26 = arith.constant 0 : index
    %c0_27 = arith.constant 0 : index
    %33 = vector.load %arg11[%c0_26, %c0_27] : memref<1x1xf32, #tpu.memory_space<vmem>>, vector<1x1xf32>
    %34 = vector.broadcast %33 : vector<1x1xf32> to vector<2x1xf32>
    %35 = arith.addf %32, %34 : vector<2x1xf32>
    %cst_28 = arith.constant 0.000000e+00 : f32
    %36 = vector.broadcast %cst_28 : f32 to vector<2x1xf32>
    %37 = arith.maximumf %35, %36 : vector<2x1xf32>
    %c0_29 = arith.constant 0 : index
    %c0_30 = arith.constant 0 : index
    %38 = vector.load %arg12[%c0_29, %c0_30] : memref<2x1xf32, #tpu.memory_space<vmem>>, vector<2x1xf32>
    tpu.vector_store %arg12[%c0_29, %c0_30], %37 {strides = array<i32>} : memref<2x1xf32, #tpu.memory_space<vmem>>, vector<2x1xf32>,
    return
  }
  func.func @transform_0(%arg0: i32) -> (i32, i32) {
    %c0_i32 = arith.constant 0 : i32
    %c0_i32_0 = arith.constant 0 : i32
    %c0_i32_1 = arith.constant 0 : i32
    return %c0_i32, %c0_i32_0 : i32, i32
  }
  func.func @transform_1(%arg0: i32) -> (i32, i32) {
    %c0_i32 = arith.constant 0 : i32
    %c0_i32_0 = arith.constant 0 : i32
    %c0_i32_1 = arith.constant 0 : i32
    return %c0_i32, %c0_i32_0 : i32, i32
  }
  func.func @transform_2(%arg0: i32) -> (i32, i32) {
    %c0_i32 = arith.constant 0 : i32
    %c0_i32_0 = arith.constant 0 : i32
    %c0_i32_1 = arith.constant 0 : i32
    return %c0_i32, %c0_i32_0 : i32, i32
  }
  func.func @transform_3(%arg0: i32) -> (i32, i32) {
    %c0_i32 = arith.constant 0 : i32
    %c0_i32_0 = arith.constant 0 : i32
    %c0_i32_1 = arith.constant 0 : i32
    return %c0_i32, %c0_i32_0 : i32, i32
  }
  func.func @transform_4(%arg0: i32) -> (i32, i32) {
    %c0_i32 = arith.constant 0 : i32
    %c0_i32_0 = arith.constant 0 : i32
    %c0_i32_1 = arith.constant 0 : i32
    return %c0_i32, %c0_i32_0 : i32, i32
  }
  func.func @transform_5(%arg0: i32) -> (i32, i32) {
    %c0_i32 = arith.constant 0 : i32
    %c0_i32_0 = arith.constant 0 : i32
    %c0_i32_1 = arith.constant 0 : i32
    return %c0_i32, %c0_i32_0 : i32, i32
  }
  func.func @transform_6(%arg0: i32) -> (i32, i32) {
    %c0_i32 = arith.constant 0 : i32
    %c0_i32_0 = arith.constant 0 : i32
    %c0_i32_1 = arith.constant 0 : i32
    return %c0_i32, %c0_i32_0 : i32, i32
  }
  func.func @transform_7(%arg0: i32) -> (i32, i32) {
    %c0_i32 = arith.constant 0 : i32
    %c0_i32_0 = arith.constant 0 : i32
    %c0_i32_1 = arith.constant 0 : i32
    return %c0_i32, %c0_i32_0 : i32, i32
  }
  func.func @transform_8(%arg0: i32) -> (i32, i32) {
    %c0_i32 = arith.constant 0 : i32
    %c0_i32_0 = arith.constant 0 : i32
    %c0_i32_1 = arith.constant 0 : i32
    return %c0_i32, %c0_i32_0 : i32, i32
  }
  func.func @transform_9(%arg0: i32) -> (i32, i32) {
    %c0_i32 = arith.constant 0 : i32
    %c0_i32_0 = arith.constant 0 : i32
    %c0_i32_1 = arith.constant 0 : i32
    return %c0_i32, %c0_i32_0 : i32, i32
  }
  func.func @transform_10(%arg0: i32) -> (i32, i32) {
    %c0_i32 = arith.constant 0 : i32
    %c0_i32_0 = arith.constant 0 : i32
    %c0_i32_1 = arith.constant 0 : i32
    return %c0_i32, %c0_i32_0 : i32, i32
  }
  func.func @transform_11(%arg0: i32) -> (i32, i32) {
    %c0_i32 = arith.constant 0 : i32
    %c0_i32_0 = arith.constant 0 : i32
    %c0_i32_1 = arith.constant 0 : i32
    return %c0_i32, %c0_i32_0 : i32, i32
  }
}

</mosaic_0001>

<llo_original>
// kernel: han_forward.7
$region0: #{han_forward.7}
  #allocation0 [shape = 'u32[]', space=smem, size = 0x4, offset = 0x4, fixed_abs, tag = 'smem constant byte address 0x4 - core index']
  #allocation1 [shape = 'u32[144,128]{1,0:T(1,128)}', space=vmem, size = 0x12000, scoped, tag = 'internal scratch']
  %s0 = inlined_call_operand.vmem [shape: s32[48,1], index: 0, kind: input, shape index: {}]
  %s1 = inlined_call_operand.vmem [shape: f32[64,32], index: 1, kind: input, shape index: {}]
  %s2 = inlined_call_operand.vmem [shape: f32[48,32], index: 2, kind: output, shape index: {}]
  %s3 = sld [smem:[#allocation0]]
  $region18: #{han_forward.7} parent=0
    _
  %s5 = ssub.s32 1, %s3
  %s6 = scalar_select 0, %s5, %s3
  // Predicated region
  $region2: #{han_forward.7} parent=0 // pred_check
    _
  $region3: #{han_forward.7} parent=0 // pred_check_branch
    %8 = sbr.rel (0) target = $region5
  $region4: #{han_forward.7} parent=0 // pred_region
    _
  $region5: #{han_forward.7} parent=0 // pred_fallthru
    _
  // Predicated region
  $region6: #{han_forward.7} parent=0 // pred_check
    _
  $region7: #{han_forward.7} parent=0 // pred_check_branch
    %10 = sbr.rel (0) target = $region9
  $region8: #{han_forward.7} parent=0 // pred_region
    _
  $region9: #{han_forward.7} parent=0 // pred_fallthru
    _
  %v11 = vld [vmem:[%s0] sm:$0xff]
  %v12 = vld [vmem:[%s0 + $0x8] sm:$0xff]
  %v13 = vld [vmem:[%s0 + $0x10] sm:$0xff]
  %v14 = vld [vmem:[%s0 + $0x18] sm:$0xff]
  %v15 = vld [vmem:[%s0 + $0x20] sm:$0xff]
  %v16 = vld [vmem:[%s0 + $0x28] sm:$0xff]
  %v17 = vlaneseq
  %v18 = vand.u32 %v17, 127
  %19 = vset.pattern.permute.xlu0 0
  %20 = vperm.xlu0 %19, %v11
  %v21 = vpop.permute.xlu0 %20
  %22 = vset.pattern.permute.xlu0 0
  %23 = vperm.xlu0 %22, %v12
  %v24 = vpop.permute.xlu0 %23
  %25 = vset.pattern.permute.xlu0 0
  %26 = vperm.xlu0 %25, %v13
  %v27 = vpop.permute.xlu0 %26
  %28 = vset.pattern.permute.xlu0 0
  %29 = vperm.xlu0 %28, %v14
  %v30 = vpop.permute.xlu0 %29
  %31 = vset.pattern.permute.xlu0 0
  %32 = vperm.xlu0 %31, %v15
  %v33 = vpop.permute.xlu0 %32
  %34 = vset.pattern.permute.xlu0 0
  %35 = vperm.xlu0 %34, %v16
  %v36 = vpop.permute.xlu0 %35
  %vm37 = vcmp.eq.s32.totalorder %v18, %v21
  %vm38 = vcmp.eq.s32.totalorder %v18, %v24
  %vm39 = vcmp.eq.s32.totalorder %v18, %v27
  %vm40 = vcmp.eq.s32.totalorder %v18, %v30
  %vm41 = vcmp.eq.s32.totalorder %v18, %v33
  %vm42 = vcmp.eq.s32.totalorder %v18, %v36
  %v43 = vsel %vm37, 1, 0
  %v44 = vsel %vm38, 1, 0
  %v45 = vsel %vm39, 1, 0
  %v46 = vsel %vm40, 1, 0
  %v47 = vsel %vm41, 1, 0
  %v48 = vsel %vm42, 1, 0
  %v49 = vcvt.s32.f32 %v43
  %v50 = vcvt.s32.f32 %v44
  %v51 = vcvt.s32.f32 %v45
  %v52 = vcvt.s32.f32 %v46
  %v53 = vcvt.s32.f32 %v47
  %v54 = vcvt.s32.f32 %v48
  %v55 = vld [vmem:[%s1] sm:$0xff]
  %v56 = vld [vmem:[%s1 + $0x8] sm:$0xff]
  %v57 = vld [vmem:[%s1 + $0x10] sm:$0xff]
  %v58 = vld [vmem:[%s1 + $0x18] sm:$0xff]
  %v59 = vld [vmem:[%s1 + $0x20] sm:$0xff]
  %v60 = vld [vmem:[%s1 + $0x28] sm:$0xff]
  %v61 = vld [vmem:[%s1 + $0x30] sm:$0xff]
  %v62 = vld [vmem:[%s1 + $0x38] sm:$0xff]
  %vm63 = vcmask 523264
  %v65 = vsel %vm63, %v49, 0
  %v68 = vsel %vm63, %v50, 0
  %v71 = vsel %vm63, %v51, 0
  %v74 = vsel %vm63, %v52, 0
  %v77 = vsel %vm63, %v53, 0
  %v80 = vsel %vm63, %v54, 0
  %82 = vmatprep.subr.mxu0 0.0
  %83 = vmatpush1.msra.mxu0 0.0
  %84 = vmatprep.subr.mxu0 0.0
  %85 = vmatpush1.msra.mxu0 0.0
  %86 = vmatprep.subr.mxu0 0.0
  %87 = vmatpush1.msra.mxu0 0.0
  %88 = vmatprep.subr.mxu0 0.0
  %89 = vmatpush1.msra.mxu0 0.0
  %90 = vmatprep.subr.mxu0 0.0
  %91 = vmatpush1.msra.mxu0 0.0
  %92 = vmatprep.subr.mxu0 0.0
  %93 = vmatpush1.msra.mxu0 0.0
  %94 = vmatprep.subr.mxu0 0.0
  %95 = vmatpush1.msra.mxu0 0.0
  %96 = vmatprep.subr.mxu0 0.0
  %97 = vmatpush1.msra.mxu0 0.0
  %98 = vmatprep.subr.mxu0 0.0
  %99 = vmatpush1.msra.mxu0 %v62
  %100 = vmatprep.subr.mxu0 0.0
  %101 = vmatpush1.msra.mxu0 %v61
  %102 = vmatprep.subr.mxu0 0.0
  %103 = vmatpush1.msra.mxu0 %v60
  %104 = vmatprep.subr.mxu0 0.0
  %105 = vmatpush1.msra.mxu0 %v59
  %106 = vmatprep.subr.mxu0 0.0
  %107 = vmatpush1.msra.mxu0 %v58
  %108 = vmatprep.subr.mxu0 0.0
  %109 = vmatpush1.msra.mxu0 %v57
  %110 = vmatprep.subr.mxu0 0.0
  %111 = vmatpush1.msra.mxu0 %v56
  %112 = vmatprep.subr.mxu0 0.0
  %113 = vmatpush1.msra.mxu0 %v55
  %114 = vmatprep.subr.mxu0 0.0
  %115 = vmatpush2.msra.mxu0 0.0
  %116 = vmatprep.subr.mxu0 0.0
  %117 = vmatpush2.msra.mxu0 0.0
  %118 = vmatprep.subr.mxu0 0.0
  %119 = vmatpush2.msra.mxu0 0.0
  %120 = vmatprep.subr.mxu0 0.0
  %121 = vmatpush2.msra.mxu0 0.0
  %122 = vmatprep.subr.mxu0 0.0
  %123 = vmatpush2.msra.mxu0 0.0
  %124 = vmatprep.subr.mxu0 0.0
  %125 = vmatpush2.msra.mxu0 0.0
  %126 = vmatprep.subr.mxu0 0.0
  %127 = vmatpush2.msra.mxu0 0.0
  %128 = vmatprep.subr.mxu0 0.0
  %129 = vmatpush2.msra.mxu0 0.0
  %130 = vmatprep.subr.mxu0 0.0
  %131 = vmatpush2.msra.mxu0 0.0
  %132 = vmatprep.subr.mxu0 0.0
  %133 = vmatpush2.msra.mxu0 0.0
  %134 = vmatprep.subr.mxu0 0.0
  %135 = vmatpush2.msra.mxu0 0.0
  %136 = vmatprep.subr.mxu0 0.0
  %137 = vmatpush2.msra.mxu0 0.0
  %138 = vmatprep.subr.mxu0 0.0
  %139 = vmatpush2.msra.mxu0 0.0
  %140 = vmatprep.subr.mxu0 0.0
  %141 = vmatpush2.msra.mxu0 0.0
  %142 = vmatprep.subr.mxu0 0.0
  %143 = vmatpush2.msra.mxu0 0.0
  %144 = vmatprep.subr.mxu0 0.0
  %145 = vmatpush2.msra.mxu0 0.0
  %146 = vmatprep.mubr.f32.mxu0 0.0
  %147 = vmatmul.mubr.f32.gmra.mxu0 %v65
  %v148 = vpop.f32.mrf.mxu0
  %v149 = vadd.f32 0.0, %v148
  %v150 = vpop.f32.mrf.mxu0
  %151 = vmatprep.mubr.f32.mxu0 0.0
  %152 = vmatmul.mubr.f32.gmra.mxu0 %v68
  %v153 = vpop.f32.mrf.mxu0
  %v154 = vadd.f32 0.0, %v153
  %v155 = vpop.f32.mrf.mxu0
  %156 = vmatprep.mubr.f32.mxu0 0.0
  %157 = vmatmul.mubr.f32.gmra.mxu0 %v71
  %v158 = vpop.f32.mrf.mxu0
  %v159 = vadd.f32 0.0, %v158
  %v160 = vpop.f32.mrf.mxu0
  %161 = vmatprep.mubr.f32.mxu0 0.0
  %162 = vmatmul.mubr.f32.gmra.mxu0 %v74
  %v163 = vpop.f32.mrf.mxu0
  %v164 = vadd.f32 0.0, %v163
  %v165 = vpop.f32.mrf.mxu0
  %166 = vmatprep.mubr.f32.mxu0 0.0
  %167 = vmatmul.mubr.f32.gmra.mxu0 %v77
  %v168 = vpop.f32.mrf.mxu0
  %v169 = vadd.f32 0.0, %v168
  %v170 = vpop.f32.mrf.mxu0
  %171 = vmatprep.mubr.f32.mxu0 0.0
  %172 = vmatmul.mubr.f32.gmra.mxu0 %v80
  %v173 = vpop.f32.mrf.mxu0
  %v174 = vadd.f32 0.0, %v173
  %v175 = vpop.f32.mrf.mxu0
  %176 = vdwg.mxu0
  %vm177 = vcmask 261120
  %178 = vst.msk [vmem:[%s2] sm:$0xff] %vm177, %v149
  %179 = vst.msk [vmem:[%s2 + $0x8] sm:$0xff] %vm177, %v154
  %180 = vst.msk [vmem:[%s2 + $0x10] sm:$0xff] %vm177, %v159
  %181 = vst.msk [vmem:[%s2 + $0x18] sm:$0xff] %vm177, %v164
  %182 = vst.msk [vmem:[%s2 + $0x20] sm:$0xff] %vm177, %v169
  %183 = vst.msk [vmem:[%s2 + $0x28] sm:$0xff] %vm177, %v174
  // Predicated region
  $region10: #{han_forward.7} parent=0 // pred_check
    _
  $region11: #{han_forward.7} parent=0 // pred_check_branch
    %185 = sbr.rel (0) target = $region13
  $region12: #{han_forward.7} parent=0 // pred_region
    _
  $region13: #{han_forward.7} parent=0 // pred_fallthru
    _
  // Predicated region
  $region14: #{han_forward.7} parent=0 // pred_check
    _
  $region15: #{han_forward.7} parent=0 // pred_check_branch
    %187 = sbr.rel (0) target = $region17
  $region16: #{han_forward.7} parent=0 // pred_region
    _
  $region17: #{han_forward.7} parent=0 // pred_fallthru
    _

// kernel: han_forward.9
$region0: #{han_forward.9}
  #allocation0 [shape = 'u32[]', space=smem, size = 0x4, offset = 0x4, fixed_abs, tag = 'smem constant byte address 0x4 - core index']
  #allocation1 [shape = 'u32[144,128]{1,0:T(1,128)}', space=vmem, size = 0x12000, scoped, tag = 'internal scratch']
  #allocation2 [shape = 'f32[8,6,32]{2,1,0:T(8,128)}', space=vmem, size = 0x8000, scoped, tag = 'scratch operand']
  #allocation3 [shape = 'f32[8,6,32]{2,1,0:T(8,128)}', space=vmem, size = 0x8000, scoped, tag = 'scratch operand']
  %s0 = inlined_call_operand.vmem [shape: f32[8,6,64], index: 0, kind: input, shape index: {}]
  %s1 = inlined_call_operand.vmem [shape: s32[6,1], index: 1, kind: input, shape index: {}]
  %s2 = inlined_call_operand.vmem [shape: f32[64,96], index: 2, kind: input, shape index: {}]
  %s3 = inlined_call_operand.vmem [shape: f32[32,96], index: 3, kind: input, shape index: {}]
  %s4 = inlined_call_operand.vmem [shape: f32[1,96], index: 4, kind: input, shape index: {}]
  %s5 = inlined_call_operand.vmem [shape: f32[1,96], index: 5, kind: input, shape index: {}]
  %s6 = inlined_call_operand.vmem [shape: f32[64,96], index: 6, kind: input, shape index: {}]
  %s7 = inlined_call_operand.vmem [shape: f32[32,96], index: 7, kind: input, shape index: {}]
  %s8 = inlined_call_operand.vmem [shape: f32[1,96], index: 8, kind: input, shape index: {}]
  %s9 = inlined_call_operand.vmem [shape: f32[1,96], index: 9, kind: input, shape index: {}]
  %s10 = inlined_call_operand.vmem [shape: f32[8,6,64], index: 10, kind: output, shape index: {}]
  %s11 = sld [smem:[#allocation0]]
  $region64: #{han_forward.9} parent=0
    _
  %s13 = ssub.s32 1, %s11
  %s14 = scalar_select 0, %s13, %s11
  // Predicated region
  $region2: #{han_forward.9} parent=0 // pred_check
    _
  $region3: #{han_forward.9} parent=0 // pred_check_branch
    %16 = sbr.rel (0) target = $region5
  $region4: #{han_forward.9} parent=0 // pred_region
    _
  $region5: #{han_forward.9} parent=0 // pred_fallthru
    _
  // Predicated region
  $region6: #{han_forward.9} parent=0 // pred_check
    _
  $region7: #{han_forward.9} parent=0 // pred_check_branch
    %18 = sbr.rel (0) target = $region9
  $region8: #{han_forward.9} parent=0 // pred_region
    _
  $region9: #{han_forward.9} parent=0 // pred_fallthru
    _
  // Predicated region
  $region10: #{han_forward.9} parent=0 // pred_check
    _
  $region11: #{han_forward.9} parent=0 // pred_check_branch
    %20 = sbr.rel (0) target = $region13
  $region12: #{han_forward.9} parent=0 // pred_region
    _
  $region13: #{han_forward.9} parent=0 // pred_fallthru
    _
  // Predicated region
  $region14: #{han_forward.9} parent=0 // pred_check
    _
  $region15: #{han_forward.9} parent=0 // pred_check_branch
    %22 = sbr.rel (0) target = $region17
  $region16: #{han_forward.9} parent=0 // pred_region
    _
  $region17: #{han_forward.9} parent=0 // pred_fallthru
    _
  // Predicated region
  $region18: #{han_forward.9} parent=0 // pred_check
    _
  $region19: #{han_forward.9} parent=0 // pred_check_branch
    %24 = sbr.rel (0) target = $region21
  $region20: #{han_forward.9} parent=0 // pred_region
    _
  $region21: #{han_forward.9} parent=0 // pred_fallthru
    _
  // Predicated region
  $region22: #{han_forward.9} parent=0 // pred_check
    _
  $region23: #{han_forward.9} parent=0 // pred_check_branch
    %26 = sbr.rel (0) target = $region25
  $region24: #{han_forward.9} parent=0 // pred_region
    _
  $region25: #{han_forward.9} parent=0 // pred_fallthru
    _
  // Predicated region
  $region26: #{han_forward.9} parent=0 // pred_check
    _
  $region27: #{han_forward.9} parent=0 // pred_check_branch
    %28 = sbr.rel (0) target = $region29
  $region28: #{han_forward.9} parent=0 // pred_region
    _
  $region29: #{han_forward.9} parent=0 // pred_fallthru
    _
  // Predicated region
  $region30: #{han_forward.9} parent=0 // pred_check
    _
  $region31: #{han_forward.9} parent=0 // pred_check_branch
    %30 = sbr.rel (0) target = $region33
  $region32: #{han_forward.9} parent=0 // pred_region
    _
  $region33: #{han_forward.9} parent=0 // pred_fallthru
    _
  // Predicated region
  $region34: #{han_forward.9} parent=0 // pred_check
    _
  $region35: #{han_forward.9} parent=0 // pred_check_branch
    %32 = sbr.rel (0) target = $region37
  $region36: #{han_forward.9} parent=0 // pred_region
    _
  $region37: #{han_forward.9} parent=0 // pred_fallthru
    _
  // Predicated region
  $region38: #{han_forward.9} parent=0 // pred_check
    _
  $region39: #{han_forward.9} parent=0 // pred_check_branch
    %34 = sbr.rel (0) target = $region41
  $region40: #{han_forward.9} parent=0 // pred_region
    _
  $region41: #{han_forward.9} parent=0 // pred_fallthru
    _
  %v35 = vld [vmem:[%s1] sm:$0x3f]
  %v36 = vld [vmem:[%s2] sm:$0xff]
  %v37 = vld [vmem:[%s2 + $0x8] sm:$0xff]
  %v38 = vld [vmem:[%s2 + $0x10] sm:$0xff]
  %v39 = vld [vmem:[%s2 + $0x18] sm:$0xff]
  %v40 = vld [vmem:[%s2 + $0x20] sm:$0xff]
  %v41 = vld [vmem:[%s2 + $0x28] sm:$0xff]
  %v42 = vld [vmem:[%s2 + $0x30] sm:$0xff]
  %v43 = vld [vmem:[%s2 + $0x38] sm:$0xff]
  %v44 = vld [vmem:[%s3] sm:$0xff]
  %v45 = vld [vmem:[%s3 + $0x8] sm:$0xff]
  %v46 = vld [vmem:[%s3 + $0x10] sm:$0xff]
  %v47 = vld [vmem:[%s3 + $0x18] sm:$0xff]
  %v48 = vld [vmem:[%s4] sm:$0x1]
  %v49 = vld [vmem:[%s5] sm:$0x1]
  %v50 = vld [vmem:[%s6] sm:$0xff]
  %v51 = vld [vmem:[%s6 + $0x8] sm:$0xff]
  %v52 = vld [vmem:[%s6 + $0x10] sm:$0xff]
  %v53 = vld [vmem:[%s6 + $0x18] sm:$0xff]
  %v54 = vld [vmem:[%s6 + $0x20] sm:$0xff]
  %v55 = vld [vmem:[%s6 + $0x28] sm:$0xff]
  %v56 = vld [vmem:[%s6 + $0x30] sm:$0xff]
  %v57 = vld [vmem:[%s6 + $0x38] sm:$0xff]
  %v58 = vld [vmem:[%s7] sm:$0xff]
  %v59 = vld [vmem:[%s7 + $0x8] sm:$0xff]
  %v60 = vld [vmem:[%s7 + $0x10] sm:$0xff]
  %v61 = vld [vmem:[%s7 + $0x18] sm:$0xff]
  %v62 = vld [vmem:[%s8] sm:$0x1]
  %v63 = vld [vmem:[%s9] sm:$0x1]
  loop: start=0, step=1, limit=8
  $region42: #{han_forward.9} parent=0 // loop_pre_header
    _
  $region43: #{han_forward.9} parent=0 // loop_header
    %s65 = sphi 0, %s69
    %p66 = scmp.ge.s32.totalorder %s65, 8
    %v70 = vphi 0.0, %v279
  $region44: #{han_forward.9} parent=0 // loop_header_branch
    %68 = sbr.rel (%p66) target = $region48
  $region45: #{han_forward.9} parent=0 // loop_body
    %s71 = smul.u32 %s65, 8
    %s72 = scalar_lea.vmem %s0, %s71
    %v73 = vld [vmem:[%s72] sm:$0x3f]
    %v75 = vlaneseq
    %v76 = vshrl.u32 %v75, 7
    %v77 = vsub.s32 0, %v76
    %v78 = vrot.slane %v48, %v77
    %vm80 = vcmask 523264
    %v82 = vsel %vm80, %v73, 0
    %84 = vmatprep.subr.mxu0 0.0
    %85 = vmatpush1.msra.mxu0 0.0
    %86 = vmatprep.subr.mxu0 0.0
    %87 = vmatpush1.msra.mxu0 0.0
    %88 = vmatprep.subr.mxu0 0.0
    %89 = vmatpush1.msra.mxu0 0.0
    %90 = vmatprep.subr.mxu0 0.0
    %91 = vmatpush1.msra.mxu0 0.0
    %92 = vmatprep.subr.mxu0 0.0
    %93 = vmatpush1.msra.mxu0 0.0
    %94 = vmatprep.subr.mxu0 0.0
    %95 = vmatpush1.msra.mxu0 0.0
    %96 = vmatprep.subr.mxu0 0.0
    %97 = vmatpush1.msra.mxu0 0.0
    %98 = vmatprep.subr.mxu0 0.0
    %99 = vmatpush1.msra.mxu0 0.0
    %100 = vmatprep.subr.mxu0 0.0
    %101 = vmatpush1.msra.mxu0 %v43
    %102 = vmatprep.subr.mxu0 0.0
    %103 = vmatpush1.msra.mxu0 %v42
    %104 = vmatprep.subr.mxu0 0.0
    %105 = vmatpush1.msra.mxu0 %v41
    %106 = vmatprep.subr.mxu0 0.0
    %107 = vmatpush1.msra.mxu0 %v40
    %108 = vmatprep.subr.mxu0 0.0
    %109 = vmatpush1.msra.mxu0 %v39
    %110 = vmatprep.subr.mxu0 0.0
    %111 = vmatpush1.msra.mxu0 %v38
    %112 = vmatprep.subr.mxu0 0.0
    %113 = vmatpush1.msra.mxu0 %v37
    %114 = vmatprep.subr.mxu0 0.0
    %115 = vmatpush1.msra.mxu0 %v36
    %116 = vmatprep.subr.mxu0 0.0
    %117 = vmatpush2.msra.mxu0 0.0
    %118 = vmatprep.subr.mxu0 0.0
    %119 = vmatpush2.msra.mxu0 0.0
    %120 = vmatprep.subr.mxu0 0.0
    %121 = vmatpush2.msra.mxu0 0.0
    %122 = vmatprep.subr.mxu0 0.0
    %123 = vmatpush2.msra.mxu0 0.0
    %124 = vmatprep.subr.mxu0 0.0
    %125 = vmatpush2.msra.mxu0 0.0
    %126 = vmatprep.subr.mxu0 0.0
    %127 = vmatpush2.msra.mxu0 0.0
    %128 = vmatprep.subr.mxu0 0.0
    %129 = vmatpush2.msra.mxu0 0.0
    %130 = vmatprep.subr.mxu0 0.0
    %131 = vmatpush2.msra.mxu0 0.0
    %132 = vmatprep.subr.mxu0 0.0
    %133 = vmatpush2.msra.mxu0 0.0
    %134 = vmatprep.subr.mxu0 0.0
    %135 = vmatpush2.msra.mxu0 0.0
    %136 = vmatprep.subr.mxu0 0.0
    %137 = vmatpush2.msra.mxu0 0.0
    %138 = vmatprep.subr.mxu0 0.0
    %139 = vmatpush2.msra.mxu0 0.0
    %140 = vmatprep.subr.mxu0 0.0
    %141 = vmatpush2.msra.mxu0 0.0
    %142 = vmatprep.subr.mxu0 0.0
    %143 = vmatpush2.msra.mxu0 0.0
    %144 = vmatprep.subr.mxu0 0.0
    %145 = vmatpush2.msra.mxu0 0.0
    %146 = vmatprep.subr.mxu0 0.0
    %147 = vmatpush2.msra.mxu0 0.0
    %148 = vmatprep.mubr.f32.mxu0 0.0
    %149 = vmatmul.mubr.f32.gmra.mxu0 %v82
    %v150 = vpop.f32.mrf.mxu0
    %v151 = vadd.f32 %v78, %v150
    %v152 = vpop.f32.mrf.mxu0
    %153 = vdwg.mxu0
    %v155 = vlaneseq
    %v156 = vshrl.u32 %v155, 7
    %v157 = vsub.s32 0, %v156
    %v158 = vrot.slane %v49, %v157
    %161 = vrot.lane.b32.xlu0 %v70, 96
    %v162 = vpop.permute.xlu0 %161
    %vm163 = vcmask 261120
    %v164 = vsel %vm163, %v162, 0
    %166 = vmatprep.subr.mxu0 0.0
    %167 = vmatpush1.msra.mxu0 0.0
    %168 = vmatprep.subr.mxu0 0.0
    %169 = vmatpush1.msra.mxu0 0.0
    %170 = vmatprep.subr.mxu0 0.0
    %171 = vmatpush1.msra.mxu0 0.0
    %172 = vmatprep.subr.mxu0 0.0
    %173 = vmatpush1.msra.mxu0 0.0
    %174 = vmatprep.subr.mxu0 0.0
    %175 = vmatpush1.msra.mxu0 0.0
    %176 = vmatprep.subr.mxu0 0.0
    %177 = vmatpush1.msra.mxu0 0.0
    %178 = vmatprep.subr.mxu0 0.0
    %179 = vmatpush1.msra.mxu0 0.0
    %180 = vmatprep.subr.mxu0 0.0
    %181 = vmatpush1.msra.mxu0 0.0
    %182 = vmatprep.subr.mxu0 0.0
    %183 = vmatpush1.msra.mxu0 0.0
    %184 = vmatprep.subr.mxu0 0.0
    %185 = vmatpush1.msra.mxu0 0.0
    %186 = vmatprep.subr.mxu0 0.0
    %187 = vmatpush1.msra.mxu0 0.0
    %188 = vmatprep.subr.mxu0 0.0
    %189 = vmatpush1.msra.mxu0 0.0
    %190 = vmatprep.subr.mxu0 0.0
    %191 = vmatpush1.msra.mxu0 %v47
    %192 = vmatprep.subr.mxu0 0.0
    %193 = vmatpush1.msra.mxu0 %v46
    %194 = vmatprep.subr.mxu0 0.0
    %195 = vmatpush1.msra.mxu0 %v45
    %196 = vmatprep.subr.mxu0 0.0
    %197 = vmatpush1.msra.mxu0 %v44
    %198 = vmatprep.subr.mxu0 0.0
    %199 = vmatpush2.msra.mxu0 0.0
    %200 = vmatprep.subr.mxu0 0.0
    %201 = vmatpush2.msra.mxu0 0.0
    %202 = vmatprep.subr.mxu0 0.0
    %203 = vmatpush2.msra.mxu0 0.0
    %204 = vmatprep.subr.mxu0 0.0
    %205 = vmatpush2.msra.mxu0 0.0
    %206 = vmatprep.subr.mxu0 0.0
    %207 = vmatpush2.msra.mxu0 0.0
    %208 = vmatprep.subr.mxu0 0.0
    %209 = vmatpush2.msra.mxu0 0.0
    %210 = vmatprep.subr.mxu0 0.0
    %211 = vmatpush2.msra.mxu0 0.0
    %212 = vmatprep.subr.mxu0 0.0
    %213 = vmatpush2.msra.mxu0 0.0
    %214 = vmatprep.subr.mxu0 0.0
    %215 = vmatpush2.msra.mxu0 0.0
    %216 = vmatprep.subr.mxu0 0.0
    %217 = vmatpush2.msra.mxu0 0.0
    %218 = vmatprep.subr.mxu0 0.0
    %219 = vmatpush2.msra.mxu0 0.0
    %220 = vmatprep.subr.mxu0 0.0
    %221 = vmatpush2.msra.mxu0 0.0
    %222 = vmatprep.subr.mxu0 0.0
    %223 = vmatpush2.msra.mxu0 0.0
    %224 = vmatprep.subr.mxu0 0.0
    %225 = vmatpush2.msra.mxu0 0.0
    %226 = vmatprep.subr.mxu0 0.0
    %227 = vmatpush2.msra.mxu0 0.0
    %228 = vmatprep.subr.mxu0 0.0
    %229 = vmatpush2.msra.mxu0 0.0
    %230 = vmatprep.mubr.f32.mxu0 0.0
    %231 = vmatmul.mubr.f32.gmra.mxu0 %v164
    %v232 = vpop.f32.mrf.mxu0
    %v233 = vadd.f32 %v158, %v232
    %v234 = vpop.f32.mrf.mxu0
    %235 = vdwg.mxu0
    %v236 = vadd.f32 %v151, %v233
    %v237 = vxor.u32 %v236, 2147483648
    %v238 = vmul.f32 %v237, 1.442695
    %v239 = vpow.pop %v238
    %v240 = vadd.f32 %v239, 1.0
    %v241 = vrcp.pop %v240
    %v242 = vmul.f32 1.0, %v241
    %244 = vrot.lane.b32.xlu0 %v233, 64
    %v245 = vpop.permute.xlu0 %244
    %v247 = vmul.f32 %v242, %v245
    %249 = vrot.lane.b32.xlu0 %v247, 64
    %v250 = vpop.permute.xlu0 %249
    %v252 = vadd.f32 %v151, %v250
    %v253 = vtanh.pop %v252
    %v254 = vsub.f32 1.0, %v242
    %256 = vrot.lane.b32.xlu0 %v253, 96
    %v257 = vpop.permute.xlu0 %256
    %v259 = vmul.f32 %v254, %v257
    %v260 = vmul.f32 %v242, %v70
    %v261 = vadd.f32 %v259, %v260
    %v262 = vstv %s65
    %vm263 = vcmp.lt.s32.totalorder %v262, %v35
    %v264 = vsel %vm263, 1, 0
    %v265 = vcvt.s32.f32 %v264
    %267 = vset.pattern.permute.xlu0 0
    %268 = vperm.xlu0 %267, %v265
    %v269 = vpop.permute.xlu0 %268
    %v271 = vmul.f32 %v269, %v261
    %v272 = vsub.f32 1.0, %v265
    %274 = vset.pattern.permute.xlu0 0
    %275 = vperm.xlu0 %274, %v272
    %v276 = vpop.permute.xlu0 %275
    %v278 = vmul.f32 %v276, %v70
    %v279 = vadd.f32 %v271, %v278
    %v280 = vmul.f32 %v269, %v279
    %282 = vrot.lane.b32.xlu0 %v280, 96
    %v283 = vpop.permute.xlu0 %282
    %s285 = scalar_lea.vmem [#allocation2], %s71
    %vm286 = vcmask 259072
    %287 = vst.msk [vmem:[%s285] sm:$0x3f] %vm286, %v283
  $region46: #{han_forward.9} parent=0 // loop_footer
    %s69 = sadd.s32 1, %s65
  $region47: #{han_forward.9} parent=0 // loop_footer_branch
    %64 = sbr.rel target = $region43
  $region48: #{han_forward.9} parent=0 // loop_exit
    _
  loop: start=0, step=1, limit=8
  $region49: #{han_forward.9} parent=0 // loop_pre_header
    _
  $region50: #{han_forward.9} parent=0 // loop_header
    %s289 = sphi 0, %s293
    %p290 = scmp.ge.s32.totalorder %s289, 8
    %v294 = vphi 0.0, %v504
  $region51: #{han_forward.9} parent=0 // loop_header_branch
    %292 = sbr.rel (%p290) target = $region55
  $region52: #{han_forward.9} parent=0 // loop_body
    %s295 = ssub.s32 7, %s289
    %s296 = smul.u32 %s295, 8
    %s297 = scalar_lea.vmem %s0, %s296
    %v298 = vld [vmem:[%s297] sm:$0x3f]
    %v300 = vlaneseq
    %v301 = vshrl.u32 %v300, 7
    %v302 = vsub.s32 0, %v301
    %v303 = vrot.slane %v62, %v302
    %vm305 = vcmask 523264
    %v307 = vsel %vm305, %v298, 0
    %309 = vmatprep.subr.mxu0 0.0
    %310 = vmatpush1.msra.mxu0 0.0
    %311 = vmatprep.subr.mxu0 0.0
    %312 = vmatpush1.msra.mxu0 0.0
    %313 = vmatprep.subr.mxu0 0.0
    %314 = vmatpush1.msra.mxu0 0.0
    %315 = vmatprep.subr.mxu0 0.0
    %316 = vmatpush1.msra.mxu0 0.0
    %317 = vmatprep.subr.mxu0 0.0
    %318 = vmatpush1.msra.mxu0 0.0
    %319 = vmatprep.subr.mxu0 0.0
    %320 = vmatpush1.msra.mxu0 0.0
    %321 = vmatprep.subr.mxu0 0.0
    %322 = vmatpush1.msra.mxu0 0.0
    %323 = vmatprep.subr.mxu0 0.0
    %324 = vmatpush1.msra.mxu0 0.0
    %325 = vmatprep.subr.mxu0 0.0
    %326 = vmatpush1.msra.mxu0 %v57
    %327 = vmatprep.subr.mxu0 0.0
    %328 = vmatpush1.msra.mxu0 %v56
    %329 = vmatprep.subr.mxu0 0.0
    %330 = vmatpush1.msra.mxu0 %v55
    %331 = vmatprep.subr.mxu0 0.0
    %332 = vmatpush1.msra.mxu0 %v54
    %333 = vmatprep.subr.mxu0 0.0
    %334 = vmatpush1.msra.mxu0 %v53
    %335 = vmatprep.subr.mxu0 0.0
    %336 = vmatpush1.msra.mxu0 %v52
    %337 = vmatprep.subr.mxu0 0.0
    %338 = vmatpush1.msra.mxu0 %v51
    %339 = vmatprep.subr.mxu0 0.0
    %340 = vmatpush1.msra.mxu0 %v50
    %341 = vmatprep.subr.mxu0 0.0
    %342 = vmatpush2.msra.mxu0 0.0
    %343 = vmatprep.subr.mxu0 0.0
    %344 = vmatpush2.msra.mxu0 0.0
    %345 = vmatprep.subr.mxu0 0.0
    %346 = vmatpush2.msra.mxu0 0.0
    %347 = vmatprep.subr.mxu0 0.0
    %348 = vmatpush2.msra.mxu0 0.0
    %349 = vmatprep.subr.mxu0 0.0
    %350 = vmatpush2.msra.mxu0 0.0
    %351 = vmatprep.subr.mxu0 0.0
    %352 = vmatpush2.msra.mxu0 0.0
    %353 = vmatprep.subr.mxu0 0.0
    %354 = vmatpush2.msra.mxu0 0.0
    %355 = vmatprep.subr.mxu0 0.0
    %356 = vmatpush2.msra.mxu0 0.0
    %357 = vmatprep.subr.mxu0 0.0
    %358 = vmatpush2.msra.mxu0 0.0
    %359 = vmatprep.subr.mxu0 0.0
    %360 = vmatpush2.msra.mxu0 0.0
    %361 = vmatprep.subr.mxu0 0.0
    %362 = vmatpush2.msra.mxu0 0.0
    %363 = vmatprep.subr.mxu0 0.0
    %364 = vmatpush2.msra.mxu0 0.0
    %365 = vmatprep.subr.mxu0 0.0
    %366 = vmatpush2.msra.mxu0 0.0
    %367 = vmatprep.subr.mxu0 0.0
    %368 = vmatpush2.msra.mxu0 0.0
    %369 = vmatprep.subr.mxu0 0.0
    %370 = vmatpush2.msra.mxu0 0.0
    %371 = vmatprep.subr.mxu0 0.0
    %372 = vmatpush2.msra.mxu0 0.0
    %373 = vmatprep.mubr.f32.mxu0 0.0
    %374 = vmatmul.mubr.f32.gmra.mxu0 %v307
    %v375 = vpop.f32.mrf.mxu0
    %v376 = vadd.f32 %v303, %v375
    %v377 = vpop.f32.mrf.mxu0
    %378 = vdwg.mxu0
    %v380 = vlaneseq
    %v381 = vshrl.u32 %v380, 7
    %v382 = vsub.s32 0, %v381
    %v383 = vrot.slane %v63, %v382
    %386 = vrot.lane.b32.xlu0 %v294, 96
    %v387 = vpop.permute.xlu0 %386
    %vm388 = vcmask 261120
    %v389 = vsel %vm388, %v387, 0
    %391 = vmatprep.subr.mxu0 0.0
    %392 = vmatpush1.msra.mxu0 0.0
    %393 = vmatprep.subr.mxu0 0.0
    %394 = vmatpush1.msra.mxu0 0.0
    %395 = vmatprep.subr.mxu0 0.0
    %396 = vmatpush1.msra.mxu0 0.0
    %397 = vmatprep.subr.mxu0 0.0
    %398 = vmatpush1.msra.mxu0 0.0
    %399 = vmatprep.subr.mxu0 0.0
    %400 = vmatpush1.msra.mxu0 0.0
    %401 = vmatprep.subr.mxu0 0.0
    %402 = vmatpush1.msra.mxu0 0.0
    %403 = vmatprep.subr.mxu0 0.0
    %404 = vmatpush1.msra.mxu0 0.0
    %405 = vmatprep.subr.mxu0 0.0
    %406 = vmatpush1.msra.mxu0 0.0
    %407 = vmatprep.subr.mxu0 0.0
    %408 = vmatpush1.msra.mxu0 0.0
    %409 = vmatprep.subr.mxu0 0.0
    %410 = vmatpush1.msra.mxu0 0.0
    %411 = vmatprep.subr.mxu0 0.0
    %412 = vmatpush1.msra.mxu0 0.0
    %413 = vmatprep.subr.mxu0 0.0
    %414 = vmatpush1.msra.mxu0 0.0
    %415 = vmatprep.subr.mxu0 0.0
    %416 = vmatpush1.msra.mxu0 %v61
    %417 = vmatprep.subr.mxu0 0.0
    %418 = vmatpush1.msra.mxu0 %v60
    %419 = vmatprep.subr.mxu0 0.0
    %420 = vmatpush1.msra.mxu0 %v59
    %421 = vmatprep.subr.mxu0 0.0
    %422 = vmatpush1.msra.mxu0 %v58
    %423 = vmatprep.subr.mxu0 0.0
    %424 = vmatpush2.msra.mxu0 0.0
    %425 = vmatprep.subr.mxu0 0.0
    %426 = vmatpush2.msra.mxu0 0.0
    %427 = vmatprep.subr.mxu0 0.0
    %428 = vmatpush2.msra.mxu0 0.0
    %429 = vmatprep.subr.mxu0 0.0
    %430 = vmatpush2.msra.mxu0 0.0
    %431 = vmatprep.subr.mxu0 0.0
    %432 = vmatpush2.msra.mxu0 0.0
    %433 = vmatprep.subr.mxu0 0.0
    %434 = vmatpush2.msra.mxu0 0.0
    %435 = vmatprep.subr.mxu0 0.0
    %436 = vmatpush2.msra.mxu0 0.0
    %437 = vmatprep.subr.mxu0 0.0
    %438 = vmatpush2.msra.mxu0 0.0
    %439 = vmatprep.subr.mxu0 0.0
    %440 = vmatpush2.msra.mxu0 0.0
    %441 = vmatprep.subr.mxu0 0.0
    %442 = vmatpush2.msra.mxu0 0.0
    %443 = vmatprep.subr.mxu0 0.0
    %444 = vmatpush2.msra.mxu0 0.0
    %445 = vmatprep.subr.mxu0 0.0
    %446 = vmatpush2.msra.mxu0 0.0
    %447 = vmatprep.subr.mxu0 0.0
    %448 = vmatpush2.msra.mxu0 0.0
    %449 = vmatprep.subr.mxu0 0.0
    %450 = vmatpush2.msra.mxu0 0.0
    %451 = vmatprep.subr.mxu0 0.0
    %452 = vmatpush2.msra.mxu0 0.0
    %453 = vmatprep.subr.mxu0 0.0
    %454 = vmatpush2.msra.mxu0 0.0
    %455 = vmatprep.mubr.f32.mxu0 0.0
    %456 = vmatmul.mubr.f32.gmra.mxu0 %v389
    %v457 = vpop.f32.mrf.mxu0
    %v458 = vadd.f32 %v383, %v457
    %v459 = vpop.f32.mrf.mxu0
    %460 = vdwg.mxu0
    %v461 = vadd.f32 %v376, %v458
    %v462 = vxor.u32 %v461, 2147483648
    %v463 = vmul.f32 %v462, 1.442695
    %v464 = vpow.pop %v463
    %v465 = vadd.f32 %v464, 1.0
    %v466 = vrcp.pop %v465
    %v467 = vmul.f32 1.0, %v466
    %469 = vrot.lane.b32.xlu0 %v458, 64
    %v470 = vpop.permute.xlu0 %469
    %v472 = vmul.f32 %v467, %v470
    %474 = vrot.lane.b32.xlu0 %v472, 64
    %v475 = vpop.permute.xlu0 %474
    %v477 = vadd.f32 %v376, %v475
    %v478 = vtanh.pop %v477
    %v479 = vsub.f32 1.0, %v467
    %481 = vrot.lane.b32.xlu0 %v478, 96
    %v482 = vpop.permute.xlu0 %481
    %v484 = vmul.f32 %v479, %v482
    %v485 = vmul.f32 %v467, %v294
    %v486 = vadd.f32 %v484, %v485
    %v487 = vstv %s295
    %vm488 = vcmp.lt.s32.totalorder %v487, %v35
    %v489 = vsel %vm488, 1, 0
    %v490 = vcvt.s32.f32 %v489
    %492 = vset.pattern.permute.xlu0 0
    %493 = vperm.xlu0 %492, %v490
    %v494 = vpop.permute.xlu0 %493
    %v496 = vmul.f32 %v494, %v486
    %v497 = vsub.f32 1.0, %v490
    %499 = vset.pattern.permute.xlu0 0
    %500 = vperm.xlu0 %499, %v497
    %v501 = vpop.permute.xlu0 %500
    %v503 = vmul.f32 %v501, %v294
    %v504 = vadd.f32 %v496, %v503
    %v505 = vmul.f32 %v494, %v504
    %507 = vrot.lane.b32.xlu0 %v505, 96
    %v508 = vpop.permute.xlu0 %507
    %s510 = scalar_lea.vmem [#allocation3], %s296
    %vm511 = vcmask 259072
    %512 = vst.msk [vmem:[%s510] sm:$0x3f] %vm511, %v508
  $region53: #{han_forward.9} parent=0 // loop_footer
    %s293 = sadd.s32 1, %s289
  $region54: #{han_forward.9} parent=0 // loop_footer_branch
    %288 = sbr.rel target = $region50
  $region55: #{han_forward.9} parent=0 // loop_exit
    _
  %v513 = vld [vmem:[#allocation2] sm:$0x3f]
  %v514 = vld [vmem:[#allocation2 + $0x8] sm:$0x3f]
  %v515 = vld [vmem:[#allocation2 + $0x10] sm:$0x3f]
  %v516 = vld [vmem:[#allocation2 + $0x18] sm:$0x3f]
  %v517 = vld [vmem:[#allocation2 + $0x20] sm:$0x3f]
  %v518 = vld [vmem:[#allocation2 + $0x28] sm:$0x3f]
  %v519 = vld [vmem:[#allocation2 + $0x30] sm:$0x3f]
  %v520 = vld [vmem:[#allocation2 + $0x38] sm:$0x3f]
  %vm521 = vcmask 259072
  %522 = vst.msk [vmem:[%s10] sm:$0x3f] %vm521, %v513
  %523 = vst.msk [vmem:[%s10 + $0x8] sm:$0x3f] %vm521, %v514
  %524 = vst.msk [vmem:[%s10 + $0x10] sm:$0x3f] %vm521, %v515
  %525 = vst.msk [vmem:[%s10 + $0x18] sm:$0x3f] %vm521, %v516
  %526 = vst.msk [vmem:[%s10 + $0x20] sm:$0x3f] %vm521, %v517
  %527 = vst.msk [vmem:[%s10 + $0x28] sm:$0x3f] %vm521, %v518
  %528 = vst.msk [vmem:[%s10 + $0x30] sm:$0x3f] %vm521, %v519
  %529 = vst.msk [vmem:[%s10 + $0x38] sm:$0x3f] %vm521, %v520
  %v530 = vld [vmem:[#allocation3] sm:$0x3f]
  %v531 = vld [vmem:[#allocation3 + $0x8] sm:$0x3f]
  %v532 = vld [vmem:[#allocation3 + $0x10] sm:$0x3f]
  %v533 = vld [vmem:[#allocation3 + $0x18] sm:$0x3f]
  %v534 = vld [vmem:[#allocation3 + $0x20] sm:$0x3f]
  %v535 = vld [vmem:[#allocation3 + $0x28] sm:$0x3f]
  %v536 = vld [vmem:[#allocation3 + $0x30] sm:$0x3f]
  %v537 = vld [vmem:[#allocation3 + $0x38] sm:$0x3f]
  %546 = vrot.lane.b32.xlu0 %v530, 32
  %v547 = vpop.permute.xlu0 %546
  %548 = vrot.lane.b32.xlu0 %v531, 32
  %v549 = vpop.permute.xlu0 %548
  %550 = vrot.lane.b32.xlu0 %v532, 32
  %v551 = vpop.permute.xlu0 %550
  %552 = vrot.lane.b32.xlu0 %v533, 32
  %v553 = vpop.permute.xlu0 %552
  %554 = vrot.lane.b32.xlu0 %v534, 32
  %v555 = vpop.permute.xlu0 %554
  %556 = vrot.lane.b32.xlu0 %v535, 32
  %v557 = vpop.permute.xlu0 %556
  %558 = vrot.lane.b32.xlu0 %v536, 32
  %v559 = vpop.permute.xlu0 %558
  %560 = vrot.lane.b32.xlu0 %v537, 32
  %v561 = vpop.permute.xlu0 %560
  %vm570 = vcmask 521472
  %571 = vst.msk [vmem:[%s10] sm:$0x3f] %vm570, %v547
  %572 = vst.msk [vmem:[%s10 + $0x8] sm:$0x3f] %vm570, %v549
  %573 = vst.msk [vmem:[%s10 + $0x10] sm:$0x3f] %vm570, %v551
  %574 = vst.msk [vmem:[%s10 + $0x18] sm:$0x3f] %vm570, %v553
  %575 = vst.msk [vmem:[%s10 + $0x20] sm:$0x3f] %vm570, %v555
  %576 = vst.msk [vmem:[%s10 + $0x28] sm:$0x3f] %vm570, %v557
  %577 = vst.msk [vmem:[%s10 + $0x30] sm:$0x3f] %vm570, %v559
  %578 = vst.msk [vmem:[%s10 + $0x38] sm:$0x3f] %vm570, %v561
  // Predicated region
  $region56: #{han_forward.9} parent=0 // pred_check
    _
  $region57: #{han_forward.9} parent=0 // pred_check_branch
    %580 = sbr.rel (0) target = $region59
  $region58: #{han_forward.9} parent=0 // pred_region
    _
  $region59: #{han_forward.9} parent=0 // pred_fallthru
    _
  // Predicated region
  $region60: #{han_forward.9} parent=0 // pred_check
    _
  $region61: #{han_forward.9} parent=0 // pred_check_branch
    %582 = sbr.rel (0) target = $region63
  $region62: #{han_forward.9} parent=0 // pred_region
    _
  $region63: #{han_forward.9} parent=0 // pred_fallthru
    _

// kernel: han_forward.10
$region0: #{han_forward.10}
  #allocation0 [shape = 'u32[]', space=smem, size = 0x4, offset = 0x4, fixed_abs, tag = 'smem constant byte address 0x4 - core index']
  #allocation1 [shape = 'u32[144,128]{1,0:T(1,128)}', space=vmem, size = 0x12000, scoped, tag = 'internal scratch']
  #allocation2 [shape = 'f32[1,1]{1,0:T(1,128)S(1)}', space=vmem, size = 0x200, scoped, tag = 'scoped memory for han_forward.10']
  %s0 = inlined_call_operand.vmem [shape: f32[48,64], index: 0, kind: input, shape index: {}]
  %s1 = inlined_call_operand.vmem [shape: s32[6,1], index: 1, kind: input, shape index: {}]
  %s2 = inlined_call_operand.vmem [shape: f32[48,6], index: 2, kind: input, shape index: {}]
  %s3 = inlined_call_operand.vmem [shape: f32[6,48], index: 3, kind: input, shape index: {}]
  %s4 = inlined_call_operand.vmem [shape: f32[48,1], index: 4, kind: input, shape index: {}]
  %s5 = inlined_call_operand.vmem [shape: f32[64,64], index: 5, kind: input, shape index: {}]
  %s6 = inlined_call_operand.vmem [shape: f32[1,64], index: 6, kind: input, shape index: {}]
  %s7 = inlined_call_operand.vmem [shape: f32[64,1], index: 7, kind: input, shape index: {}]
  %s8 = inlined_call_operand.<no memory space> [shape: f32[1,1], index: 8, kind: input, shape index: {}]
  %s9 = inlined_call_operand.vmem [shape: f32[6,64], index: 9, kind: output, shape index: {}]
  %s10 = sld [smem:[#allocation0]]
  $region46: #{han_forward.10} parent=0
    _
  %s12 = ssub.s32 1, %s10
  %s13 = scalar_select 0, %s12, %s10
  %v14 = vstv %s8
  %15 = vst [vmem:[#allocation2] sm:$0x1] %v14
  // Predicated region
  $region2: #{han_forward.10} parent=0 // pred_check
    _
  $region3: #{han_forward.10} parent=0 // pred_check_branch
    %17 = sbr.rel (0) target = $region5
  $region4: #{han_forward.10} parent=0 // pred_region
    _
  $region5: #{han_forward.10} parent=0 // pred_fallthru
    _
  // Predicated region
  $region6: #{han_forward.10} parent=0 // pred_check
    _
  $region7: #{han_forward.10} parent=0 // pred_check_branch
    %19 = sbr.rel (0) target = $region9
  $region8: #{han_forward.10} parent=0 // pred_region
    _
  $region9: #{han_forward.10} parent=0 // pred_fallthru
    _
  // Predicated region
  $region10: #{han_forward.10} parent=0 // pred_check
    _
  $region11: #{han_forward.10} parent=0 // pred_check_branch
    %21 = sbr.rel (0) target = $region13
  $region12: #{han_forward.10} parent=0 // pred_region
    _
  $region13: #{han_forward.10} parent=0 // pred_fallthru
    _
  // Predicated region
  $region14: #{han_forward.10} parent=0 // pred_check
    _
  $region15: #{han_forward.10} parent=0 // pred_check_branch
    %23 = sbr.rel (0) target = $region17
  $region16: #{han_forward.10} parent=0 // pred_region
    _
  $region17: #{han_forward.10} parent=0 // pred_fallthru
    _
  // Predicated region
  $region18: #{han_forward.10} parent=0 // pred_check
    _
  $region19: #{han_forward.10} parent=0 // pred_check_branch
    %25 = sbr.rel (0) target = $region21
  $region20: #{han_forward.10} parent=0 // pred_region
    _
  $region21: #{han_forward.10} parent=0 // pred_fallthru
    _
  // Predicated region
  $region22: #{han_forward.10} parent=0 // pred_check
    _
  $region23: #{han_forward.10} parent=0 // pred_check_branch
    %27 = sbr.rel (0) target = $region25
  $region24: #{han_forward.10} parent=0 // pred_region
    _
  $region25: #{han_forward.10} parent=0 // pred_fallthru
    _
  // Predicated region
  $region26: #{han_forward.10} parent=0 // pred_check
    _
  $region27: #{han_forward.10} parent=0 // pred_check_branch
    %29 = sbr.rel (0) target = $region29
  $region28: #{han_forward.10} parent=0 // pred_region
    _
  $region29: #{han_forward.10} parent=0 // pred_fallthru
    _
  // Predicated region
  $region30: #{han_forward.10} parent=0 // pred_check
    _
  $region31: #{han_forward.10} parent=0 // pred_check_branch
    %31 = sbr.rel (0) target = $region33
  $region32: #{han_forward.10} parent=0 // pred_region
    _
  $region33: #{han_forward.10} parent=0 // pred_fallthru
    _
  // Predicated region
  $region34: #{han_forward.10} parent=0 // pred_check
    _
  $region35: #{han_forward.10} parent=0 // pred_check_branch
    %33 = sbr.rel (0) target = $region37
  $region36: #{han_forward.10} parent=0 // pred_region
    _
  $region37: #{han_forward.10} parent=0 // pred_fallthru
    _
  %v34 = vld [vmem:[%s0] sm:$0xff]
  %v35 = vld [vmem:[%s0 + $0x8] sm:$0xff]
  %v36 = vld [vmem:[%s0 + $0x10] sm:$0xff]
  %v37 = vld [vmem:[%s0 + $0x18] sm:$0xff]
  %v38 = vld [vmem:[%s0 + $0x20] sm:$0xff]
  %v39 = vld [vmem:[%s0 + $0x28] sm:$0xff]
  %v40 = vld [vmem:[%s5] sm:$0xff]
  %v41 = vld [vmem:[%s5 + $0x8] sm:$0xff]
  %v42 = vld [vmem:[%s5 + $0x10] sm:$0xff]
  %v43 = vld [vmem:[%s5 + $0x18] sm:$0xff]
  %v44 = vld [vmem:[%s5 + $0x20] sm:$0xff]
  %v45 = vld [vmem:[%s5 + $0x28] sm:$0xff]
  %v46 = vld [vmem:[%s5 + $0x30] sm:$0xff]
  %v47 = vld [vmem:[%s5 + $0x38] sm:$0xff]
  %v48 = vld [vmem:[%s6] sm:$0x1]
  %v50 = vlaneseq
  %v51 = vshrl.u32 %v50, 7
  %v52 = vsub.s32 0, %v51
  %v53 = vrot.slane %v48, %v52
  %vm55 = vcmask 523264
  %v57 = vsel %vm55, %v34, 0
  %v60 = vsel %vm55, %v35, 0
  %v63 = vsel %vm55, %v36, 0
  %v66 = vsel %vm55, %v37, 0
  %v69 = vsel %vm55, %v38, 0
  %v72 = vsel %vm55, %v39, 0
  %74 = vmatprep.subr.mxu0 0.0
  %75 = vmatpush1.msra.mxu0 0.0
  %76 = vmatprep.subr.mxu0 0.0
  %77 = vmatpush1.msra.mxu0 0.0
  %78 = vmatprep.subr.mxu0 0.0
  %79 = vmatpush1.msra.mxu0 0.0
  %80 = vmatprep.subr.mxu0 0.0
  %81 = vmatpush1.msra.mxu0 0.0
  %82 = vmatprep.subr.mxu0 0.0
  %83 = vmatpush1.msra.mxu0 0.0
  %84 = vmatprep.subr.mxu0 0.0
  %85 = vmatpush1.msra.mxu0 0.0
  %86 = vmatprep.subr.mxu0 0.0
  %87 = vmatpush1.msra.mxu0 0.0
  %88 = vmatprep.subr.mxu0 0.0
  %89 = vmatpush1.msra.mxu0 0.0
  %90 = vmatprep.subr.mxu0 0.0
  %91 = vmatpush1.msra.mxu0 %v47
  %92 = vmatprep.subr.mxu0 0.0
  %93 = vmatpush1.msra.mxu0 %v46
  %94 = vmatprep.subr.mxu0 0.0
  %95 = vmatpush1.msra.mxu0 %v45
  %96 = vmatprep.subr.mxu0 0.0
  %97 = vmatpush1.msra.mxu0 %v44
  %98 = vmatprep.subr.mxu0 0.0
  %99 = vmatpush1.msra.mxu0 %v43
  %100 = vmatprep.subr.mxu0 0.0
  %101 = vmatpush1.msra.mxu0 %v42
  %102 = vmatprep.subr.mxu0 0.0
  %103 = vmatpush1.msra.mxu0 %v41
  %104 = vmatprep.subr.mxu0 0.0
  %105 = vmatpush1.msra.mxu0 %v40
  %106 = vmatprep.subr.mxu0 0.0
  %107 = vmatpush2.msra.mxu0 0.0
  %108 = vmatprep.subr.mxu0 0.0
  %109 = vmatpush2.msra.mxu0 0.0
  %110 = vmatprep.subr.mxu0 0.0
  %111 = vmatpush2.msra.mxu0 0.0
  %112 = vmatprep.subr.mxu0 0.0
  %113 = vmatpush2.msra.mxu0 0.0
  %114 = vmatprep.subr.mxu0 0.0
  %115 = vmatpush2.msra.mxu0 0.0
  %116 = vmatprep.subr.mxu0 0.0
  %117 = vmatpush2.msra.mxu0 0.0
  %118 = vmatprep.subr.mxu0 0.0
  %119 = vmatpush2.msra.mxu0 0.0
  %120 = vmatprep.subr.mxu0 0.0
  %121 = vmatpush2.msra.mxu0 0.0
  %122 = vmatprep.subr.mxu0 0.0
  %123 = vmatpush2.msra.mxu0 0.0
  %124 = vmatprep.subr.mxu0 0.0
  %125 = vmatpush2.msra.mxu0 0.0
  %126 = vmatprep.subr.mxu0 0.0
  %127 = vmatpush2.msra.mxu0 0.0
  %128 = vmatprep.subr.mxu0 0.0
  %129 = vmatpush2.msra.mxu0 0.0
  %130 = vmatprep.subr.mxu0 0.0
  %131 = vmatpush2.msra.mxu0 0.0
  %132 = vmatprep.subr.mxu0 0.0
  %133 = vmatpush2.msra.mxu0 0.0
  %134 = vmatprep.subr.mxu0 0.0
  %135 = vmatpush2.msra.mxu0 0.0
  %136 = vmatprep.subr.mxu0 0.0
  %137 = vmatpush2.msra.mxu0 0.0
  %138 = vmatprep.mubr.f32.mxu0 0.0
  %139 = vmatmul.mubr.f32.gmra.mxu0 %v57
  %v140 = vpop.f32.mrf.mxu0
  %v141 = vadd.f32 %v53, %v140
  %v142 = vpop.f32.mrf.mxu0
  %143 = vmatprep.mubr.f32.mxu0 0.0
  %144 = vmatmul.mubr.f32.gmra.mxu0 %v60
  %v145 = vpop.f32.mrf.mxu0
  %v146 = vadd.f32 %v53, %v145
  %v147 = vpop.f32.mrf.mxu0
  %148 = vmatprep.mubr.f32.mxu0 0.0
  %149 = vmatmul.mubr.f32.gmra.mxu0 %v63
  %v150 = vpop.f32.mrf.mxu0
  %v151 = vadd.f32 %v53, %v150
  %v152 = vpop.f32.mrf.mxu0
  %153 = vmatprep.mubr.f32.mxu0 0.0
  %154 = vmatmul.mubr.f32.gmra.mxu0 %v66
  %v155 = vpop.f32.mrf.mxu0
  %v156 = vadd.f32 %v53, %v155
  %v157 = vpop.f32.mrf.mxu0
  %158 = vmatprep.mubr.f32.mxu0 0.0
  %159 = vmatmul.mubr.f32.gmra.mxu0 %v69
  %v160 = vpop.f32.mrf.mxu0
  %v161 = vadd.f32 %v53, %v160
  %v162 = vpop.f32.mrf.mxu0
  %163 = vmatprep.mubr.f32.mxu0 0.0
  %164 = vmatmul.mubr.f32.gmra.mxu0 %v72
  %v165 = vpop.f32.mrf.mxu0
  %v166 = vadd.f32 %v53, %v165
  %v167 = vpop.f32.mrf.mxu0
  %168 = vdwg.mxu0
  %v169 = vtanh.pop %v141
  %v170 = vtanh.pop %v146
  %v171 = vtanh.pop %v151
  %v172 = vtanh.pop %v156
  %v173 = vtanh.pop %v161
  %v174 = vtanh.pop %v166
  %v175 = vld [vmem:[%s7] sm:$0xff]
  %v176 = vld [vmem:[%s7 + $0x8] sm:$0xff]
  %v177 = vld [vmem:[%s7 + $0x10] sm:$0xff]
  %v178 = vld [vmem:[%s7 + $0x18] sm:$0xff]
  %v179 = vld [vmem:[%s7 + $0x20] sm:$0xff]
  %v180 = vld [vmem:[%s7 + $0x28] sm:$0xff]
  %v181 = vld [vmem:[%s7 + $0x30] sm:$0xff]
  %v182 = vld [vmem:[%s7 + $0x38] sm:$0xff]
  %v183 = vld [vmem:[#allocation2] sm:$0x1]
  %v185 = vlaneseq
  %v186 = vshrl.u32 %v185, 7
  %v187 = vsub.s32 0, %v186
  %v188 = vrot.slane %v183, %v187
  %v191 = vsel %vm55, %v169, 0
  %v194 = vsel %vm55, %v170, 0
  %v197 = vsel %vm55, %v171, 0
  %v200 = vsel %vm55, %v172, 0
  %v203 = vsel %vm55, %v173, 0
  %v206 = vsel %vm55, %v174, 0
  %208 = vmatprep.subr.mxu0 0.0
  %209 = vmatpush1.msra.mxu0 0.0
  %210 = vmatprep.subr.mxu0 0.0
  %211 = vmatpush1.msra.mxu0 0.0
  %212 = vmatprep.subr.mxu0 0.0
  %213 = vmatpush1.msra.mxu0 0.0
  %214 = vmatprep.subr.mxu0 0.0
  %215 = vmatpush1.msra.mxu0 0.0
  %216 = vmatprep.subr.mxu0 0.0
  %217 = vmatpush1.msra.mxu0 0.0
  %218 = vmatprep.subr.mxu0 0.0
  %219 = vmatpush1.msra.mxu0 0.0
  %220 = vmatprep.subr.mxu0 0.0
  %221 = vmatpush1.msra.mxu0 0.0
  %222 = vmatprep.subr.mxu0 0.0
  %223 = vmatpush1.msra.mxu0 0.0
  %224 = vmatprep.subr.mxu0 0.0
  %225 = vmatpush1.msra.mxu0 %v182
  %226 = vmatprep.subr.mxu0 0.0
  %227 = vmatpush1.msra.mxu0 %v181
  %228 = vmatprep.subr.mxu0 0.0
  %229 = vmatpush1.msra.mxu0 %v180
  %230 = vmatprep.subr.mxu0 0.0
  %231 = vmatpush1.msra.mxu0 %v179
  %232 = vmatprep.subr.mxu0 0.0
  %233 = vmatpush1.msra.mxu0 %v178
  %234 = vmatprep.subr.mxu0 0.0
  %235 = vmatpush1.msra.mxu0 %v177
  %236 = vmatprep.subr.mxu0 0.0
  %237 = vmatpush1.msra.mxu0 %v176
  %238 = vmatprep.subr.mxu0 0.0
  %239 = vmatpush1.msra.mxu0 %v175
  %240 = vmatprep.subr.mxu0 0.0
  %241 = vmatpush2.msra.mxu0 0.0
  %242 = vmatprep.subr.mxu0 0.0
  %243 = vmatpush2.msra.mxu0 0.0
  %244 = vmatprep.subr.mxu0 0.0
  %245 = vmatpush2.msra.mxu0 0.0
  %246 = vmatprep.subr.mxu0 0.0
  %247 = vmatpush2.msra.mxu0 0.0
  %248 = vmatprep.subr.mxu0 0.0
  %249 = vmatpush2.msra.mxu0 0.0
  %250 = vmatprep.subr.mxu0 0.0
  %251 = vmatpush2.msra.mxu0 0.0
  %252 = vmatprep.subr.mxu0 0.0
  %253 = vmatpush2.msra.mxu0 0.0
  %254 = vmatprep.subr.mxu0 0.0
  %255 = vmatpush2.msra.mxu0 0.0
  %256 = vmatprep.subr.mxu0 0.0
  %257 = vmatpush2.msra.mxu0 0.0
  %258 = vmatprep.subr.mxu0 0.0
  %259 = vmatpush2.msra.mxu0 0.0
  %260 = vmatprep.subr.mxu0 0.0
  %261 = vmatpush2.msra.mxu0 0.0
  %262 = vmatprep.subr.mxu0 0.0
  %263 = vmatpush2.msra.mxu0 0.0
  %264 = vmatprep.subr.mxu0 0.0
  %265 = vmatpush2.msra.mxu0 0.0
  %266 = vmatprep.subr.mxu0 0.0
  %267 = vmatpush2.msra.mxu0 0.0
  %268 = vmatprep.subr.mxu0 0.0
  %269 = vmatpush2.msra.mxu0 0.0
  %270 = vmatprep.subr.mxu0 0.0
  %271 = vmatpush2.msra.mxu0 0.0
  %272 = vmatprep.mubr.f32.mxu0 0.0
  %273 = vmatmul.mubr.f32.gmra.mxu0 %v191
  %v274 = vpop.f32.mrf.mxu0
  %v275 = vadd.f32 %v188, %v274
  %v276 = vpop.f32.mrf.mxu0
  %277 = vmatprep.mubr.f32.mxu0 0.0
  %278 = vmatmul.mubr.f32.gmra.mxu0 %v194
  %v279 = vpop.f32.mrf.mxu0
  %v280 = vadd.f32 %v188, %v279
  %v281 = vpop.f32.mrf.mxu0
  %282 = vmatprep.mubr.f32.mxu0 0.0
  %283 = vmatmul.mubr.f32.gmra.mxu0 %v197
  %v284 = vpop.f32.mrf.mxu0
  %v285 = vadd.f32 %v188, %v284
  %v286 = vpop.f32.mrf.mxu0
  %287 = vmatprep.mubr.f32.mxu0 0.0
  %288 = vmatmul.mubr.f32.gmra.mxu0 %v200
  %v289 = vpop.f32.mrf.mxu0
  %v290 = vadd.f32 %v188, %v289
  %v291 = vpop.f32.mrf.mxu0
  %292 = vmatprep.mubr.f32.mxu0 0.0
  %293 = vmatmul.mubr.f32.gmra.mxu0 %v203
  %v294 = vpop.f32.mrf.mxu0
  %v295 = vadd.f32 %v188, %v294
  %v296 = vpop.f32.mrf.mxu0
  %297 = vmatprep.mubr.f32.mxu0 0.0
  %298 = vmatmul.mubr.f32.gmra.mxu0 %v206
  %v299 = vpop.f32.mrf.mxu0
  %v300 = vadd.f32 %v188, %v299
  %v301 = vpop.f32.mrf.mxu0
  %302 = vdwg.mxu0
  %v303 = vld [vmem:[%s2] sm:$0xff]
  %v304 = vld [vmem:[%s2 + $0x8] sm:$0xff]
  %v305 = vld [vmem:[%s2 + $0x10] sm:$0xff]
  %v306 = vld [vmem:[%s2 + $0x18] sm:$0xff]
  %v307 = vld [vmem:[%s2 + $0x20] sm:$0xff]
  %v308 = vld [vmem:[%s2 + $0x28] sm:$0xff]
  %v309 = vld [vmem:[%s3] sm:$0x3f]
  %v310 = vld [vmem:[%s1] sm:$0x3f]
  %v311 = vcvt.s32.f32 %v310
  %vm312 = vcmask 48128
  %v314 = vsel %vm312, %v303, 0
  %v317 = vsel %vm312, %v304, 0
  %v320 = vsel %vm312, %v305, 0
  %v323 = vsel %vm312, %v306, 0
  %v326 = vsel %vm312, %v307, 0
  %v329 = vsel %vm312, %v308, 0
  %vm331 = vcmask 1045504
  %v333 = vsel %vm331, %v311, 0
  %335 = vmatprep.subr.mxu0 0.0
  %336 = vmatpush1.msra.mxu0 0.0
  %337 = vmatprep.subr.mxu0 0.0
  %338 = vmatpush1.msra.mxu0 0.0
  %339 = vmatprep.subr.mxu0 0.0
  %340 = vmatpush1.msra.mxu0 0.0
  %341 = vmatprep.subr.mxu0 0.0
  %342 = vmatpush1.msra.mxu0 0.0
  %343 = vmatprep.subr.mxu0 0.0
  %344 = vmatpush1.msra.mxu0 0.0
  %345 = vmatprep.subr.mxu0 0.0
  %346 = vmatpush1.msra.mxu0 0.0
  %347 = vmatprep.subr.mxu0 0.0
  %348 = vmatpush1.msra.mxu0 0.0
  %349 = vmatprep.subr.mxu0 0.0
  %350 = vmatpush1.msra.mxu0 0.0
  %351 = vmatprep.subr.mxu0 0.0
  %352 = vmatpush1.msra.mxu0 0.0
  %353 = vmatprep.subr.mxu0 0.0
  %354 = vmatpush1.msra.mxu0 0.0
  %355 = vmatprep.subr.mxu0 0.0
  %356 = vmatpush1.msra.mxu0 0.0
  %357 = vmatprep.subr.mxu0 0.0
  %358 = vmatpush1.msra.mxu0 0.0
  %359 = vmatprep.subr.mxu0 0.0
  %360 = vmatpush1.msra.mxu0 0.0
  %361 = vmatprep.subr.mxu0 0.0
  %362 = vmatpush1.msra.mxu0 0.0
  %363 = vmatprep.subr.mxu0 0.0
  %364 = vmatpush1.msra.mxu0 0.0
  %365 = vmatprep.subr.mxu0 0.0
  %366 = vmatpush1.msra.mxu0 %v333
  %367 = vmatprep.subr.mxu0 0.0
  %368 = vmatpush2.msra.mxu0 0.0
  %369 = vmatprep.subr.mxu0 0.0
  %370 = vmatpush2.msra.mxu0 0.0
  %371 = vmatprep.subr.mxu0 0.0
  %372 = vmatpush2.msra.mxu0 0.0
  %373 = vmatprep.subr.mxu0 0.0
  %374 = vmatpush2.msra.mxu0 0.0
  %375 = vmatprep.subr.mxu0 0.0
  %376 = vmatpush2.msra.mxu0 0.0
  %377 = vmatprep.subr.mxu0 0.0
  %378 = vmatpush2.msra.mxu0 0.0
  %379 = vmatprep.subr.mxu0 0.0
  %380 = vmatpush2.msra.mxu0 0.0
  %381 = vmatprep.subr.mxu0 0.0
  %382 = vmatpush2.msra.mxu0 0.0
  %383 = vmatprep.subr.mxu0 0.0
  %384 = vmatpush2.msra.mxu0 0.0
  %385 = vmatprep.subr.mxu0 0.0
  %386 = vmatpush2.msra.mxu0 0.0
  %387 = vmatprep.subr.mxu0 0.0
  %388 = vmatpush2.msra.mxu0 0.0
  %389 = vmatprep.subr.mxu0 0.0
  %390 = vmatpush2.msra.mxu0 0.0
  %391 = vmatprep.subr.mxu0 0.0
  %392 = vmatpush2.msra.mxu0 0.0
  %393 = vmatprep.subr.mxu0 0.0
  %394 = vmatpush2.msra.mxu0 0.0
  %395 = vmatprep.subr.mxu0 0.0
  %396 = vmatpush2.msra.mxu0 0.0
  %397 = vmatprep.subr.mxu0 0.0
  %398 = vmatpush2.msra.mxu0 0.0
  %399 = vmatprep.mubr.f32.mxu0 0.0
  %400 = vmatmul.mubr.f32.gmra.mxu0 %v314
  %v401 = vpop.f32.mrf.mxu0
  %v402 = vadd.f32 0.0, %v401
  %v403 = vpop.f32.mrf.mxu0
  %404 = vmatprep.mubr.f32.mxu0 0.0
  %405 = vmatmul.mubr.f32.gmra.mxu0 %v317
  %v406 = vpop.f32.mrf.mxu0
  %v407 = vadd.f32 0.0, %v406
  %v408 = vpop.f32.mrf.mxu0
  %409 = vmatprep.mubr.f32.mxu0 0.0
  %410 = vmatmul.mubr.f32.gmra.mxu0 %v320
  %v411 = vpop.f32.mrf.mxu0
  %v412 = vadd.f32 0.0, %v411
  %v413 = vpop.f32.mrf.mxu0
  %414 = vmatprep.mubr.f32.mxu0 0.0
  %415 = vmatmul.mubr.f32.gmra.mxu0 %v323
  %v416 = vpop.f32.mrf.mxu0
  %v417 = vadd.f32 0.0, %v416
  %v418 = vpop.f32.mrf.mxu0
  %419 = vmatprep.mubr.f32.mxu0 0.0
  %420 = vmatmul.mubr.f32.gmra.mxu0 %v326
  %v421 = vpop.f32.mrf.mxu0
  %v422 = vadd.f32 0.0, %v421
  %v423 = vpop.f32.mrf.mxu0
  %424 = vmatprep.mubr.f32.mxu0 0.0
  %425 = vmatmul.mubr.f32.gmra.mxu0 %v329
  %v426 = vpop.f32.mrf.mxu0
  %v427 = vadd.f32 0.0, %v426
  %v428 = vpop.f32.mrf.mxu0
  %429 = vdwg.mxu0
  %v430 = vld [vmem:[%s4] sm:$0xff]
  %v431 = vld [vmem:[%s4 + $0x8] sm:$0xff]
  %v432 = vld [vmem:[%s4 + $0x10] sm:$0xff]
  %v433 = vld [vmem:[%s4 + $0x18] sm:$0xff]
  %v434 = vld [vmem:[%s4 + $0x20] sm:$0xff]
  %v435 = vld [vmem:[%s4 + $0x28] sm:$0xff]
  %vm436 = vcmp.lt.f32.partialorder %v430, %v402
  %vm437 = vcmp.lt.f32.partialorder %v431, %v407
  %vm438 = vcmp.lt.f32.partialorder %v432, %v412
  %vm439 = vcmp.lt.f32.partialorder %v433, %v417
  %vm440 = vcmp.lt.f32.partialorder %v434, %v422
  %vm441 = vcmp.lt.f32.partialorder %v435, %v427
  %v442 = vsel %vm436, 1, 0
  %v443 = vsel %vm437, 1, 0
  %v444 = vsel %vm438, 1, 0
  %v445 = vsel %vm439, 1, 0
  %v446 = vsel %vm440, 1, 0
  %v447 = vsel %vm441, 1, 0
  %v448 = vcvt.s32.f32 %v442
  %v449 = vcvt.s32.f32 %v443
  %v450 = vcvt.s32.f32 %v444
  %v451 = vcvt.s32.f32 %v445
  %v452 = vcvt.s32.f32 %v446
  %v453 = vcvt.s32.f32 %v447
  %v454 = vmul.f32 %v275, 1.442695
  %v455 = vpow.pop %v454
  %v456 = vmul.f32 %v280, 1.442695
  %v457 = vpow.pop %v456
  %v458 = vmul.f32 %v285, 1.442695
  %v459 = vpow.pop %v458
  %v460 = vmul.f32 %v290, 1.442695
  %v461 = vpow.pop %v460
  %v462 = vmul.f32 %v295, 1.442695
  %v463 = vpow.pop %v462
  %v464 = vmul.f32 %v300, 1.442695
  %v465 = vpow.pop %v464
  %v466 = vmul.f32 %v455, %v448
  %v467 = vmul.f32 %v457, %v449
  %v468 = vmul.f32 %v459, %v450
  %v469 = vmul.f32 %v461, %v451
  %v470 = vmul.f32 %v463, %v452
  %v471 = vmul.f32 %v465, %v453
  %vm472 = vcmask 392192
  %v474 = vsel %vm472, %v309, 0
  %476 = vmatprep.subr.mxu0 0.0
  %477 = vmatpush1.msra.mxu0 0.0
  %478 = vmatprep.subr.mxu0 0.0
  %479 = vmatpush1.msra.mxu0 0.0
  %480 = vmatprep.subr.mxu0 0.0
  %481 = vmatpush1.msra.mxu0 0.0
  %482 = vmatprep.subr.mxu0 0.0
  %483 = vmatpush1.msra.mxu0 0.0
  %484 = vmatprep.subr.mxu0 0.0
  %485 = vmatpush1.msra.mxu0 0.0
  %486 = vmatprep.subr.mxu0 0.0
  %487 = vmatpush1.msra.mxu0 0.0
  %488 = vmatprep.subr.mxu0 0.0
  %489 = vmatpush1.msra.mxu0 0.0
  %490 = vmatprep.subr.mxu0 0.0
  %491 = vmatpush1.msra.mxu0 0.0
  %492 = vmatprep.subr.mxu0 0.0
  %493 = vmatpush1.msra.mxu0 0.0
  %494 = vmatprep.subr.mxu0 0.0
  %495 = vmatpush1.msra.mxu0 0.0
  %496 = vmatprep.subr.mxu0 0.0
  %497 = vmatpush1.msra.mxu0 %v471
  %498 = vmatprep.subr.mxu0 0.0
  %499 = vmatpush1.msra.mxu0 %v470
  %500 = vmatprep.subr.mxu0 0.0
  %501 = vmatpush1.msra.mxu0 %v469
  %502 = vmatprep.subr.mxu0 0.0
  %503 = vmatpush1.msra.mxu0 %v468
  %504 = vmatprep.subr.mxu0 0.0
  %505 = vmatpush1.msra.mxu0 %v467
  %506 = vmatprep.subr.mxu0 0.0
  %507 = vmatpush1.msra.mxu0 %v466
  %508 = vmatprep.subr.mxu0 0.0
  %509 = vmatpush2.msra.mxu0 0.0
  %510 = vmatprep.subr.mxu0 0.0
  %511 = vmatpush2.msra.mxu0 0.0
  %512 = vmatprep.subr.mxu0 0.0
  %513 = vmatpush2.msra.mxu0 0.0
  %514 = vmatprep.subr.mxu0 0.0
  %515 = vmatpush2.msra.mxu0 0.0
  %516 = vmatprep.subr.mxu0 0.0
  %517 = vmatpush2.msra.mxu0 0.0
  %518 = vmatprep.subr.mxu0 0.0
  %519 = vmatpush2.msra.mxu0 0.0
  %520 = vmatprep.subr.mxu0 0.0
  %521 = vmatpush2.msra.mxu0 0.0
  %522 = vmatprep.subr.mxu0 0.0
  %523 = vmatpush2.msra.mxu0 0.0
  %524 = vmatprep.subr.mxu0 0.0
  %525 = vmatpush2.msra.mxu0 0.0
  %526 = vmatprep.subr.mxu0 0.0
  %527 = vmatpush2.msra.mxu0 0.0
  %528 = vmatprep.subr.mxu0 0.0
  %529 = vmatpush2.msra.mxu0 0.0
  %530 = vmatprep.subr.mxu0 0.0
  %531 = vmatpush2.msra.mxu0 0.0
  %532 = vmatprep.subr.mxu0 0.0
  %533 = vmatpush2.msra.mxu0 0.0
  %534 = vmatprep.subr.mxu0 0.0
  %535 = vmatpush2.msra.mxu0 0.0
  %536 = vmatprep.subr.mxu0 0.0
  %537 = vmatpush2.msra.mxu0 0.0
  %538 = vmatprep.subr.mxu0 0.0
  %539 = vmatpush2.msra.mxu0 0.0
  %540 = vmatprep.mubr.f32.mxu0 0.0
  %541 = vmatmul.mubr.f32.gmra.mxu0 %v474
  %v542 = vpop.f32.mrf.mxu0
  %v543 = vadd.f32 0.0, %v542
  %v544 = vpop.f32.mrf.mxu0
  %545 = vdwg.mxu0
  %v546 = vrcp.pop %v543
  %v547 = vmul.f32 1.0, %v546
  %v549 = vsel %vm331, %v547, 0
  %551 = vmatprep.subr.mxu0 0.0
  %552 = vmatpush1.msra.mxu0 0.0
  %553 = vmatprep.subr.mxu0 0.0
  %554 = vmatpush1.msra.mxu0 0.0
  %555 = vmatprep.subr.mxu0 0.0
  %556 = vmatpush1.msra.mxu0 0.0
  %557 = vmatprep.subr.mxu0 0.0
  %558 = vmatpush1.msra.mxu0 0.0
  %559 = vmatprep.subr.mxu0 0.0
  %560 = vmatpush1.msra.mxu0 0.0
  %561 = vmatprep.subr.mxu0 0.0
  %562 = vmatpush1.msra.mxu0 0.0
  %563 = vmatprep.subr.mxu0 0.0
  %564 = vmatpush1.msra.mxu0 0.0
  %565 = vmatprep.subr.mxu0 0.0
  %566 = vmatpush1.msra.mxu0 0.0
  %567 = vmatprep.subr.mxu0 0.0
  %568 = vmatpush1.msra.mxu0 0.0
  %569 = vmatprep.subr.mxu0 0.0
  %570 = vmatpush1.msra.mxu0 0.0
  %571 = vmatprep.subr.mxu0 0.0
  %572 = vmatpush1.msra.mxu0 0.0
  %573 = vmatprep.subr.mxu0 0.0
  %574 = vmatpush1.msra.mxu0 0.0
  %575 = vmatprep.subr.mxu0 0.0
  %576 = vmatpush1.msra.mxu0 0.0
  %577 = vmatprep.subr.mxu0 0.0
  %578 = vmatpush1.msra.mxu0 0.0
  %579 = vmatprep.subr.mxu0 0.0
  %580 = vmatpush1.msra.mxu0 0.0
  %581 = vmatprep.subr.mxu0 0.0
  %582 = vmatpush1.msra.mxu0 %v549
  %583 = vmatprep.subr.mxu0 0.0
  %584 = vmatpush2.msra.mxu0 0.0
  %585 = vmatprep.subr.mxu0 0.0
  %586 = vmatpush2.msra.mxu0 0.0
  %587 = vmatprep.subr.mxu0 0.0
  %588 = vmatpush2.msra.mxu0 0.0
  %589 = vmatprep.subr.mxu0 0.0
  %590 = vmatpush2.msra.mxu0 0.0
  %591 = vmatprep.subr.mxu0 0.0
  %592 = vmatpush2.msra.mxu0 0.0
  %593 = vmatprep.subr.mxu0 0.0
  %594 = vmatpush2.msra.mxu0 0.0
  %595 = vmatprep.subr.mxu0 0.0
  %596 = vmatpush2.msra.mxu0 0.0
  %597 = vmatprep.subr.mxu0 0.0
  %598 = vmatpush2.msra.mxu0 0.0
  %599 = vmatprep.subr.mxu0 0.0
  %600 = vmatpush2.msra.mxu0 0.0
  %601 = vmatprep.subr.mxu0 0.0
  %602 = vmatpush2.msra.mxu0 0.0
  %603 = vmatprep.subr.mxu0 0.0
  %604 = vmatpush2.msra.mxu0 0.0
  %605 = vmatprep.subr.mxu0 0.0
  %606 = vmatpush2.msra.mxu0 0.0
  %607 = vmatprep.subr.mxu0 0.0
  %608 = vmatpush2.msra.mxu0 0.0
  %609 = vmatprep.subr.mxu0 0.0
  %610 = vmatpush2.msra.mxu0 0.0
  %611 = vmatprep.subr.mxu0 0.0
  %612 = vmatpush2.msra.mxu0 0.0
  %613 = vmatprep.subr.mxu0 0.0
  %614 = vmatpush2.msra.mxu0 0.0
  %615 = vmatprep.mubr.f32.mxu0 0.0
  %616 = vmatmul.mubr.f32.gmra.mxu0 %v314
  %v617 = vpop.f32.mrf.mxu0
  %v618 = vadd.f32 0.0, %v617
  %v619 = vpop.f32.mrf.mxu0
  %620 = vmatprep.mubr.f32.mxu0 0.0
  %621 = vmatmul.mubr.f32.gmra.mxu0 %v317
  %v622 = vpop.f32.mrf.mxu0
  %v623 = vadd.f32 0.0, %v622
  %v624 = vpop.f32.mrf.mxu0
  %625 = vmatprep.mubr.f32.mxu0 0.0
  %626 = vmatmul.mubr.f32.gmra.mxu0 %v320
  %v627 = vpop.f32.mrf.mxu0
  %v628 = vadd.f32 0.0, %v627
  %v629 = vpop.f32.mrf.mxu0
  %630 = vmatprep.mubr.f32.mxu0 0.0
  %631 = vmatmul.mubr.f32.gmra.mxu0 %v323
  %v632 = vpop.f32.mrf.mxu0
  %v633 = vadd.f32 0.0, %v632
  %v634 = vpop.f32.mrf.mxu0
  %635 = vmatprep.mubr.f32.mxu0 0.0
  %636 = vmatmul.mubr.f32.gmra.mxu0 %v326
  %v637 = vpop.f32.mrf.mxu0
  %v638 = vadd.f32 0.0, %v637
  %v639 = vpop.f32.mrf.mxu0
  %640 = vmatprep.mubr.f32.mxu0 0.0
  %641 = vmatmul.mubr.f32.gmra.mxu0 %v329
  %v642 = vpop.f32.mrf.mxu0
  %v643 = vadd.f32 0.0, %v642
  %v644 = vpop.f32.mrf.mxu0
  %645 = vdwg.mxu0
  %v646 = vmul.f32 %v466, %v618
  %v647 = vmul.f32 %v467, %v623
  %v648 = vmul.f32 %v468, %v628
  %v649 = vmul.f32 %v469, %v633
  %v650 = vmul.f32 %v470, %v638
  %v651 = vmul.f32 %v471, %v643
  %653 = vset.pattern.permute.xlu0 0
  %654 = vperm.xlu0 %653, %v646
  %v655 = vpop.permute.xlu0 %654
  %658 = vset.pattern.permute.xlu0 0
  %659 = vperm.xlu0 %658, %v647
  %v660 = vpop.permute.xlu0 %659
  %663 = vset.pattern.permute.xlu0 0
  %664 = vperm.xlu0 %663, %v648
  %v665 = vpop.permute.xlu0 %664
  %668 = vset.pattern.permute.xlu0 0
  %669 = vperm.xlu0 %668, %v649
  %v670 = vpop.permute.xlu0 %669
  %673 = vset.pattern.permute.xlu0 0
  %674 = vperm.xlu0 %673, %v650
  %v675 = vpop.permute.xlu0 %674
  %678 = vset.pattern.permute.xlu0 0
  %679 = vperm.xlu0 %678, %v651
  %v680 = vpop.permute.xlu0 %679
  %v682 = vmul.f32 %v655, %v34
  %v683 = vmul.f32 %v660, %v35
  %v684 = vmul.f32 %v665, %v36
  %v685 = vmul.f32 %v670, %v37
  %v686 = vmul.f32 %v675, %v38
  %v687 = vmul.f32 %v680, %v39
  %688 = vmatprep.subr.mxu0 0.0
  %689 = vmatpush1.msra.mxu0 0.0
  %690 = vmatprep.subr.mxu0 0.0
  %691 = vmatpush1.msra.mxu0 0.0
  %692 = vmatprep.subr.mxu0 0.0
  %693 = vmatpush1.msra.mxu0 0.0
  %694 = vmatprep.subr.mxu0 0.0
  %695 = vmatpush1.msra.mxu0 0.0
  %696 = vmatprep.subr.mxu0 0.0
  %697 = vmatpush1.msra.mxu0 0.0
  %698 = vmatprep.subr.mxu0 0.0
  %699 = vmatpush1.msra.mxu0 0.0
  %700 = vmatprep.subr.mxu0 0.0
  %701 = vmatpush1.msra.mxu0 0.0
  %702 = vmatprep.subr.mxu0 0.0
  %703 = vmatpush1.msra.mxu0 0.0
  %704 = vmatprep.subr.mxu0 0.0
  %705 = vmatpush1.msra.mxu0 0.0
  %706 = vmatprep.subr.mxu0 0.0
  %707 = vmatpush1.msra.mxu0 0.0
  %708 = vmatprep.subr.mxu0 0.0
  %709 = vmatpush1.msra.mxu0 %v687
  %710 = vmatprep.subr.mxu0 0.0
  %711 = vmatpush1.msra.mxu0 %v686
  %712 = vmatprep.subr.mxu0 0.0
  %713 = vmatpush1.msra.mxu0 %v685
  %714 = vmatprep.subr.mxu0 0.0
  %715 = vmatpush1.msra.mxu0 %v684
  %716 = vmatprep.subr.mxu0 0.0
  %717 = vmatpush1.msra.mxu0 %v683
  %718 = vmatprep.subr.mxu0 0.0
  %719 = vmatpush1.msra.mxu0 %v682
  %720 = vmatprep.subr.mxu0 0.0
  %721 = vmatpush2.msra.mxu0 0.0
  %722 = vmatprep.subr.mxu0 0.0
  %723 = vmatpush2.msra.mxu0 0.0
  %724 = vmatprep.subr.mxu0 0.0
  %725 = vmatpush2.msra.mxu0 0.0
  %726 = vmatprep.subr.mxu0 0.0
  %727 = vmatpush2.msra.mxu0 0.0
  %728 = vmatprep.subr.mxu0 0.0
  %729 = vmatpush2.msra.mxu0 0.0
  %730 = vmatprep.subr.mxu0 0.0
  %731 = vmatpush2.msra.mxu0 0.0
  %732 = vmatprep.subr.mxu0 0.0
  %733 = vmatpush2.msra.mxu0 0.0
  %734 = vmatprep.subr.mxu0 0.0
  %735 = vmatpush2.msra.mxu0 0.0
  %736 = vmatprep.subr.mxu0 0.0
  %737 = vmatpush2.msra.mxu0 0.0
  %738 = vmatprep.subr.mxu0 0.0
  %739 = vmatpush2.msra.mxu0 0.0
  %740 = vmatprep.subr.mxu0 0.0
  %741 = vmatpush2.msra.mxu0 0.0
  %742 = vmatprep.subr.mxu0 0.0
  %743 = vmatpush2.msra.mxu0 0.0
  %744 = vmatprep.subr.mxu0 0.0
  %745 = vmatpush2.msra.mxu0 0.0
  %746 = vmatprep.subr.mxu0 0.0
  %747 = vmatpush2.msra.mxu0 0.0
  %748 = vmatprep.subr.mxu0 0.0
  %749 = vmatpush2.msra.mxu0 0.0
  %750 = vmatprep.subr.mxu0 0.0
  %751 = vmatpush2.msra.mxu0 0.0
  %752 = vmatprep.mubr.f32.mxu0 0.0
  %753 = vmatmul.mubr.f32.gmra.mxu0 %v474
  %v754 = vpop.f32.mrf.mxu0
  %v755 = vadd.f32 0.0, %v754
  %v756 = vpop.f32.mrf.mxu0
  %757 = vdwg.mxu0
  %vm758 = vcmask 521216
  %759 = vst.msk [vmem:[%s9] sm:$0x3f] %vm758, %v755
  // Predicated region
  $region38: #{han_forward.10} parent=0 // pred_check
    _
  $region39: #{han_forward.10} parent=0 // pred_check_branch
    %761 = sbr.rel (0) target = $region41
  $region40: #{han_forward.10} parent=0 // pred_region
    _
  $region41: #{han_forward.10} parent=0 // pred_fallthru
    _
  // Predicated region
  $region42: #{han_forward.10} parent=0 // pred_check
    _
  $region43: #{han_forward.10} parent=0 // pred_check_branch
    %763 = sbr.rel (0) target = $region45
  $region44: #{han_forward.10} parent=0 // pred_region
    _
  $region45: #{han_forward.10} parent=0 // pred_fallthru
    _

// kernel: han_forward.8
$region0: #{han_forward.8}
  #allocation0 [shape = 'u32[]', space=smem, size = 0x4, offset = 0x4, fixed_abs, tag = 'smem constant byte address 0x4 - core index']
  #allocation1 [shape = 'u32[144,128]{1,0:T(1,128)}', space=vmem, size = 0x12000, scoped, tag = 'internal scratch']
  #allocation2 [shape = 'f32[8,6,32]{2,1,0:T(8,128)}', space=vmem, size = 0x8000, scoped, tag = 'scratch operand']
  #allocation3 [shape = 'f32[8,6,32]{2,1,0:T(8,128)}', space=vmem, size = 0x8000, scoped, tag = 'scratch operand']
  %s0 = inlined_call_operand.vmem [shape: f32[8,6,32], index: 0, kind: input, shape index: {}]
  %s1 = inlined_call_operand.vmem [shape: s32[6,1], index: 1, kind: input, shape index: {}]
  %s2 = inlined_call_operand.vmem [shape: f32[32,96], index: 2, kind: input, shape index: {}]
  %s3 = inlined_call_operand.vmem [shape: f32[32,96], index: 3, kind: input, shape index: {}]
  %s4 = inlined_call_operand.vmem [shape: f32[1,96], index: 4, kind: input, shape index: {}]
  %s5 = inlined_call_operand.vmem [shape: f32[1,96], index: 5, kind: input, shape index: {}]
  %s6 = inlined_call_operand.vmem [shape: f32[32,96], index: 6, kind: input, shape index: {}]
  %s7 = inlined_call_operand.vmem [shape: f32[32,96], index: 7, kind: input, shape index: {}]
  %s8 = inlined_call_operand.vmem [shape: f32[1,96], index: 8, kind: input, shape index: {}]
  %s9 = inlined_call_operand.vmem [shape: f32[1,96], index: 9, kind: input, shape index: {}]
  %s10 = inlined_call_operand.vmem [shape: f32[8,6,64], index: 10, kind: output, shape index: {}]
  %s11 = sld [smem:[#allocation0]]
  $region64: #{han_forward.8} parent=0
    _
  %s13 = ssub.s32 1, %s11
  %s14 = scalar_select 0, %s13, %s11
  // Predicated region
  $region2: #{han_forward.8} parent=0 // pred_check
    _
  $region3: #{han_forward.8} parent=0 // pred_check_branch
    %16 = sbr.rel (0) target = $region5
  $region4: #{han_forward.8} parent=0 // pred_region
    _
  $region5: #{han_forward.8} parent=0 // pred_fallthru
    _
  // Predicated region
  $region6: #{han_forward.8} parent=0 // pred_check
    _
  $region7: #{han_forward.8} parent=0 // pred_check_branch
    %18 = sbr.rel (0) target = $region9
  $region8: #{han_forward.8} parent=0 // pred_region
    _
  $region9: #{han_forward.8} parent=0 // pred_fallthru
    _
  // Predicated region
  $region10: #{han_forward.8} parent=0 // pred_check
    _
  $region11: #{han_forward.8} parent=0 // pred_check_branch
    %20 = sbr.rel (0) target = $region13
  $region12: #{han_forward.8} parent=0 // pred_region
    _
  $region13: #{han_forward.8} parent=0 // pred_fallthru
    _
  // Predicated region
  $region14: #{han_forward.8} parent=0 // pred_check
    _
  $region15: #{han_forward.8} parent=0 // pred_check_branch
    %22 = sbr.rel (0) target = $region17
  $region16: #{han_forward.8} parent=0 // pred_region
    _
  $region17: #{han_forward.8} parent=0 // pred_fallthru
    _
  // Predicated region
  $region18: #{han_forward.8} parent=0 // pred_check
    _
  $region19: #{han_forward.8} parent=0 // pred_check_branch
    %24 = sbr.rel (0) target = $region21
  $region20: #{han_forward.8} parent=0 // pred_region
    _
  $region21: #{han_forward.8} parent=0 // pred_fallthru
    _
  // Predicated region
  $region22: #{han_forward.8} parent=0 // pred_check
    _
  $region23: #{han_forward.8} parent=0 // pred_check_branch
    %26 = sbr.rel (0) target = $region25
  $region24: #{han_forward.8} parent=0 // pred_region
    _
  $region25: #{han_forward.8} parent=0 // pred_fallthru
    _
  // Predicated region
  $region26: #{han_forward.8} parent=0 // pred_check
    _
  $region27: #{han_forward.8} parent=0 // pred_check_branch
    %28 = sbr.rel (0) target = $region29
  $region28: #{han_forward.8} parent=0 // pred_region
    _
  $region29: #{han_forward.8} parent=0 // pred_fallthru
    _
  // Predicated region
  $region30: #{han_forward.8} parent=0 // pred_check
    _
  $region31: #{han_forward.8} parent=0 // pred_check_branch
    %30 = sbr.rel (0) target = $region33
  $region32: #{han_forward.8} parent=0 // pred_region
    _
  $region33: #{han_forward.8} parent=0 // pred_fallthru
    _
  // Predicated region
  $region34: #{han_forward.8} parent=0 // pred_check
    _
  $region35: #{han_forward.8} parent=0 // pred_check_branch
    %32 = sbr.rel (0) target = $region37
  $region36: #{han_forward.8} parent=0 // pred_region
    _
  $region37: #{han_forward.8} parent=0 // pred_fallthru
    _
  // Predicated region
  $region38: #{han_forward.8} parent=0 // pred_check
    _
  $region39: #{han_forward.8} parent=0 // pred_check_branch
    %34 = sbr.rel (0) target = $region41
  $region40: #{han_forward.8} parent=0 // pred_region
    _
  $region41: #{han_forward.8} parent=0 // pred_fallthru
    _
  %v35 = vld [vmem:[%s1] sm:$0x3f]
  %v36 = vld [vmem:[%s2] sm:$0xff]
  %v37 = vld [vmem:[%s2 + $0x8] sm:$0xff]
  %v38 = vld [vmem:[%s2 + $0x10] sm:$0xff]
  %v39 = vld [vmem:[%s2 + $0x18] sm:$0xff]
  %v40 = vld [vmem:[%s3] sm:$0xff]
  %v41 = vld [vmem:[%s3 + $0x8] sm:$0xff]
  %v42 = vld [vmem:[%s3 + $0x10] sm:$0xff]
  %v43 = vld [vmem:[%s3 + $0x18] sm:$0xff]
  %v44 = vld [vmem:[%s4] sm:$0x1]
  %v45 = vld [vmem:[%s5] sm:$0x1]
  %v46 = vld [vmem:[%s6] sm:$0xff]
  %v47 = vld [vmem:[%s6 + $0x8] sm:$0xff]
  %v48 = vld [vmem:[%s6 + $0x10] sm:$0xff]
  %v49 = vld [vmem:[%s6 + $0x18] sm:$0xff]
  %v50 = vld [vmem:[%s7] sm:$0xff]
  %v51 = vld [vmem:[%s7 + $0x8] sm:$0xff]
  %v52 = vld [vmem:[%s7 + $0x10] sm:$0xff]
  %v53 = vld [vmem:[%s7 + $0x18] sm:$0xff]
  %v54 = vld [vmem:[%s8] sm:$0x1]
  %v55 = vld [vmem:[%s9] sm:$0x1]
  loop: start=0, step=1, limit=8
  $region42: #{han_forward.8} parent=0 // loop_pre_header
    _
  $region43: #{han_forward.8} parent=0 // loop_header
    %s57 = sphi 0, %s61
    %p58 = scmp.ge.s32.totalorder %s57, 8
    %v62 = vphi 0.0, %v270
  $region44: #{han_forward.8} parent=0 // loop_header_branch
    %60 = sbr.rel (%p58) target = $region48
  $region45: #{han_forward.8} parent=0 // loop_body
    %s63 = smul.u32 %s57, 8
    %s64 = scalar_lea.vmem %s0, %s63
    %v65 = vld [vmem:[%s64] sm:$0x3f]
    %v67 = vlaneseq
    %v68 = vshrl.u32 %v67, 7
    %v69 = vsub.s32 0, %v68
    %v70 = vrot.slane %v44, %v69
    %vm72 = vcmask 261120
    %v74 = vsel %vm72, %v65, 0
    %76 = vmatprep.subr.mxu0 0.0
    %77 = vmatpush1.msra.mxu0 0.0
    %78 = vmatprep.subr.mxu0 0.0
    %79 = vmatpush1.msra.mxu0 0.0
    %80 = vmatprep.subr.mxu0 0.0
    %81 = vmatpush1.msra.mxu0 0.0
    %82 = vmatprep.subr.mxu0 0.0
    %83 = vmatpush1.msra.mxu0 0.0
    %84 = vmatprep.subr.mxu0 0.0
    %85 = vmatpush1.msra.mxu0 0.0
    %86 = vmatprep.subr.mxu0 0.0
    %87 = vmatpush1.msra.mxu0 0.0
    %88 = vmatprep.subr.mxu0 0.0
    %89 = vmatpush1.msra.mxu0 0.0
    %90 = vmatprep.subr.mxu0 0.0
    %91 = vmatpush1.msra.mxu0 0.0
    %92 = vmatprep.subr.mxu0 0.0
    %93 = vmatpush1.msra.mxu0 0.0
    %94 = vmatprep.subr.mxu0 0.0
    %95 = vmatpush1.msra.mxu0 0.0
    %96 = vmatprep.subr.mxu0 0.0
    %97 = vmatpush1.msra.mxu0 0.0
    %98 = vmatprep.subr.mxu0 0.0
    %99 = vmatpush1.msra.mxu0 0.0
    %100 = vmatprep.subr.mxu0 0.0
    %101 = vmatpush1.msra.mxu0 %v39
    %102 = vmatprep.subr.mxu0 0.0
    %103 = vmatpush1.msra.mxu0 %v38
    %104 = vmatprep.subr.mxu0 0.0
    %105 = vmatpush1.msra.mxu0 %v37
    %106 = vmatprep.subr.mxu0 0.0
    %107 = vmatpush1.msra.mxu0 %v36
    %108 = vmatprep.subr.mxu0 0.0
    %109 = vmatpush2.msra.mxu0 0.0
    %110 = vmatprep.subr.mxu0 0.0
    %111 = vmatpush2.msra.mxu0 0.0
    %112 = vmatprep.subr.mxu0 0.0
    %113 = vmatpush2.msra.mxu0 0.0
    %114 = vmatprep.subr.mxu0 0.0
    %115 = vmatpush2.msra.mxu0 0.0
    %116 = vmatprep.subr.mxu0 0.0
    %117 = vmatpush2.msra.mxu0 0.0
    %118 = vmatprep.subr.mxu0 0.0
    %119 = vmatpush2.msra.mxu0 0.0
    %120 = vmatprep.subr.mxu0 0.0
    %121 = vmatpush2.msra.mxu0 0.0
    %122 = vmatprep.subr.mxu0 0.0
    %123 = vmatpush2.msra.mxu0 0.0
    %124 = vmatprep.subr.mxu0 0.0
    %125 = vmatpush2.msra.mxu0 0.0
    %126 = vmatprep.subr.mxu0 0.0
    %127 = vmatpush2.msra.mxu0 0.0
    %128 = vmatprep.subr.mxu0 0.0
    %129 = vmatpush2.msra.mxu0 0.0
    %130 = vmatprep.subr.mxu0 0.0
    %131 = vmatpush2.msra.mxu0 0.0
    %132 = vmatprep.subr.mxu0 0.0
    %133 = vmatpush2.msra.mxu0 0.0
    %134 = vmatprep.subr.mxu0 0.0
    %135 = vmatpush2.msra.mxu0 0.0
    %136 = vmatprep.subr.mxu0 0.0
    %137 = vmatpush2.msra.mxu0 0.0
    %138 = vmatprep.subr.mxu0 0.0
    %139 = vmatpush2.msra.mxu0 0.0
    %140 = vmatprep.mubr.f32.mxu0 0.0
    %141 = vmatmul.mubr.f32.gmra.mxu0 %v74
    %v142 = vpop.f32.mrf.mxu0
    %v143 = vadd.f32 %v70, %v142
    %v144 = vpop.f32.mrf.mxu0
    %145 = vdwg.mxu0
    %v147 = vlaneseq
    %v148 = vshrl.u32 %v147, 7
    %v149 = vsub.s32 0, %v148
    %v150 = vrot.slane %v45, %v149
    %153 = vrot.lane.b32.xlu0 %v62, 96
    %v154 = vpop.permute.xlu0 %153
    %v155 = vsel %vm72, %v154, 0
    %157 = vmatprep.subr.mxu0 0.0
    %158 = vmatpush1.msra.mxu0 0.0
    %159 = vmatprep.subr.mxu0 0.0
    %160 = vmatpush1.msra.mxu0 0.0
    %161 = vmatprep.subr.mxu0 0.0
    %162 = vmatpush1.msra.mxu0 0.0
    %163 = vmatprep.subr.mxu0 0.0
    %164 = vmatpush1.msra.mxu0 0.0
    %165 = vmatprep.subr.mxu0 0.0
    %166 = vmatpush1.msra.mxu0 0.0
    %167 = vmatprep.subr.mxu0 0.0
    %168 = vmatpush1.msra.mxu0 0.0
    %169 = vmatprep.subr.mxu0 0.0
    %170 = vmatpush1.msra.mxu0 0.0
    %171 = vmatprep.subr.mxu0 0.0
    %172 = vmatpush1.msra.mxu0 0.0
    %173 = vmatprep.subr.mxu0 0.0
    %174 = vmatpush1.msra.mxu0 0.0
    %175 = vmatprep.subr.mxu0 0.0
    %176 = vmatpush1.msra.mxu0 0.0
    %177 = vmatprep.subr.mxu0 0.0
    %178 = vmatpush1.msra.mxu0 0.0
    %179 = vmatprep.subr.mxu0 0.0
    %180 = vmatpush1.msra.mxu0 0.0
    %181 = vmatprep.subr.mxu0 0.0
    %182 = vmatpush1.msra.mxu0 %v43
    %183 = vmatprep.subr.mxu0 0.0
    %184 = vmatpush1.msra.mxu0 %v42
    %185 = vmatprep.subr.mxu0 0.0
    %186 = vmatpush1.msra.mxu0 %v41
    %187 = vmatprep.subr.mxu0 0.0
    %188 = vmatpush1.msra.mxu0 %v40
    %189 = vmatprep.subr.mxu0 0.0
    %190 = vmatpush2.msra.mxu0 0.0
    %191 = vmatprep.subr.mxu0 0.0
    %192 = vmatpush2.msra.mxu0 0.0
    %193 = vmatprep.subr.mxu0 0.0
    %194 = vmatpush2.msra.mxu0 0.0
    %195 = vmatprep.subr.mxu0 0.0
    %196 = vmatpush2.msra.mxu0 0.0
    %197 = vmatprep.subr.mxu0 0.0
    %198 = vmatpush2.msra.mxu0 0.0
    %199 = vmatprep.subr.mxu0 0.0
    %200 = vmatpush2.msra.mxu0 0.0
    %201 = vmatprep.subr.mxu0 0.0
    %202 = vmatpush2.msra.mxu0 0.0
    %203 = vmatprep.subr.mxu0 0.0
    %204 = vmatpush2.msra.mxu0 0.0
    %205 = vmatprep.subr.mxu0 0.0
    %206 = vmatpush2.msra.mxu0 0.0
    %207 = vmatprep.subr.mxu0 0.0
    %208 = vmatpush2.msra.mxu0 0.0
    %209 = vmatprep.subr.mxu0 0.0
    %210 = vmatpush2.msra.mxu0 0.0
    %211 = vmatprep.subr.mxu0 0.0
    %212 = vmatpush2.msra.mxu0 0.0
    %213 = vmatprep.subr.mxu0 0.0
    %214 = vmatpush2.msra.mxu0 0.0
    %215 = vmatprep.subr.mxu0 0.0
    %216 = vmatpush2.msra.mxu0 0.0
    %217 = vmatprep.subr.mxu0 0.0
    %218 = vmatpush2.msra.mxu0 0.0
    %219 = vmatprep.subr.mxu0 0.0
    %220 = vmatpush2.msra.mxu0 0.0
    %221 = vmatprep.mubr.f32.mxu0 0.0
    %222 = vmatmul.mubr.f32.gmra.mxu0 %v155
    %v223 = vpop.f32.mrf.mxu0
    %v224 = vadd.f32 %v150, %v223
    %v225 = vpop.f32.mrf.mxu0
    %226 = vdwg.mxu0
    %v227 = vadd.f32 %v143, %v224
    %v228 = vxor.u32 %v227, 2147483648
    %v229 = vmul.f32 %v228, 1.442695
    %v230 = vpow.pop %v229
    %v231 = vadd.f32 %v230, 1.0
    %v232 = vrcp.pop %v231
    %v233 = vmul.f32 1.0, %v232
    %235 = vrot.lane.b32.xlu0 %v224, 64
    %v236 = vpop.permute.xlu0 %235
    %v238 = vmul.f32 %v233, %v236
    %240 = vrot.lane.b32.xlu0 %v238, 64
    %v241 = vpop.permute.xlu0 %240
    %v243 = vadd.f32 %v143, %v241
    %v244 = vtanh.pop %v243
    %v245 = vsub.f32 1.0, %v233
    %247 = vrot.lane.b32.xlu0 %v244, 96
    %v248 = vpop.permute.xlu0 %247
    %v250 = vmul.f32 %v245, %v248
    %v251 = vmul.f32 %v233, %v62
    %v252 = vadd.f32 %v250, %v251
    %v253 = vstv %s57
    %vm254 = vcmp.lt.s32.totalorder %v253, %v35
    %v255 = vsel %vm254, 1, 0
    %v256 = vcvt.s32.f32 %v255
    %258 = vset.pattern.permute.xlu0 0
    %259 = vperm.xlu0 %258, %v256
    %v260 = vpop.permute.xlu0 %259
    %v262 = vmul.f32 %v260, %v252
    %v263 = vsub.f32 1.0, %v256
    %265 = vset.pattern.permute.xlu0 0
    %266 = vperm.xlu0 %265, %v263
    %v267 = vpop.permute.xlu0 %266
    %v269 = vmul.f32 %v267, %v62
    %v270 = vadd.f32 %v262, %v269
    %v271 = vmul.f32 %v260, %v270
    %273 = vrot.lane.b32.xlu0 %v271, 96
    %v274 = vpop.permute.xlu0 %273
    %s276 = scalar_lea.vmem [#allocation2], %s63
    %vm277 = vcmask 259072
    %278 = vst.msk [vmem:[%s276] sm:$0x3f] %vm277, %v274
  $region46: #{han_forward.8} parent=0 // loop_footer
    %s61 = sadd.s32 1, %s57
  $region47: #{han_forward.8} parent=0 // loop_footer_branch
    %56 = sbr.rel target = $region43
  $region48: #{han_forward.8} parent=0 // loop_exit
    _
  loop: start=0, step=1, limit=8
  $region49: #{han_forward.8} parent=0 // loop_pre_header
    _
  $region50: #{han_forward.8} parent=0 // loop_header
    %s280 = sphi 0, %s284
    %p281 = scmp.ge.s32.totalorder %s280, 8
    %v285 = vphi 0.0, %v494
  $region51: #{han_forward.8} parent=0 // loop_header_branch
    %283 = sbr.rel (%p281) target = $region55
  $region52: #{han_forward.8} parent=0 // loop_body
    %s286 = ssub.s32 7, %s280
    %s287 = smul.u32 %s286, 8
    %s288 = scalar_lea.vmem %s0, %s287
    %v289 = vld [vmem:[%s288] sm:$0x3f]
    %v291 = vlaneseq
    %v292 = vshrl.u32 %v291, 7
    %v293 = vsub.s32 0, %v292
    %v294 = vrot.slane %v54, %v293
    %vm296 = vcmask 261120
    %v298 = vsel %vm296, %v289, 0
    %300 = vmatprep.subr.mxu0 0.0
    %301 = vmatpush1.msra.mxu0 0.0
    %302 = vmatprep.subr.mxu0 0.0
    %303 = vmatpush1.msra.mxu0 0.0
    %304 = vmatprep.subr.mxu0 0.0
    %305 = vmatpush1.msra.mxu0 0.0
    %306 = vmatprep.subr.mxu0 0.0
    %307 = vmatpush1.msra.mxu0 0.0
    %308 = vmatprep.subr.mxu0 0.0
    %309 = vmatpush1.msra.mxu0 0.0
    %310 = vmatprep.subr.mxu0 0.0
    %311 = vmatpush1.msra.mxu0 0.0
    %312 = vmatprep.subr.mxu0 0.0
    %313 = vmatpush1.msra.mxu0 0.0
    %314 = vmatprep.subr.mxu0 0.0
    %315 = vmatpush1.msra.mxu0 0.0
    %316 = vmatprep.subr.mxu0 0.0
    %317 = vmatpush1.msra.mxu0 0.0
    %318 = vmatprep.subr.mxu0 0.0
    %319 = vmatpush1.msra.mxu0 0.0
    %320 = vmatprep.subr.mxu0 0.0
    %321 = vmatpush1.msra.mxu0 0.0
    %322 = vmatprep.subr.mxu0 0.0
    %323 = vmatpush1.msra.mxu0 0.0
    %324 = vmatprep.subr.mxu0 0.0
    %325 = vmatpush1.msra.mxu0 %v49
    %326 = vmatprep.subr.mxu0 0.0
    %327 = vmatpush1.msra.mxu0 %v48
    %328 = vmatprep.subr.mxu0 0.0
    %329 = vmatpush1.msra.mxu0 %v47
    %330 = vmatprep.subr.mxu0 0.0
    %331 = vmatpush1.msra.mxu0 %v46
    %332 = vmatprep.subr.mxu0 0.0
    %333 = vmatpush2.msra.mxu0 0.0
    %334 = vmatprep.subr.mxu0 0.0
    %335 = vmatpush2.msra.mxu0 0.0
    %336 = vmatprep.subr.mxu0 0.0
    %337 = vmatpush2.msra.mxu0 0.0
    %338 = vmatprep.subr.mxu0 0.0
    %339 = vmatpush2.msra.mxu0 0.0
    %340 = vmatprep.subr.mxu0 0.0
    %341 = vmatpush2.msra.mxu0 0.0
    %342 = vmatprep.subr.mxu0 0.0
    %343 = vmatpush2.msra.mxu0 0.0
    %344 = vmatprep.subr.mxu0 0.0
    %345 = vmatpush2.msra.mxu0 0.0
    %346 = vmatprep.subr.mxu0 0.0
    %347 = vmatpush2.msra.mxu0 0.0
    %348 = vmatprep.subr.mxu0 0.0
    %349 = vmatpush2.msra.mxu0 0.0
    %350 = vmatprep.subr.mxu0 0.0
    %351 = vmatpush2.msra.mxu0 0.0
    %352 = vmatprep.subr.mxu0 0.0
    %353 = vmatpush2.msra.mxu0 0.0
    %354 = vmatprep.subr.mxu0 0.0
    %355 = vmatpush2.msra.mxu0 0.0
    %356 = vmatprep.subr.mxu0 0.0
    %357 = vmatpush2.msra.mxu0 0.0
    %358 = vmatprep.subr.mxu0 0.0
    %359 = vmatpush2.msra.mxu0 0.0
    %360 = vmatprep.subr.mxu0 0.0
    %361 = vmatpush2.msra.mxu0 0.0
    %362 = vmatprep.subr.mxu0 0.0
    %363 = vmatpush2.msra.mxu0 0.0
    %364 = vmatprep.mubr.f32.mxu0 0.0
    %365 = vmatmul.mubr.f32.gmra.mxu0 %v298
    %v366 = vpop.f32.mrf.mxu0
    %v367 = vadd.f32 %v294, %v366
    %v368 = vpop.f32.mrf.mxu0
    %369 = vdwg.mxu0
    %v371 = vlaneseq
    %v372 = vshrl.u32 %v371, 7
    %v373 = vsub.s32 0, %v372
    %v374 = vrot.slane %v55, %v373
    %377 = vrot.lane.b32.xlu0 %v285, 96
    %v378 = vpop.permute.xlu0 %377
    %v379 = vsel %vm296, %v378, 0
    %381 = vmatprep.subr.mxu0 0.0
    %382 = vmatpush1.msra.mxu0 0.0
    %383 = vmatprep.subr.mxu0 0.0
    %384 = vmatpush1.msra.mxu0 0.0
    %385 = vmatprep.subr.mxu0 0.0
    %386 = vmatpush1.msra.mxu0 0.0
    %387 = vmatprep.subr.mxu0 0.0
    %388 = vmatpush1.msra.mxu0 0.0
    %389 = vmatprep.subr.mxu0 0.0
    %390 = vmatpush1.msra.mxu0 0.0
    %391 = vmatprep.subr.mxu0 0.0
    %392 = vmatpush1.msra.mxu0 0.0
    %393 = vmatprep.subr.mxu0 0.0
    %394 = vmatpush1.msra.mxu0 0.0
    %395 = vmatprep.subr.mxu0 0.0
    %396 = vmatpush1.msra.mxu0 0.0
    %397 = vmatprep.subr.mxu0 0.0
    %398 = vmatpush1.msra.mxu0 0.0
    %399 = vmatprep.subr.mxu0 0.0
    %400 = vmatpush1.msra.mxu0 0.0
    %401 = vmatprep.subr.mxu0 0.0
    %402 = vmatpush1.msra.mxu0 0.0
    %403 = vmatprep.subr.mxu0 0.0
    %404 = vmatpush1.msra.mxu0 0.0
    %405 = vmatprep.subr.mxu0 0.0
    %406 = vmatpush1.msra.mxu0 %v53
    %407 = vmatprep.subr.mxu0 0.0
    %408 = vmatpush1.msra.mxu0 %v52
    %409 = vmatprep.subr.mxu0 0.0
    %410 = vmatpush1.msra.mxu0 %v51
    %411 = vmatprep.subr.mxu0 0.0
    %412 = vmatpush1.msra.mxu0 %v50
    %413 = vmatprep.subr.mxu0 0.0
    %414 = vmatpush2.msra.mxu0 0.0
    %415 = vmatprep.subr.mxu0 0.0
    %416 = vmatpush2.msra.mxu0 0.0
    %417 = vmatprep.subr.mxu0 0.0
    %418 = vmatpush2.msra.mxu0 0.0
    %419 = vmatprep.subr.mxu0 0.0
    %420 = vmatpush2.msra.mxu0 0.0
    %421 = vmatprep.subr.mxu0 0.0
    %422 = vmatpush2.msra.mxu0 0.0
    %423 = vmatprep.subr.mxu0 0.0
    %424 = vmatpush2.msra.mxu0 0.0
    %425 = vmatprep.subr.mxu0 0.0
    %426 = vmatpush2.msra.mxu0 0.0
    %427 = vmatprep.subr.mxu0 0.0
    %428 = vmatpush2.msra.mxu0 0.0
    %429 = vmatprep.subr.mxu0 0.0
    %430 = vmatpush2.msra.mxu0 0.0
    %431 = vmatprep.subr.mxu0 0.0
    %432 = vmatpush2.msra.mxu0 0.0
    %433 = vmatprep.subr.mxu0 0.0
    %434 = vmatpush2.msra.mxu0 0.0
    %435 = vmatprep.subr.mxu0 0.0
    %436 = vmatpush2.msra.mxu0 0.0
    %437 = vmatprep.subr.mxu0 0.0
    %438 = vmatpush2.msra.mxu0 0.0
    %439 = vmatprep.subr.mxu0 0.0
    %440 = vmatpush2.msra.mxu0 0.0
    %441 = vmatprep.subr.mxu0 0.0
    %442 = vmatpush2.msra.mxu0 0.0
    %443 = vmatprep.subr.mxu0 0.0
    %444 = vmatpush2.msra.mxu0 0.0
    %445 = vmatprep.mubr.f32.mxu0 0.0
    %446 = vmatmul.mubr.f32.gmra.mxu0 %v379
    %v447 = vpop.f32.mrf.mxu0
    %v448 = vadd.f32 %v374, %v447
    %v449 = vpop.f32.mrf.mxu0
    %450 = vdwg.mxu0
    %v451 = vadd.f32 %v367, %v448
    %v452 = vxor.u32 %v451, 2147483648
    %v453 = vmul.f32 %v452, 1.442695
    %v454 = vpow.pop %v453
    %v455 = vadd.f32 %v454, 1.0
    %v456 = vrcp.pop %v455
    %v457 = vmul.f32 1.0, %v456
    %459 = vrot.lane.b32.xlu0 %v448, 64
    %v460 = vpop.permute.xlu0 %459
    %v462 = vmul.f32 %v457, %v460
    %464 = vrot.lane.b32.xlu0 %v462, 64
    %v465 = vpop.permute.xlu0 %464
    %v467 = vadd.f32 %v367, %v465
    %v468 = vtanh.pop %v467
    %v469 = vsub.f32 1.0, %v457
    %471 = vrot.lane.b32.xlu0 %v468, 96
    %v472 = vpop.permute.xlu0 %471
    %v474 = vmul.f32 %v469, %v472
    %v475 = vmul.f32 %v457, %v285
    %v476 = vadd.f32 %v474, %v475
    %v477 = vstv %s286
    %vm478 = vcmp.lt.s32.totalorder %v477, %v35
    %v479 = vsel %vm478, 1, 0
    %v480 = vcvt.s32.f32 %v479
    %482 = vset.pattern.permute.xlu0 0
    %483 = vperm.xlu0 %482, %v480
    %v484 = vpop.permute.xlu0 %483
    %v486 = vmul.f32 %v484, %v476
    %v487 = vsub.f32 1.0, %v480
    %489 = vset.pattern.permute.xlu0 0
    %490 = vperm.xlu0 %489, %v487
    %v491 = vpop.permute.xlu0 %490
    %v493 = vmul.f32 %v491, %v285
    %v494 = vadd.f32 %v486, %v493
    %v495 = vmul.f32 %v484, %v494
    %497 = vrot.lane.b32.xlu0 %v495, 96
    %v498 = vpop.permute.xlu0 %497
    %s500 = scalar_lea.vmem [#allocation3], %s287
    %vm501 = vcmask 259072
    %502 = vst.msk [vmem:[%s500] sm:$0x3f] %vm501, %v498
  $region53: #{han_forward.8} parent=0 // loop_footer
    %s284 = sadd.s32 1, %s280
  $region54: #{han_forward.8} parent=0 // loop_footer_branch
    %279 = sbr.rel target = $region50
  $region55: #{han_forward.8} parent=0 // loop_exit
    _
  %v503 = vld [vmem:[#allocation2] sm:$0x3f]
  %v504 = vld [vmem:[#allocation2 + $0x8] sm:$0x3f]
  %v505 = vld [vmem:[#allocation2 + $0x10] sm:$0x3f]
  %v506 = vld [vmem:[#allocation2 + $0x18] sm:$0x3f]
  %v507 = vld [vmem:[#allocation2 + $0x20] sm:$0x3f]
  %v508 = vld [vmem:[#allocation2 + $0x28] sm:$0x3f]
  %v509 = vld [vmem:[#allocation2 + $0x30] sm:$0x3f]
  %v510 = vld [vmem:[#allocation2 + $0x38] sm:$0x3f]
  %vm511 = vcmask 259072
  %512 = vst.msk [vmem:[%s10] sm:$0x3f] %vm511, %v503
  %513 = vst.msk [vmem:[%s10 + $0x8] sm:$0x3f] %vm511, %v504
  %514 = vst.msk [vmem:[%s10 + $0x10] sm:$0x3f] %vm511, %v505
  %515 = vst.msk [vmem:[%s10 + $0x18] sm:$0x3f] %vm511, %v506
  %516 = vst.msk [vmem:[%s10 + $0x20] sm:$0x3f] %vm511, %v507
  %517 = vst.msk [vmem:[%s10 + $0x28] sm:$0x3f] %vm511, %v508
  %518 = vst.msk [vmem:[%s10 + $0x30] sm:$0x3f] %vm511, %v509
  %519 = vst.msk [vmem:[%s10 + $0x38] sm:$0x3f] %vm511, %v510
  %v520 = vld [vmem:[#allocation3] sm:$0x3f]
  %v521 = vld [vmem:[#allocation3 + $0x8] sm:$0x3f]
  %v522 = vld [vmem:[#allocation3 + $0x10] sm:$0x3f]
  %v523 = vld [vmem:[#allocation3 + $0x18] sm:$0x3f]
  %v524 = vld [vmem:[#allocation3 + $0x20] sm:$0x3f]
  %v525 = vld [vmem:[#allocation3 + $0x28] sm:$0x3f]
  %v526 = vld [vmem:[#allocation3 + $0x30] sm:$0x3f]
  %v527 = vld [vmem:[#allocation3 + $0x38] sm:$0x3f]
  %536 = vrot.lane.b32.xlu0 %v520, 32
  %v537 = vpop.permute.xlu0 %536
  %538 = vrot.lane.b32.xlu0 %v521, 32
  %v539 = vpop.permute.xlu0 %538
  %540 = vrot.lane.b32.xlu0 %v522, 32
  %v541 = vpop.permute.xlu0 %540
  %542 = vrot.lane.b32.xlu0 %v523, 32
  %v543 = vpop.permute.xlu0 %542
  %544 = vrot.lane.b32.xlu0 %v524, 32
  %v545 = vpop.permute.xlu0 %544
  %546 = vrot.lane.b32.xlu0 %v525, 32
  %v547 = vpop.permute.xlu0 %546
  %548 = vrot.lane.b32.xlu0 %v526, 32
  %v549 = vpop.permute.xlu0 %548
  %550 = vrot.lane.b32.xlu0 %v527, 32
  %v551 = vpop.permute.xlu0 %550
  %vm560 = vcmask 521472
  %561 = vst.msk [vmem:[%s10] sm:$0x3f] %vm560, %v537
  %562 = vst.msk [vmem:[%s10 + $0x8] sm:$0x3f] %vm560, %v539
  %563 = vst.msk [vmem:[%s10 + $0x10] sm:$0x3f] %vm560, %v541
  %564 = vst.msk [vmem:[%s10 + $0x18] sm:$0x3f] %vm560, %v543
  %565 = vst.msk [vmem:[%s10 + $0x20] sm:$0x3f] %vm560, %v545
  %566 = vst.msk [vmem:[%s10 + $0x28] sm:$0x3f] %vm560, %v547
  %567 = vst.msk [vmem:[%s10 + $0x30] sm:$0x3f] %vm560, %v549
  %568 = vst.msk [vmem:[%s10 + $0x38] sm:$0x3f] %vm560, %v551
  // Predicated region
  $region56: #{han_forward.8} parent=0 // pred_check
    _
  $region57: #{han_forward.8} parent=0 // pred_check_branch
    %570 = sbr.rel (0) target = $region59
  $region58: #{han_forward.8} parent=0 // pred_region
    _
  $region59: #{han_forward.8} parent=0 // pred_fallthru
    _
  // Predicated region
  $region60: #{han_forward.8} parent=0 // pred_check
    _
  $region61: #{han_forward.8} parent=0 // pred_check_branch
    %572 = sbr.rel (0) target = $region63
  $region62: #{han_forward.8} parent=0 // pred_region
    _
  $region63: #{han_forward.8} parent=0 // pred_fallthru
    _

// kernel: han_forward.11
$region0: #{han_forward.11}
  #allocation0 [shape = 'u32[]', space=smem, size = 0x4, offset = 0x4, fixed_abs, tag = 'smem constant byte address 0x4 - core index']
  #allocation1 [shape = 'u32[144,128]{1,0:T(1,128)}', space=vmem, size = 0x12000, scoped, tag = 'internal scratch']
  %s0 = inlined_call_operand.vmem [shape: s32[8,1], index: 0, kind: input, shape index: {}]
  %s1 = inlined_call_operand.vmem [shape: f32[6,64], index: 1, kind: input, shape index: {}]
  %s2 = inlined_call_operand.vmem [shape: f32[8,64], index: 2, kind: output, shape index: {}]
  %s3 = sld [smem:[#allocation0]]
  $region18: #{han_forward.11} parent=0
    _
  %s5 = ssub.s32 1, %s3
  %s6 = scalar_select 0, %s5, %s3
  // Predicated region
  $region2: #{han_forward.11} parent=0 // pred_check
    _
  $region3: #{han_forward.11} parent=0 // pred_check_branch
    %8 = sbr.rel (0) target = $region5
  $region4: #{han_forward.11} parent=0 // pred_region
    _
  $region5: #{han_forward.11} parent=0 // pred_fallthru
    _
  // Predicated region
  $region6: #{han_forward.11} parent=0 // pred_check
    _
  $region7: #{han_forward.11} parent=0 // pred_check_branch
    %10 = sbr.rel (0) target = $region9
  $region8: #{han_forward.11} parent=0 // pred_region
    _
  $region9: #{han_forward.11} parent=0 // pred_fallthru
    _
  %v11 = vld [vmem:[%s0] sm:$0xff]
  %v12 = vlaneseq
  %v13 = vand.u32 %v12, 127
  %v14 = vsub.s32 %v11, 1
  %15 = vset.pattern.permute.xlu0 0
  %16 = vperm.xlu0 %15, %v14
  %v17 = vpop.permute.xlu0 %16
  %vm18 = vcmp.eq.s32.totalorder %v13, %v17
  %vm19 = vcmp.gt.s32.totalorder %v11, 0
  %v20 = vsel %vm19, 1, 0
  %21 = vset.pattern.permute.xlu0 0
  %22 = vperm.xlu0 %21, %v20
  %v23 = vpop.permute.xlu0 %22
  %vm24 = vcmp.eq.s32.totalorder %v23, 1
  %vm25 = vmand %vm18, %vm24
  %v26 = vsel %vm25, 1, 0
  %v27 = vcvt.s32.f32 %v26
  %v28 = vld [vmem:[%s1] sm:$0x3f]
  %vm29 = vcmask 48128
  %v31 = vsel %vm29, %v27, 0
  %vm33 = vcmask 1045504
  %v35 = vsel %vm33, %v28, 0
  %37 = vmatprep.subr.mxu0 0.0
  %38 = vmatpush1.msra.mxu0 0.0
  %39 = vmatprep.subr.mxu0 0.0
  %40 = vmatpush1.msra.mxu0 0.0
  %41 = vmatprep.subr.mxu0 0.0
  %42 = vmatpush1.msra.mxu0 0.0
  %43 = vmatprep.subr.mxu0 0.0
  %44 = vmatpush1.msra.mxu0 0.0
  %45 = vmatprep.subr.mxu0 0.0
  %46 = vmatpush1.msra.mxu0 0.0
  %47 = vmatprep.subr.mxu0 0.0
  %48 = vmatpush1.msra.mxu0 0.0
  %49 = vmatprep.subr.mxu0 0.0
  %50 = vmatpush1.msra.mxu0 0.0
  %51 = vmatprep.subr.mxu0 0.0
  %52 = vmatpush1.msra.mxu0 0.0
  %53 = vmatprep.subr.mxu0 0.0
  %54 = vmatpush1.msra.mxu0 0.0
  %55 = vmatprep.subr.mxu0 0.0
  %56 = vmatpush1.msra.mxu0 0.0
  %57 = vmatprep.subr.mxu0 0.0
  %58 = vmatpush1.msra.mxu0 0.0
  %59 = vmatprep.subr.mxu0 0.0
  %60 = vmatpush1.msra.mxu0 0.0
  %61 = vmatprep.subr.mxu0 0.0
  %62 = vmatpush1.msra.mxu0 0.0
  %63 = vmatprep.subr.mxu0 0.0
  %64 = vmatpush1.msra.mxu0 0.0
  %65 = vmatprep.subr.mxu0 0.0
  %66 = vmatpush1.msra.mxu0 0.0
  %67 = vmatprep.subr.mxu0 0.0
  %68 = vmatpush1.msra.mxu0 %v35
  %69 = vmatprep.subr.mxu0 0.0
  %70 = vmatpush2.msra.mxu0 0.0
  %71 = vmatprep.subr.mxu0 0.0
  %72 = vmatpush2.msra.mxu0 0.0
  %73 = vmatprep.subr.mxu0 0.0
  %74 = vmatpush2.msra.mxu0 0.0
  %75 = vmatprep.subr.mxu0 0.0
  %76 = vmatpush2.msra.mxu0 0.0
  %77 = vmatprep.subr.mxu0 0.0
  %78 = vmatpush2.msra.mxu0 0.0
  %79 = vmatprep.subr.mxu0 0.0
  %80 = vmatpush2.msra.mxu0 0.0
  %81 = vmatprep.subr.mxu0 0.0
  %82 = vmatpush2.msra.mxu0 0.0
  %83 = vmatprep.subr.mxu0 0.0
  %84 = vmatpush2.msra.mxu0 0.0
  %85 = vmatprep.subr.mxu0 0.0
  %86 = vmatpush2.msra.mxu0 0.0
  %87 = vmatprep.subr.mxu0 0.0
  %88 = vmatpush2.msra.mxu0 0.0
  %89 = vmatprep.subr.mxu0 0.0
  %90 = vmatpush2.msra.mxu0 0.0
  %91 = vmatprep.subr.mxu0 0.0
  %92 = vmatpush2.msra.mxu0 0.0
  %93 = vmatprep.subr.mxu0 0.0
  %94 = vmatpush2.msra.mxu0 0.0
  %95 = vmatprep.subr.mxu0 0.0
  %96 = vmatpush2.msra.mxu0 0.0
  %97 = vmatprep.subr.mxu0 0.0
  %98 = vmatpush2.msra.mxu0 0.0
  %99 = vmatprep.subr.mxu0 0.0
  %100 = vmatpush2.msra.mxu0 0.0
  %101 = vmatprep.mubr.f32.mxu0 0.0
  %102 = vmatmul.mubr.f32.gmra.mxu0 %v31
  %v103 = vpop.f32.mrf.mxu0
  %v104 = vadd.f32 0.0, %v103
  %v105 = vpop.f32.mrf.mxu0
  %106 = vdwg.mxu0
  %vm107 = vcmask 523264
  %108 = vst.msk [vmem:[%s2] sm:$0xff] %vm107, %v104
  // Predicated region
  $region10: #{han_forward.11} parent=0 // pred_check
    _
  $region11: #{han_forward.11} parent=0 // pred_check_branch
    %110 = sbr.rel (0) target = $region13
  $region12: #{han_forward.11} parent=0 // pred_region
    _
  $region13: #{han_forward.11} parent=0 // pred_fallthru
    _
  // Predicated region
  $region14: #{han_forward.11} parent=0 // pred_check
    _
  $region15: #{han_forward.11} parent=0 // pred_check_branch
    %112 = sbr.rel (0) target = $region17
  $region16: #{han_forward.11} parent=0 // pred_region
    _
  $region17: #{han_forward.11} parent=0 // pred_fallthru
    _

// kernel: han_forward.12
$region0: #{han_forward.12}
  #allocation0 [shape = 'u32[]', space=smem, size = 0x4, offset = 0x4, fixed_abs, tag = 'smem constant byte address 0x4 - core index']
  #allocation1 [shape = 'u32[144,128]{1,0:T(1,128)}', space=vmem, size = 0x12000, scoped, tag = 'internal scratch']
  #allocation2 [shape = 'f32[4,2,32]{2,1,0:T(2,128)}', space=vmem, size = 0x1000, scoped, tag = 'scratch operand']
  #allocation3 [shape = 'f32[4,2,32]{2,1,0:T(2,128)}', space=vmem, size = 0x1000, scoped, tag = 'scratch operand']
  %s0 = inlined_call_operand.vmem [shape: f32[4,2,64], index: 0, kind: input, shape index: {}]
  %s1 = inlined_call_operand.vmem [shape: s32[2,1], index: 1, kind: input, shape index: {}]
  %s2 = inlined_call_operand.vmem [shape: f32[64,96], index: 2, kind: input, shape index: {}]
  %s3 = inlined_call_operand.vmem [shape: f32[32,96], index: 3, kind: input, shape index: {}]
  %s4 = inlined_call_operand.vmem [shape: f32[1,96], index: 4, kind: input, shape index: {}]
  %s5 = inlined_call_operand.vmem [shape: f32[1,96], index: 5, kind: input, shape index: {}]
  %s6 = inlined_call_operand.vmem [shape: f32[64,96], index: 6, kind: input, shape index: {}]
  %s7 = inlined_call_operand.vmem [shape: f32[32,96], index: 7, kind: input, shape index: {}]
  %s8 = inlined_call_operand.vmem [shape: f32[1,96], index: 8, kind: input, shape index: {}]
  %s9 = inlined_call_operand.vmem [shape: f32[1,96], index: 9, kind: input, shape index: {}]
  %s10 = inlined_call_operand.vmem [shape: f32[4,2,64], index: 10, kind: output, shape index: {}]
  %s11 = sld [smem:[#allocation0]]
  $region64: #{han_forward.12} parent=0
    _
  %s13 = ssub.s32 1, %s11
  %s14 = scalar_select 0, %s13, %s11
  // Predicated region
  $region2: #{han_forward.12} parent=0 // pred_check
    _
  $region3: #{han_forward.12} parent=0 // pred_check_branch
    %16 = sbr.rel (0) target = $region5
  $region4: #{han_forward.12} parent=0 // pred_region
    _
  $region5: #{han_forward.12} parent=0 // pred_fallthru
    _
  // Predicated region
  $region6: #{han_forward.12} parent=0 // pred_check
    _
  $region7: #{han_forward.12} parent=0 // pred_check_branch
    %18 = sbr.rel (0) target = $region9
  $region8: #{han_forward.12} parent=0 // pred_region
    _
  $region9: #{han_forward.12} parent=0 // pred_fallthru
    _
  // Predicated region
  $region10: #{han_forward.12} parent=0 // pred_check
    _
  $region11: #{han_forward.12} parent=0 // pred_check_branch
    %20 = sbr.rel (0) target = $region13
  $region12: #{han_forward.12} parent=0 // pred_region
    _
  $region13: #{han_forward.12} parent=0 // pred_fallthru
    _
  // Predicated region
  $region14: #{han_forward.12} parent=0 // pred_check
    _
  $region15: #{han_forward.12} parent=0 // pred_check_branch
    %22 = sbr.rel (0) target = $region17
  $region16: #{han_forward.12} parent=0 // pred_region
    _
  $region17: #{han_forward.12} parent=0 // pred_fallthru
    _
  // Predicated region
  $region18: #{han_forward.12} parent=0 // pred_check
    _
  $region19: #{han_forward.12} parent=0 // pred_check_branch
    %24 = sbr.rel (0) target = $region21
  $region20: #{han_forward.12} parent=0 // pred_region
    _
  $region21: #{han_forward.12} parent=0 // pred_fallthru
    _
  // Predicated region
  $region22: #{han_forward.12} parent=0 // pred_check
    _
  $region23: #{han_forward.12} parent=0 // pred_check_branch
    %26 = sbr.rel (0) target = $region25
  $region24: #{han_forward.12} parent=0 // pred_region
    _
  $region25: #{han_forward.12} parent=0 // pred_fallthru
    _
  // Predicated region
  $region26: #{han_forward.12} parent=0 // pred_check
    _
  $region27: #{han_forward.12} parent=0 // pred_check_branch
    %28 = sbr.rel (0) target = $region29
  $region28: #{han_forward.12} parent=0 // pred_region
    _
  $region29: #{han_forward.12} parent=0 // pred_fallthru
    _
  // Predicated region
  $region30: #{han_forward.12} parent=0 // pred_check
    _
  $region31: #{han_forward.12} parent=0 // pred_check_branch
    %30 = sbr.rel (0) target = $region33
  $region32: #{han_forward.12} parent=0 // pred_region
    _
  $region33: #{han_forward.12} parent=0 // pred_fallthru
    _
  // Predicated region
  $region34: #{han_forward.12} parent=0 // pred_check
    _
  $region35: #{han_forward.12} parent=0 // pred_check_branch
    %32 = sbr.rel (0) target = $region37
  $region36: #{han_forward.12} parent=0 // pred_region
    _
  $region37: #{han_forward.12} parent=0 // pred_fallthru
    _
  // Predicated region
  $region38: #{han_forward.12} parent=0 // pred_check
    _
  $region39: #{han_forward.12} parent=0 // pred_check_branch
    %34 = sbr.rel (0) target = $region41
  $region40: #{han_forward.12} parent=0 // pred_region
    _
  $region41: #{han_forward.12} parent=0 // pred_fallthru
    _
  %v35 = vld [vmem:[%s1] sm:$0x3]
  %v36 = vld [vmem:[%s2] sm:$0xff]
  %v37 = vld [vmem:[%s2 + $0x8] sm:$0xff]
  %v38 = vld [vmem:[%s2 + $0x10] sm:$0xff]
  %v39 = vld [vmem:[%s2 + $0x18] sm:$0xff]
  %v40 = vld [vmem:[%s2 + $0x20] sm:$0xff]
  %v41 = vld [vmem:[%s2 + $0x28] sm:$0xff]
  %v42 = vld [vmem:[%s2 + $0x30] sm:$0xff]
  %v43 = vld [vmem:[%s2 + $0x38] sm:$0xff]
  %v44 = vld [vmem:[%s3] sm:$0xff]
  %v45 = vld [vmem:[%s3 + $0x8] sm:$0xff]
  %v46 = vld [vmem:[%s3 + $0x10] sm:$0xff]
  %v47 = vld [vmem:[%s3 + $0x18] sm:$0xff]
  %v48 = vld [vmem:[%s4] sm:$0x1]
  %v49 = vld [vmem:[%s5] sm:$0x1]
  %v50 = vld [vmem:[%s6] sm:$0xff]
  %v51 = vld [vmem:[%s6 + $0x8] sm:$0xff]
  %v52 = vld [vmem:[%s6 + $0x10] sm:$0xff]
  %v53 = vld [vmem:[%s6 + $0x18] sm:$0xff]
  %v54 = vld [vmem:[%s6 + $0x20] sm:$0xff]
  %v55 = vld [vmem:[%s6 + $0x28] sm:$0xff]
  %v56 = vld [vmem:[%s6 + $0x30] sm:$0xff]
  %v57 = vld [vmem:[%s6 + $0x38] sm:$0xff]
  %v58 = vld [vmem:[%s7] sm:$0xff]
  %v59 = vld [vmem:[%s7 + $0x8] sm:$0xff]
  %v60 = vld [vmem:[%s7 + $0x10] sm:$0xff]
  %v61 = vld [vmem:[%s7 + $0x18] sm:$0xff]
  %v62 = vld [vmem:[%s8] sm:$0x1]
  %v63 = vld [vmem:[%s9] sm:$0x1]
  loop: start=0, step=1, limit=4
  $region42: #{han_forward.12} parent=0 // loop_pre_header
    _
  $region43: #{han_forward.12} parent=0 // loop_header
    %s65 = sphi 0, %s69
    %p66 = scmp.ge.s32.totalorder %s65, 4
    %v70 = vphi 0.0, %v279
  $region44: #{han_forward.12} parent=0 // loop_header_branch
    %68 = sbr.rel (%p66) target = $region48
  $region45: #{han_forward.12} parent=0 // loop_body
    %s71 = smul.u32 %s65, 2
    %s72 = scalar_lea.vmem %s0, %s71
    %v73 = vld [vmem:[%s72] sm:$0x3]
    %v75 = vlaneseq
    %v76 = vshrl.u32 %v75, 7
    %v77 = vsub.s32 0, %v76
    %v78 = vrot.slane %v48, %v77
    %vm80 = vcmask 523264
    %v82 = vsel %vm80, %v73, 0
    %84 = vmatprep.subr.mxu0 0.0
    %85 = vmatpush1.msra.mxu0 0.0
    %86 = vmatprep.subr.mxu0 0.0
    %87 = vmatpush1.msra.mxu0 0.0
    %88 = vmatprep.subr.mxu0 0.0
    %89 = vmatpush1.msra.mxu0 0.0
    %90 = vmatprep.subr.mxu0 0.0
    %91 = vmatpush1.msra.mxu0 0.0
    %92 = vmatprep.subr.mxu0 0.0
    %93 = vmatpush1.msra.mxu0 0.0
    %94 = vmatprep.subr.mxu0 0.0
    %95 = vmatpush1.msra.mxu0 0.0
    %96 = vmatprep.subr.mxu0 0.0
    %97 = vmatpush1.msra.mxu0 0.0
    %98 = vmatprep.subr.mxu0 0.0
    %99 = vmatpush1.msra.mxu0 0.0
    %100 = vmatprep.subr.mxu0 0.0
    %101 = vmatpush1.msra.mxu0 %v43
    %102 = vmatprep.subr.mxu0 0.0
    %103 = vmatpush1.msra.mxu0 %v42
    %104 = vmatprep.subr.mxu0 0.0
    %105 = vmatpush1.msra.mxu0 %v41
    %106 = vmatprep.subr.mxu0 0.0
    %107 = vmatpush1.msra.mxu0 %v40
    %108 = vmatprep.subr.mxu0 0.0
    %109 = vmatpush1.msra.mxu0 %v39
    %110 = vmatprep.subr.mxu0 0.0
    %111 = vmatpush1.msra.mxu0 %v38
    %112 = vmatprep.subr.mxu0 0.0
    %113 = vmatpush1.msra.mxu0 %v37
    %114 = vmatprep.subr.mxu0 0.0
    %115 = vmatpush1.msra.mxu0 %v36
    %116 = vmatprep.subr.mxu0 0.0
    %117 = vmatpush2.msra.mxu0 0.0
    %118 = vmatprep.subr.mxu0 0.0
    %119 = vmatpush2.msra.mxu0 0.0
    %120 = vmatprep.subr.mxu0 0.0
    %121 = vmatpush2.msra.mxu0 0.0
    %122 = vmatprep.subr.mxu0 0.0
    %123 = vmatpush2.msra.mxu0 0.0
    %124 = vmatprep.subr.mxu0 0.0
    %125 = vmatpush2.msra.mxu0 0.0
    %126 = vmatprep.subr.mxu0 0.0
    %127 = vmatpush2.msra.mxu0 0.0
    %128 = vmatprep.subr.mxu0 0.0
    %129 = vmatpush2.msra.mxu0 0.0
    %130 = vmatprep.subr.mxu0 0.0
    %131 = vmatpush2.msra.mxu0 0.0
    %132 = vmatprep.subr.mxu0 0.0
    %133 = vmatpush2.msra.mxu0 0.0
    %134 = vmatprep.subr.mxu0 0.0
    %135 = vmatpush2.msra.mxu0 0.0
    %136 = vmatprep.subr.mxu0 0.0
    %137 = vmatpush2.msra.mxu0 0.0
    %138 = vmatprep.subr.mxu0 0.0
    %139 = vmatpush2.msra.mxu0 0.0
    %140 = vmatprep.subr.mxu0 0.0
    %141 = vmatpush2.msra.mxu0 0.0
    %142 = vmatprep.subr.mxu0 0.0
    %143 = vmatpush2.msra.mxu0 0.0
    %144 = vmatprep.subr.mxu0 0.0
    %145 = vmatpush2.msra.mxu0 0.0
    %146 = vmatprep.subr.mxu0 0.0
    %147 = vmatpush2.msra.mxu0 0.0
    %148 = vmatprep.mubr.f32.mxu0 0.0
    %149 = vmatmul.mubr.f32.gmra.mxu0 %v82
    %v150 = vpop.f32.mrf.mxu0
    %v151 = vadd.f32 %v78, %v150
    %v152 = vpop.f32.mrf.mxu0
    %153 = vdwg.mxu0
    %v155 = vlaneseq
    %v156 = vshrl.u32 %v155, 7
    %v157 = vsub.s32 0, %v156
    %v158 = vrot.slane %v49, %v157
    %161 = vrot.lane.b32.xlu0 %v70, 96
    %v162 = vpop.permute.xlu0 %161
    %vm163 = vcmask 261120
    %v164 = vsel %vm163, %v162, 0
    %166 = vmatprep.subr.mxu0 0.0
    %167 = vmatpush1.msra.mxu0 0.0
    %168 = vmatprep.subr.mxu0 0.0
    %169 = vmatpush1.msra.mxu0 0.0
    %170 = vmatprep.subr.mxu0 0.0
    %171 = vmatpush1.msra.mxu0 0.0
    %172 = vmatprep.subr.mxu0 0.0
    %173 = vmatpush1.msra.mxu0 0.0
    %174 = vmatprep.subr.mxu0 0.0
    %175 = vmatpush1.msra.mxu0 0.0
    %176 = vmatprep.subr.mxu0 0.0
    %177 = vmatpush1.msra.mxu0 0.0
    %178 = vmatprep.subr.mxu0 0.0
    %179 = vmatpush1.msra.mxu0 0.0
    %180 = vmatprep.subr.mxu0 0.0
    %181 = vmatpush1.msra.mxu0 0.0
    %182 = vmatprep.subr.mxu0 0.0
    %183 = vmatpush1.msra.mxu0 0.0
    %184 = vmatprep.subr.mxu0 0.0
    %185 = vmatpush1.msra.mxu0 0.0
    %186 = vmatprep.subr.mxu0 0.0
    %187 = vmatpush1.msra.mxu0 0.0
    %188 = vmatprep.subr.mxu0 0.0
    %189 = vmatpush1.msra.mxu0 0.0
    %190 = vmatprep.subr.mxu0 0.0
    %191 = vmatpush1.msra.mxu0 %v47
    %192 = vmatprep.subr.mxu0 0.0
    %193 = vmatpush1.msra.mxu0 %v46
    %194 = vmatprep.subr.mxu0 0.0
    %195 = vmatpush1.msra.mxu0 %v45
    %196 = vmatprep.subr.mxu0 0.0
    %197 = vmatpush1.msra.mxu0 %v44
    %198 = vmatprep.subr.mxu0 0.0
    %199 = vmatpush2.msra.mxu0 0.0
    %200 = vmatprep.subr.mxu0 0.0
    %201 = vmatpush2.msra.mxu0 0.0
    %202 = vmatprep.subr.mxu0 0.0
    %203 = vmatpush2.msra.mxu0 0.0
    %204 = vmatprep.subr.mxu0 0.0
    %205 = vmatpush2.msra.mxu0 0.0
    %206 = vmatprep.subr.mxu0 0.0
    %207 = vmatpush2.msra.mxu0 0.0
    %208 = vmatprep.subr.mxu0 0.0
    %209 = vmatpush2.msra.mxu0 0.0
    %210 = vmatprep.subr.mxu0 0.0
    %211 = vmatpush2.msra.mxu0 0.0
    %212 = vmatprep.subr.mxu0 0.0
    %213 = vmatpush2.msra.mxu0 0.0
    %214 = vmatprep.subr.mxu0 0.0
    %215 = vmatpush2.msra.mxu0 0.0
    %216 = vmatprep.subr.mxu0 0.0
    %217 = vmatpush2.msra.mxu0 0.0
    %218 = vmatprep.subr.mxu0 0.0
    %219 = vmatpush2.msra.mxu0 0.0
    %220 = vmatprep.subr.mxu0 0.0
    %221 = vmatpush2.msra.mxu0 0.0
    %222 = vmatprep.subr.mxu0 0.0
    %223 = vmatpush2.msra.mxu0 0.0
    %224 = vmatprep.subr.mxu0 0.0
    %225 = vmatpush2.msra.mxu0 0.0
    %226 = vmatprep.subr.mxu0 0.0
    %227 = vmatpush2.msra.mxu0 0.0
    %228 = vmatprep.subr.mxu0 0.0
    %229 = vmatpush2.msra.mxu0 0.0
    %230 = vmatprep.mubr.f32.mxu0 0.0
    %231 = vmatmul.mubr.f32.gmra.mxu0 %v164
    %v232 = vpop.f32.mrf.mxu0
    %v233 = vadd.f32 %v158, %v232
    %v234 = vpop.f32.mrf.mxu0
    %235 = vdwg.mxu0
    %v236 = vadd.f32 %v151, %v233
    %v237 = vxor.u32 %v236, 2147483648
    %v238 = vmul.f32 %v237, 1.442695
    %v239 = vpow.pop %v238
    %v240 = vadd.f32 %v239, 1.0
    %v241 = vrcp.pop %v240
    %v242 = vmul.f32 1.0, %v241
    %244 = vrot.lane.b32.xlu0 %v233, 64
    %v245 = vpop.permute.xlu0 %244
    %v247 = vmul.f32 %v242, %v245
    %249 = vrot.lane.b32.xlu0 %v247, 64
    %v250 = vpop.permute.xlu0 %249
    %v252 = vadd.f32 %v151, %v250
    %v253 = vtanh.pop %v252
    %v254 = vsub.f32 1.0, %v242
    %256 = vrot.lane.b32.xlu0 %v253, 96
    %v257 = vpop.permute.xlu0 %256
    %v259 = vmul.f32 %v254, %v257
    %v260 = vmul.f32 %v242, %v70
    %v261 = vadd.f32 %v259, %v260
    %v262 = vstv %s65
    %vm263 = vcmp.lt.s32.totalorder %v262, %v35
    %v264 = vsel %vm263, 1, 0
    %v265 = vcvt.s32.f32 %v264
    %267 = vset.pattern.permute.xlu0 0
    %268 = vperm.xlu0 %267, %v265
    %v269 = vpop.permute.xlu0 %268
    %v271 = vmul.f32 %v269, %v261
    %v272 = vsub.f32 1.0, %v265
    %274 = vset.pattern.permute.xlu0 0
    %275 = vperm.xlu0 %274, %v272
    %v276 = vpop.permute.xlu0 %275
    %v278 = vmul.f32 %v276, %v70
    %v279 = vadd.f32 %v271, %v278
    %v280 = vmul.f32 %v269, %v279
    %282 = vrot.lane.b32.xlu0 %v280, 96
    %v283 = vpop.permute.xlu0 %282
    %s285 = scalar_lea.vmem [#allocation2], %s71
    %vm286 = vcmask 254976
    %287 = vst.msk [vmem:[%s285] sm:$0x3] %vm286, %v283
  $region46: #{han_forward.12} parent=0 // loop_footer
    %s69 = sadd.s32 1, %s65
  $region47: #{han_forward.12} parent=0 // loop_footer_branch
    %64 = sbr.rel target = $region43
  $region48: #{han_forward.12} parent=0 // loop_exit
    _
  loop: start=0, step=1, limit=4
  $region49: #{han_forward.12} parent=0 // loop_pre_header
    _
  $region50: #{han_forward.12} parent=0 // loop_header
    %s289 = sphi 0, %s293
    %p290 = scmp.ge.s32.totalorder %s289, 4
    %v294 = vphi 0.0, %v504
  $region51: #{han_forward.12} parent=0 // loop_header_branch
    %292 = sbr.rel (%p290) target = $region55
  $region52: #{han_forward.12} parent=0 // loop_body
    %s295 = ssub.s32 3, %s289
    %s296 = smul.u32 %s295, 2
    %s297 = scalar_lea.vmem %s0, %s296
    %v298 = vld [vmem:[%s297] sm:$0x3]
    %v300 = vlaneseq
    %v301 = vshrl.u32 %v300, 7
    %v302 = vsub.s32 0, %v301
    %v303 = vrot.slane %v62, %v302
    %vm305 = vcmask 523264
    %v307 = vsel %vm305, %v298, 0
    %309 = vmatprep.subr.mxu0 0.0
    %310 = vmatpush1.msra.mxu0 0.0
    %311 = vmatprep.subr.mxu0 0.0
    %312 = vmatpush1.msra.mxu0 0.0
    %313 = vmatprep.subr.mxu0 0.0
    %314 = vmatpush1.msra.mxu0 0.0
    %315 = vmatprep.subr.mxu0 0.0
    %316 = vmatpush1.msra.mxu0 0.0
    %317 = vmatprep.subr.mxu0 0.0
    %318 = vmatpush1.msra.mxu0 0.0
    %319 = vmatprep.subr.mxu0 0.0
    %320 = vmatpush1.msra.mxu0 0.0
    %321 = vmatprep.subr.mxu0 0.0
    %322 = vmatpush1.msra.mxu0 0.0
    %323 = vmatprep.subr.mxu0 0.0
    %324 = vmatpush1.msra.mxu0 0.0
    %325 = vmatprep.subr.mxu0 0.0
    %326 = vmatpush1.msra.mxu0 %v57
    %327 = vmatprep.subr.mxu0 0.0
    %328 = vmatpush1.msra.mxu0 %v56
    %329 = vmatprep.subr.mxu0 0.0
    %330 = vmatpush1.msra.mxu0 %v55
    %331 = vmatprep.subr.mxu0 0.0
    %332 = vmatpush1.msra.mxu0 %v54
    %333 = vmatprep.subr.mxu0 0.0
    %334 = vmatpush1.msra.mxu0 %v53
    %335 = vmatprep.subr.mxu0 0.0
    %336 = vmatpush1.msra.mxu0 %v52
    %337 = vmatprep.subr.mxu0 0.0
    %338 = vmatpush1.msra.mxu0 %v51
    %339 = vmatprep.subr.mxu0 0.0
    %340 = vmatpush1.msra.mxu0 %v50
    %341 = vmatprep.subr.mxu0 0.0
    %342 = vmatpush2.msra.mxu0 0.0
    %343 = vmatprep.subr.mxu0 0.0
    %344 = vmatpush2.msra.mxu0 0.0
    %345 = vmatprep.subr.mxu0 0.0
    %346 = vmatpush2.msra.mxu0 0.0
    %347 = vmatprep.subr.mxu0 0.0
    %348 = vmatpush2.msra.mxu0 0.0
    %349 = vmatprep.subr.mxu0 0.0
    %350 = vmatpush2.msra.mxu0 0.0
    %351 = vmatprep.subr.mxu0 0.0
    %352 = vmatpush2.msra.mxu0 0.0
    %353 = vmatprep.subr.mxu0 0.0
    %354 = vmatpush2.msra.mxu0 0.0
    %355 = vmatprep.subr.mxu0 0.0
    %356 = vmatpush2.msra.mxu0 0.0
    %357 = vmatprep.subr.mxu0 0.0
    %358 = vmatpush2.msra.mxu0 0.0
    %359 = vmatprep.subr.mxu0 0.0
    %360 = vmatpush2.msra.mxu0 0.0
    %361 = vmatprep.subr.mxu0 0.0
    %362 = vmatpush2.msra.mxu0 0.0
    %363 = vmatprep.subr.mxu0 0.0
    %364 = vmatpush2.msra.mxu0 0.0
    %365 = vmatprep.subr.mxu0 0.0
    %366 = vmatpush2.msra.mxu0 0.0
    %367 = vmatprep.subr.mxu0 0.0
    %368 = vmatpush2.msra.mxu0 0.0
    %369 = vmatprep.subr.mxu0 0.0
    %370 = vmatpush2.msra.mxu0 0.0
    %371 = vmatprep.subr.mxu0 0.0
    %372 = vmatpush2.msra.mxu0 0.0
    %373 = vmatprep.mubr.f32.mxu0 0.0
    %374 = vmatmul.mubr.f32.gmra.mxu0 %v307
    %v375 = vpop.f32.mrf.mxu0
    %v376 = vadd.f32 %v303, %v375
    %v377 = vpop.f32.mrf.mxu0
    %378 = vdwg.mxu0
    %v380 = vlaneseq
    %v381 = vshrl.u32 %v380, 7
    %v382 = vsub.s32 0, %v381
    %v383 = vrot.slane %v63, %v382
    %386 = vrot.lane.b32.xlu0 %v294, 96
    %v387 = vpop.permute.xlu0 %386
    %vm388 = vcmask 261120
    %v389 = vsel %vm388, %v387, 0
    %391 = vmatprep.subr.mxu0 0.0
    %392 = vmatpush1.msra.mxu0 0.0
    %393 = vmatprep.subr.mxu0 0.0
    %394 = vmatpush1.msra.mxu0 0.0
    %395 = vmatprep.subr.mxu0 0.0
    %396 = vmatpush1.msra.mxu0 0.0
    %397 = vmatprep.subr.mxu0 0.0
    %398 = vmatpush1.msra.mxu0 0.0
    %399 = vmatprep.subr.mxu0 0.0
    %400 = vmatpush1.msra.mxu0 0.0
    %401 = vmatprep.subr.mxu0 0.0
    %402 = vmatpush1.msra.mxu0 0.0
    %403 = vmatprep.subr.mxu0 0.0
    %404 = vmatpush1.msra.mxu0 0.0
    %405 = vmatprep.subr.mxu0 0.0
    %406 = vmatpush1.msra.mxu0 0.0
    %407 = vmatprep.subr.mxu0 0.0
    %408 = vmatpush1.msra.mxu0 0.0
    %409 = vmatprep.subr.mxu0 0.0
    %410 = vmatpush1.msra.mxu0 0.0
    %411 = vmatprep.subr.mxu0 0.0
    %412 = vmatpush1.msra.mxu0 0.0
    %413 = vmatprep.subr.mxu0 0.0
    %414 = vmatpush1.msra.mxu0 0.0
    %415 = vmatprep.subr.mxu0 0.0
    %416 = vmatpush1.msra.mxu0 %v61
    %417 = vmatprep.subr.mxu0 0.0
    %418 = vmatpush1.msra.mxu0 %v60
    %419 = vmatprep.subr.mxu0 0.0
    %420 = vmatpush1.msra.mxu0 %v59
    %421 = vmatprep.subr.mxu0 0.0
    %422 = vmatpush1.msra.mxu0 %v58
    %423 = vmatprep.subr.mxu0 0.0
    %424 = vmatpush2.msra.mxu0 0.0
    %425 = vmatprep.subr.mxu0 0.0
    %426 = vmatpush2.msra.mxu0 0.0
    %427 = vmatprep.subr.mxu0 0.0
    %428 = vmatpush2.msra.mxu0 0.0
    %429 = vmatprep.subr.mxu0 0.0
    %430 = vmatpush2.msra.mxu0 0.0
    %431 = vmatprep.subr.mxu0 0.0
    %432 = vmatpush2.msra.mxu0 0.0
    %433 = vmatprep.subr.mxu0 0.0
    %434 = vmatpush2.msra.mxu0 0.0
    %435 = vmatprep.subr.mxu0 0.0
    %436 = vmatpush2.msra.mxu0 0.0
    %437 = vmatprep.subr.mxu0 0.0
    %438 = vmatpush2.msra.mxu0 0.0
    %439 = vmatprep.subr.mxu0 0.0
    %440 = vmatpush2.msra.mxu0 0.0
    %441 = vmatprep.subr.mxu0 0.0
    %442 = vmatpush2.msra.mxu0 0.0
    %443 = vmatprep.subr.mxu0 0.0
    %444 = vmatpush2.msra.mxu0 0.0
    %445 = vmatprep.subr.mxu0 0.0
    %446 = vmatpush2.msra.mxu0 0.0
    %447 = vmatprep.subr.mxu0 0.0
    %448 = vmatpush2.msra.mxu0 0.0
    %449 = vmatprep.subr.mxu0 0.0
    %450 = vmatpush2.msra.mxu0 0.0
    %451 = vmatprep.subr.mxu0 0.0
    %452 = vmatpush2.msra.mxu0 0.0
    %453 = vmatprep.subr.mxu0 0.0
    %454 = vmatpush2.msra.mxu0 0.0
    %455 = vmatprep.mubr.f32.mxu0 0.0
    %456 = vmatmul.mubr.f32.gmra.mxu0 %v389
    %v457 = vpop.f32.mrf.mxu0
    %v458 = vadd.f32 %v383, %v457
    %v459 = vpop.f32.mrf.mxu0
    %460 = vdwg.mxu0
    %v461 = vadd.f32 %v376, %v458
    %v462 = vxor.u32 %v461, 2147483648
    %v463 = vmul.f32 %v462, 1.442695
    %v464 = vpow.pop %v463
    %v465 = vadd.f32 %v464, 1.0
    %v466 = vrcp.pop %v465
    %v467 = vmul.f32 1.0, %v466
    %469 = vrot.lane.b32.xlu0 %v458, 64
    %v470 = vpop.permute.xlu0 %469
    %v472 = vmul.f32 %v467, %v470
    %474 = vrot.lane.b32.xlu0 %v472, 64
    %v475 = vpop.permute.xlu0 %474
    %v477 = vadd.f32 %v376, %v475
    %v478 = vtanh.pop %v477
    %v479 = vsub.f32 1.0, %v467
    %481 = vrot.lane.b32.xlu0 %v478, 96
    %v482 = vpop.permute.xlu0 %481
    %v484 = vmul.f32 %v479, %v482
    %v485 = vmul.f32 %v467, %v294
    %v486 = vadd.f32 %v484, %v485
    %v487 = vstv %s295
    %vm488 = vcmp.lt.s32.totalorder %v487, %v35
    %v489 = vsel %vm488, 1, 0
    %v490 = vcvt.s32.f32 %v489
    %492 = vset.pattern.permute.xlu0 0
    %493 = vperm.xlu0 %492, %v490
    %v494 = vpop.permute.xlu0 %493
    %v496 = vmul.f32 %v494, %v486
    %v497 = vsub.f32 1.0, %v490
    %499 = vset.pattern.permute.xlu0 0
    %500 = vperm.xlu0 %499, %v497
    %v501 = vpop.permute.xlu0 %500
    %v503 = vmul.f32 %v501, %v294
    %v504 = vadd.f32 %v496, %v503
    %v505 = vmul.f32 %v494, %v504
    %507 = vrot.lane.b32.xlu0 %v505, 96
    %v508 = vpop.permute.xlu0 %507
    %s510 = scalar_lea.vmem [#allocation3], %s296
    %vm511 = vcmask 254976
    %512 = vst.msk [vmem:[%s510] sm:$0x3] %vm511, %v508
  $region53: #{han_forward.12} parent=0 // loop_footer
    %s293 = sadd.s32 1, %s289
  $region54: #{han_forward.12} parent=0 // loop_footer_branch
    %288 = sbr.rel target = $region50
  $region55: #{han_forward.12} parent=0 // loop_exit
    _
  %v513 = vld [vmem:[#allocation2] sm:$0x3]
  %v514 = vld [vmem:[#allocation2 + $0x2] sm:$0x3]
  %v515 = vld [vmem:[#allocation2 + $0x4] sm:$0x3]
  %v516 = vld [vmem:[#allocation2 + $0x6] sm:$0x3]
  %vm517 = vcmask 254976
  %518 = vst.msk [vmem:[%s10] sm:$0x3] %vm517, %v513
  %519 = vst.msk [vmem:[%s10 + $0x2] sm:$0x3] %vm517, %v514
  %520 = vst.msk [vmem:[%s10 + $0x4] sm:$0x3] %vm517, %v515
  %521 = vst.msk [vmem:[%s10 + $0x6] sm:$0x3] %vm517, %v516
  %v522 = vld [vmem:[#allocation3] sm:$0x3]
  %v523 = vld [vmem:[#allocation3 + $0x2] sm:$0x3]
  %v524 = vld [vmem:[#allocation3 + $0x4] sm:$0x3]
  %v525 = vld [vmem:[#allocation3 + $0x6] sm:$0x3]
  %530 = vrot.lane.b32.xlu0 %v522, 32
  %v531 = vpop.permute.xlu0 %530
  %532 = vrot.lane.b32.xlu0 %v523, 32
  %v533 = vpop.permute.xlu0 %532
  %534 = vrot.lane.b32.xlu0 %v524, 32
  %v535 = vpop.permute.xlu0 %534
  %536 = vrot.lane.b32.xlu0 %v525, 32
  %v537 = vpop.permute.xlu0 %536
  %vm542 = vcmask 517376
  %543 = vst.msk [vmem:[%s10] sm:$0x3] %vm542, %v531
  %544 = vst.msk [vmem:[%s10 + $0x2] sm:$0x3] %vm542, %v533
  %545 = vst.msk [vmem:[%s10 + $0x4] sm:$0x3] %vm542, %v535
  %546 = vst.msk [vmem:[%s10 + $0x6] sm:$0x3] %vm542, %v537
  // Predicated region
  $region56: #{han_forward.12} parent=0 // pred_check
    _
  $region57: #{han_forward.12} parent=0 // pred_check_branch
    %548 = sbr.rel (0) target = $region59
  $region58: #{han_forward.12} parent=0 // pred_region
    _
  $region59: #{han_forward.12} parent=0 // pred_fallthru
    _
  // Predicated region
  $region60: #{han_forward.12} parent=0 // pred_check
    _
  $region61: #{han_forward.12} parent=0 // pred_check_branch
    %550 = sbr.rel (0) target = $region63
  $region62: #{han_forward.12} parent=0 // pred_region
    _
  $region63: #{han_forward.12} parent=0 // pred_fallthru
    _

// kernel: han_forward.13
$region0: #{han_forward.13}
  #allocation0 [shape = 'u32[]', space=smem, size = 0x4, offset = 0x4, fixed_abs, tag = 'smem constant byte address 0x4 - core index']
  #allocation1 [shape = 'u32[144,128]{1,0:T(1,128)}', space=vmem, size = 0x12000, scoped, tag = 'internal scratch']
  #allocation2 [shape = 'f32[1,1]{1,0:T(1,128)S(1)}', space=vmem, size = 0x200, scoped, tag = 'scoped memory for han_forward.13']
  #allocation3 [shape = 'f32[1,1]{1,0:T(1,128)S(1)}', space=vmem, size = 0x200, scoped, tag = 'scoped memory for han_forward.13']
  %s0 = inlined_call_operand.vmem [shape: f32[8,64], index: 0, kind: input, shape index: {}]
  %s1 = inlined_call_operand.vmem [shape: s32[2,1], index: 1, kind: input, shape index: {}]
  %s2 = inlined_call_operand.vmem [shape: f32[8,2], index: 2, kind: input, shape index: {}]
  %s3 = inlined_call_operand.vmem [shape: f32[2,8], index: 3, kind: input, shape index: {}]
  %s4 = inlined_call_operand.vmem [shape: f32[8,1], index: 4, kind: input, shape index: {}]
  %s5 = inlined_call_operand.vmem [shape: f32[64,64], index: 5, kind: input, shape index: {}]
  %s6 = inlined_call_operand.vmem [shape: f32[1,64], index: 6, kind: input, shape index: {}]
  %s7 = inlined_call_operand.vmem [shape: f32[64,1], index: 7, kind: input, shape index: {}]
  %s8 = inlined_call_operand.<no memory space> [shape: f32[1,1], index: 8, kind: input, shape index: {}]
  %s9 = inlined_call_operand.vmem [shape: f32[64,1], index: 9, kind: input, shape index: {}]
  %s10 = inlined_call_operand.<no memory space> [shape: f32[1,1], index: 10, kind: input, shape index: {}]
  %s11 = inlined_call_operand.vmem [shape: f32[2,1], index: 11, kind: output, shape index: {}]
  %s12 = sld [smem:[#allocation0]]
  $region54: #{han_forward.13} parent=0
    _
  %s14 = ssub.s32 1, %s12
  %s15 = scalar_select 0, %s14, %s12
  %v16 = vstv %s8
  %17 = vst [vmem:[#allocation2] sm:$0x1] %v16
  %v18 = vstv %s10
  %19 = vst [vmem:[#allocation3] sm:$0x1] %v18
  // Predicated region
  $region2: #{han_forward.13} parent=0 // pred_check
    _
  $region3: #{han_forward.13} parent=0 // pred_check_branch
    %21 = sbr.rel (0) target = $region5
  $region4: #{han_forward.13} parent=0 // pred_region
    _
  $region5: #{han_forward.13} parent=0 // pred_fallthru
    _
  // Predicated region
  $region6: #{han_forward.13} parent=0 // pred_check
    _
  $region7: #{han_forward.13} parent=0 // pred_check_branch
    %23 = sbr.rel (0) target = $region9
  $region8: #{han_forward.13} parent=0 // pred_region
    _
  $region9: #{han_forward.13} parent=0 // pred_fallthru
    _
  // Predicated region
  $region10: #{han_forward.13} parent=0 // pred_check
    _
  $region11: #{han_forward.13} parent=0 // pred_check_branch
    %25 = sbr.rel (0) target = $region13
  $region12: #{han_forward.13} parent=0 // pred_region
    _
  $region13: #{han_forward.13} parent=0 // pred_fallthru
    _
  // Predicated region
  $region14: #{han_forward.13} parent=0 // pred_check
    _
  $region15: #{han_forward.13} parent=0 // pred_check_branch
    %27 = sbr.rel (0) target = $region17
  $region16: #{han_forward.13} parent=0 // pred_region
    _
  $region17: #{han_forward.13} parent=0 // pred_fallthru
    _
  // Predicated region
  $region18: #{han_forward.13} parent=0 // pred_check
    _
  $region19: #{han_forward.13} parent=0 // pred_check_branch
    %29 = sbr.rel (0) target = $region21
  $region20: #{han_forward.13} parent=0 // pred_region
    _
  $region21: #{han_forward.13} parent=0 // pred_fallthru
    _
  // Predicated region
  $region22: #{han_forward.13} parent=0 // pred_check
    _
  $region23: #{han_forward.13} parent=0 // pred_check_branch
    %31 = sbr.rel (0) target = $region25
  $region24: #{han_forward.13} parent=0 // pred_region
    _
  $region25: #{han_forward.13} parent=0 // pred_fallthru
    _
  // Predicated region
  $region26: #{han_forward.13} parent=0 // pred_check
    _
  $region27: #{han_forward.13} parent=0 // pred_check_branch
    %33 = sbr.rel (0) target = $region29
  $region28: #{han_forward.13} parent=0 // pred_region
    _
  $region29: #{han_forward.13} parent=0 // pred_fallthru
    _
  // Predicated region
  $region30: #{han_forward.13} parent=0 // pred_check
    _
  $region31: #{han_forward.13} parent=0 // pred_check_branch
    %35 = sbr.rel (0) target = $region33
  $region32: #{han_forward.13} parent=0 // pred_region
    _
  $region33: #{han_forward.13} parent=0 // pred_fallthru
    _
  // Predicated region
  $region34: #{han_forward.13} parent=0 // pred_check
    _
  $region35: #{han_forward.13} parent=0 // pred_check_branch
    %37 = sbr.rel (0) target = $region37
  $region36: #{han_forward.13} parent=0 // pred_region
    _
  $region37: #{han_forward.13} parent=0 // pred_fallthru
    _
  // Predicated region
  $region38: #{han_forward.13} parent=0 // pred_check
    _
  $region39: #{han_forward.13} parent=0 // pred_check_branch
    %39 = sbr.rel (0) target = $region41
  $region40: #{han_forward.13} parent=0 // pred_region
    _
  $region41: #{han_forward.13} parent=0 // pred_fallthru
    _
  // Predicated region
  $region42: #{han_forward.13} parent=0 // pred_check
    _
  $region43: #{han_forward.13} parent=0 // pred_check_branch
    %41 = sbr.rel (0) target = $region45
  $region44: #{han_forward.13} parent=0 // pred_region
    _
  $region45: #{han_forward.13} parent=0 // pred_fallthru
    _
  %v42 = vld [vmem:[%s0] sm:$0xff]
  %v43 = vld [vmem:[%s5] sm:$0xff]
  %v44 = vld [vmem:[%s5 + $0x8] sm:$0xff]
  %v45 = vld [vmem:[%s5 + $0x10] sm:$0xff]
  %v46 = vld [vmem:[%s5 + $0x18] sm:$0xff]
  %v47 = vld [vmem:[%s5 + $0x20] sm:$0xff]
  %v48 = vld [vmem:[%s5 + $0x28] sm:$0xff]
  %v49 = vld [vmem:[%s5 + $0x30] sm:$0xff]
  %v50 = vld [vmem:[%s5 + $0x38] sm:$0xff]
  %v51 = vld [vmem:[%s6] sm:$0x1]
  %v53 = vlaneseq
  %v54 = vshrl.u32 %v53, 7
  %v55 = vsub.s32 0, %v54
  %v56 = vrot.slane %v51, %v55
  %vm58 = vcmask 523264
  %v60 = vsel %vm58, %v42, 0
  %62 = vmatprep.subr.mxu0 0.0
  %63 = vmatpush1.msra.mxu0 0.0
  %64 = vmatprep.subr.mxu0 0.0
  %65 = vmatpush1.msra.mxu0 0.0
  %66 = vmatprep.subr.mxu0 0.0
  %67 = vmatpush1.msra.mxu0 0.0
  %68 = vmatprep.subr.mxu0 0.0
  %69 = vmatpush1.msra.mxu0 0.0
  %70 = vmatprep.subr.mxu0 0.0
  %71 = vmatpush1.msra.mxu0 0.0
  %72 = vmatprep.subr.mxu0 0.0
  %73 = vmatpush1.msra.mxu0 0.0
  %74 = vmatprep.subr.mxu0 0.0
  %75 = vmatpush1.msra.mxu0 0.0
  %76 = vmatprep.subr.mxu0 0.0
  %77 = vmatpush1.msra.mxu0 0.0
  %78 = vmatprep.subr.mxu0 0.0
  %79 = vmatpush1.msra.mxu0 %v50
  %80 = vmatprep.subr.mxu0 0.0
  %81 = vmatpush1.msra.mxu0 %v49
  %82 = vmatprep.subr.mxu0 0.0
  %83 = vmatpush1.msra.mxu0 %v48
  %84 = vmatprep.subr.mxu0 0.0
  %85 = vmatpush1.msra.mxu0 %v47
  %86 = vmatprep.subr.mxu0 0.0
  %87 = vmatpush1.msra.mxu0 %v46
  %88 = vmatprep.subr.mxu0 0.0
  %89 = vmatpush1.msra.mxu0 %v45
  %90 = vmatprep.subr.mxu0 0.0
  %91 = vmatpush1.msra.mxu0 %v44
  %92 = vmatprep.subr.mxu0 0.0
  %93 = vmatpush1.msra.mxu0 %v43
  %94 = vmatprep.subr.mxu0 0.0
  %95 = vmatpush2.msra.mxu0 0.0
  %96 = vmatprep.subr.mxu0 0.0
  %97 = vmatpush2.msra.mxu0 0.0
  %98 = vmatprep.subr.mxu0 0.0
  %99 = vmatpush2.msra.mxu0 0.0
  %100 = vmatprep.subr.mxu0 0.0
  %101 = vmatpush2.msra.mxu0 0.0
  %102 = vmatprep.subr.mxu0 0.0
  %103 = vmatpush2.msra.mxu0 0.0
  %104 = vmatprep.subr.mxu0 0.0
  %105 = vmatpush2.msra.mxu0 0.0
  %106 = vmatprep.subr.mxu0 0.0
  %107 = vmatpush2.msra.mxu0 0.0
  %108 = vmatprep.subr.mxu0 0.0
  %109 = vmatpush2.msra.mxu0 0.0
  %110 = vmatprep.subr.mxu0 0.0
  %111 = vmatpush2.msra.mxu0 0.0
  %112 = vmatprep.subr.mxu0 0.0
  %113 = vmatpush2.msra.mxu0 0.0
  %114 = vmatprep.subr.mxu0 0.0
  %115 = vmatpush2.msra.mxu0 0.0
  %116 = vmatprep.subr.mxu0 0.0
  %117 = vmatpush2.msra.mxu0 0.0
  %118 = vmatprep.subr.mxu0 0.0
  %119 = vmatpush2.msra.mxu0 0.0
  %120 = vmatprep.subr.mxu0 0.0
  %121 = vmatpush2.msra.mxu0 0.0
  %122 = vmatprep.subr.mxu0 0.0
  %123 = vmatpush2.msra.mxu0 0.0
  %124 = vmatprep.subr.mxu0 0.0
  %125 = vmatpush2.msra.mxu0 0.0
  %126 = vmatprep.mubr.f32.mxu0 0.0
  %127 = vmatmul.mubr.f32.gmra.mxu0 %v60
  %v128 = vpop.f32.mrf.mxu0
  %v129 = vadd.f32 %v56, %v128
  %v130 = vpop.f32.mrf.mxu0
  %131 = vdwg.mxu0
  %v132 = vtanh.pop %v129
  %v133 = vld [vmem:[%s7] sm:$0xff]
  %v134 = vld [vmem:[%s7 + $0x8] sm:$0xff]
  %v135 = vld [vmem:[%s7 + $0x10] sm:$0xff]
  %v136 = vld [vmem:[%s7 + $0x18] sm:$0xff]
  %v137 = vld [vmem:[%s7 + $0x20] sm:$0xff]
  %v138 = vld [vmem:[%s7 + $0x28] sm:$0xff]
  %v139 = vld [vmem:[%s7 + $0x30] sm:$0xff]
  %v140 = vld [vmem:[%s7 + $0x38] sm:$0xff]
  %v141 = vld [vmem:[#allocation2] sm:$0x1]
  %v143 = vlaneseq
  %v144 = vshrl.u32 %v143, 7
  %v145 = vsub.s32 0, %v144
  %v146 = vrot.slane %v141, %v145
  %v149 = vsel %vm58, %v132, 0
  %151 = vmatprep.subr.mxu0 0.0
  %152 = vmatpush1.msra.mxu0 0.0
  %153 = vmatprep.subr.mxu0 0.0
  %154 = vmatpush1.msra.mxu0 0.0
  %155 = vmatprep.subr.mxu0 0.0
  %156 = vmatpush1.msra.mxu0 0.0
  %157 = vmatprep.subr.mxu0 0.0
  %158 = vmatpush1.msra.mxu0 0.0
  %159 = vmatprep.subr.mxu0 0.0
  %160 = vmatpush1.msra.mxu0 0.0
  %161 = vmatprep.subr.mxu0 0.0
  %162 = vmatpush1.msra.mxu0 0.0
  %163 = vmatprep.subr.mxu0 0.0
  %164 = vmatpush1.msra.mxu0 0.0
  %165 = vmatprep.subr.mxu0 0.0
  %166 = vmatpush1.msra.mxu0 0.0
  %167 = vmatprep.subr.mxu0 0.0
  %168 = vmatpush1.msra.mxu0 %v140
  %169 = vmatprep.subr.mxu0 0.0
  %170 = vmatpush1.msra.mxu0 %v139
  %171 = vmatprep.subr.mxu0 0.0
  %172 = vmatpush1.msra.mxu0 %v138
  %173 = vmatprep.subr.mxu0 0.0
  %174 = vmatpush1.msra.mxu0 %v137
  %175 = vmatprep.subr.mxu0 0.0
  %176 = vmatpush1.msra.mxu0 %v136
  %177 = vmatprep.subr.mxu0 0.0
  %178 = vmatpush1.msra.mxu0 %v135
  %179 = vmatprep.subr.mxu0 0.0
  %180 = vmatpush1.msra.mxu0 %v134
  %181 = vmatprep.subr.mxu0 0.0
  %182 = vmatpush1.msra.mxu0 %v133
  %183 = vmatprep.subr.mxu0 0.0
  %184 = vmatpush2.msra.mxu0 0.0
  %185 = vmatprep.subr.mxu0 0.0
  %186 = vmatpush2.msra.mxu0 0.0
  %187 = vmatprep.subr.mxu0 0.0
  %188 = vmatpush2.msra.mxu0 0.0
  %189 = vmatprep.subr.mxu0 0.0
  %190 = vmatpush2.msra.mxu0 0.0
  %191 = vmatprep.subr.mxu0 0.0
  %192 = vmatpush2.msra.mxu0 0.0
  %193 = vmatprep.subr.mxu0 0.0
  %194 = vmatpush2.msra.mxu0 0.0
  %195 = vmatprep.subr.mxu0 0.0
  %196 = vmatpush2.msra.mxu0 0.0
  %197 = vmatprep.subr.mxu0 0.0
  %198 = vmatpush2.msra.mxu0 0.0
  %199 = vmatprep.subr.mxu0 0.0
  %200 = vmatpush2.msra.mxu0 0.0
  %201 = vmatprep.subr.mxu0 0.0
  %202 = vmatpush2.msra.mxu0 0.0
  %203 = vmatprep.subr.mxu0 0.0
  %204 = vmatpush2.msra.mxu0 0.0
  %205 = vmatprep.subr.mxu0 0.0
  %206 = vmatpush2.msra.mxu0 0.0
  %207 = vmatprep.subr.mxu0 0.0
  %208 = vmatpush2.msra.mxu0 0.0
  %209 = vmatprep.subr.mxu0 0.0
  %210 = vmatpush2.msra.mxu0 0.0
  %211 = vmatprep.subr.mxu0 0.0
  %212 = vmatpush2.msra.mxu0 0.0
  %213 = vmatprep.subr.mxu0 0.0
  %214 = vmatpush2.msra.mxu0 0.0
  %215 = vmatprep.mubr.f32.mxu0 0.0
  %216 = vmatmul.mubr.f32.gmra.mxu0 %v149
  %v217 = vpop.f32.mrf.mxu0
  %v218 = vadd.f32 %v146, %v217
  %v219 = vpop.f32.mrf.mxu0
  %220 = vdwg.mxu0
  %v221 = vld [vmem:[%s2] sm:$0xff]
  %v222 = vld [vmem:[%s3] sm:$0x3]
  %v223 = vld [vmem:[%s1] sm:$0x3]
  %v224 = vcvt.s32.f32 %v223
  %vm225 = vcmask 15360
  %v227 = vsel %vm225, %v221, 0
  %vm229 = vcmask 1041408
  %v231 = vsel %vm229, %v224, 0
  %233 = vmatprep.subr.mxu0 0.0
  %234 = vmatpush1.msra.mxu0 0.0
  %235 = vmatprep.subr.mxu0 0.0
  %236 = vmatpush1.msra.mxu0 0.0
  %237 = vmatprep.subr.mxu0 0.0
  %238 = vmatpush1.msra.mxu0 0.0
  %239 = vmatprep.subr.mxu0 0.0
  %240 = vmatpush1.msra.mxu0 0.0
  %241 = vmatprep.subr.mxu0 0.0
  %242 = vmatpush1.msra.mxu0 0.0
  %243 = vmatprep.subr.mxu0 0.0
  %244 = vmatpush1.msra.mxu0 0.0
  %245 = vmatprep.subr.mxu0 0.0
  %246 = vmatpush1.msra.mxu0 0.0
  %247 = vmatprep.subr.mxu0 0.0
  %248 = vmatpush1.msra.mxu0 0.0
  %249 = vmatprep.subr.mxu0 0.0
  %250 = vmatpush1.msra.mxu0 0.0
  %251 = vmatprep.subr.mxu0 0.0
  %252 = vmatpush1.msra.mxu0 0.0
  %253 = vmatprep.subr.mxu0 0.0
  %254 = vmatpush1.msra.mxu0 0.0
  %255 = vmatprep.subr.mxu0 0.0
  %256 = vmatpush1.msra.mxu0 0.0
  %257 = vmatprep.subr.mxu0 0.0
  %258 = vmatpush1.msra.mxu0 0.0
  %259 = vmatprep.subr.mxu0 0.0
  %260 = vmatpush1.msra.mxu0 0.0
  %261 = vmatprep.subr.mxu0 0.0
  %262 = vmatpush1.msra.mxu0 0.0
  %263 = vmatprep.subr.mxu0 0.0
  %264 = vmatpush1.msra.mxu0 %v231
  %265 = vmatprep.subr.mxu0 0.0
  %266 = vmatpush2.msra.mxu0 0.0
  %267 = vmatprep.subr.mxu0 0.0
  %268 = vmatpush2.msra.mxu0 0.0
  %269 = vmatprep.subr.mxu0 0.0
  %270 = vmatpush2.msra.mxu0 0.0
  %271 = vmatprep.subr.mxu0 0.0
  %272 = vmatpush2.msra.mxu0 0.0
  %273 = vmatprep.subr.mxu0 0.0
  %274 = vmatpush2.msra.mxu0 0.0
  %275 = vmatprep.subr.mxu0 0.0
  %276 = vmatpush2.msra.mxu0 0.0
  %277 = vmatprep.subr.mxu0 0.0
  %278 = vmatpush2.msra.mxu0 0.0
  %279 = vmatprep.subr.mxu0 0.0
  %280 = vmatpush2.msra.mxu0 0.0
  %281 = vmatprep.subr.mxu0 0.0
  %282 = vmatpush2.msra.mxu0 0.0
  %283 = vmatprep.subr.mxu0 0.0
  %284 = vmatpush2.msra.mxu0 0.0
  %285 = vmatprep.subr.mxu0 0.0
  %286 = vmatpush2.msra.mxu0 0.0
  %287 = vmatprep.subr.mxu0 0.0
  %288 = vmatpush2.msra.mxu0 0.0
  %289 = vmatprep.subr.mxu0 0.0
  %290 = vmatpush2.msra.mxu0 0.0
  %291 = vmatprep.subr.mxu0 0.0
  %292 = vmatpush2.msra.mxu0 0.0
  %293 = vmatprep.subr.mxu0 0.0
  %294 = vmatpush2.msra.mxu0 0.0
  %295 = vmatprep.subr.mxu0 0.0
  %296 = vmatpush2.msra.mxu0 0.0
  %297 = vmatprep.mubr.f32.mxu0 0.0
  %298 = vmatmul.mubr.f32.gmra.mxu0 %v227
  %v299 = vpop.f32.mrf.mxu0
  %v300 = vadd.f32 0.0, %v299
  %v301 = vpop.f32.mrf.mxu0
  %302 = vdwg.mxu0
  %v303 = vld [vmem:[%s4] sm:$0xff]
  %vm304 = vcmp.lt.f32.partialorder %v303, %v300
  %v305 = vsel %vm304, 1, 0
  %v306 = vcvt.s32.f32 %v305
  %v307 = vmul.f32 %v218, 1.442695
  %v308 = vpow.pop %v307
  %v309 = vmul.f32 %v308, %v306
  %vm310 = vcmask 64512
  %v312 = vsel %vm310, %v222, 0
  %314 = vmatprep.subr.mxu0 0.0
  %315 = vmatpush1.msra.mxu0 0.0
  %316 = vmatprep.subr.mxu0 0.0
  %317 = vmatpush1.msra.mxu0 0.0
  %318 = vmatprep.subr.mxu0 0.0
  %319 = vmatpush1.msra.mxu0 0.0
  %320 = vmatprep.subr.mxu0 0.0
  %321 = vmatpush1.msra.mxu0 0.0
  %322 = vmatprep.subr.mxu0 0.0
  %323 = vmatpush1.msra.mxu0 0.0
  %324 = vmatprep.subr.mxu0 0.0
  %325 = vmatpush1.msra.mxu0 0.0
  %326 = vmatprep.subr.mxu0 0.0
  %327 = vmatpush1.msra.mxu0 0.0
  %328 = vmatprep.subr.mxu0 0.0
  %329 = vmatpush1.msra.mxu0 0.0
  %330 = vmatprep.subr.mxu0 0.0
  %331 = vmatpush1.msra.mxu0 0.0
  %332 = vmatprep.subr.mxu0 0.0
  %333 = vmatpush1.msra.mxu0 0.0
  %334 = vmatprep.subr.mxu0 0.0
  %335 = vmatpush1.msra.mxu0 0.0
  %336 = vmatprep.subr.mxu0 0.0
  %337 = vmatpush1.msra.mxu0 0.0
  %338 = vmatprep.subr.mxu0 0.0
  %339 = vmatpush1.msra.mxu0 0.0
  %340 = vmatprep.subr.mxu0 0.0
  %341 = vmatpush1.msra.mxu0 0.0
  %342 = vmatprep.subr.mxu0 0.0
  %343 = vmatpush1.msra.mxu0 0.0
  %344 = vmatprep.subr.mxu0 0.0
  %345 = vmatpush1.msra.mxu0 %v309
  %346 = vmatprep.subr.mxu0 0.0
  %347 = vmatpush2.msra.mxu0 0.0
  %348 = vmatprep.subr.mxu0 0.0
  %349 = vmatpush2.msra.mxu0 0.0
  %350 = vmatprep.subr.mxu0 0.0
  %351 = vmatpush2.msra.mxu0 0.0
  %352 = vmatprep.subr.mxu0 0.0
  %353 = vmatpush2.msra.mxu0 0.0
  %354 = vmatprep.subr.mxu0 0.0
  %355 = vmatpush2.msra.mxu0 0.0
  %356 = vmatprep.subr.mxu0 0.0
  %357 = vmatpush2.msra.mxu0 0.0
  %358 = vmatprep.subr.mxu0 0.0
  %359 = vmatpush2.msra.mxu0 0.0
  %360 = vmatprep.subr.mxu0 0.0
  %361 = vmatpush2.msra.mxu0 0.0
  %362 = vmatprep.subr.mxu0 0.0
  %363 = vmatpush2.msra.mxu0 0.0
  %364 = vmatprep.subr.mxu0 0.0
  %365 = vmatpush2.msra.mxu0 0.0
  %366 = vmatprep.subr.mxu0 0.0
  %367 = vmatpush2.msra.mxu0 0.0
  %368 = vmatprep.subr.mxu0 0.0
  %369 = vmatpush2.msra.mxu0 0.0
  %370 = vmatprep.subr.mxu0 0.0
  %371 = vmatpush2.msra.mxu0 0.0
  %372 = vmatprep.subr.mxu0 0.0
  %373 = vmatpush2.msra.mxu0 0.0
  %374 = vmatprep.subr.mxu0 0.0
  %375 = vmatpush2.msra.mxu0 0.0
  %376 = vmatprep.subr.mxu0 0.0
  %377 = vmatpush2.msra.mxu0 0.0
  %378 = vmatprep.mubr.f32.mxu0 0.0
  %379 = vmatmul.mubr.f32.gmra.mxu0 %v312
  %v380 = vpop.f32.mrf.mxu0
  %v381 = vadd.f32 0.0, %v380
  %v382 = vpop.f32.mrf.mxu0
  %383 = vdwg.mxu0
  %v384 = vrcp.pop %v381
  %v385 = vmul.f32 1.0, %v384
  %v387 = vsel %vm229, %v385, 0
  %389 = vmatprep.subr.mxu0 0.0
  %390 = vmatpush1.msra.mxu0 0.0
  %391 = vmatprep.subr.mxu0 0.0
  %392 = vmatpush1.msra.mxu0 0.0
  %393 = vmatprep.subr.mxu0 0.0
  %394 = vmatpush1.msra.mxu0 0.0
  %395 = vmatprep.subr.mxu0 0.0
  %396 = vmatpush1.msra.mxu0 0.0
  %397 = vmatprep.subr.mxu0 0.0
  %398 = vmatpush1.msra.mxu0 0.0
  %399 = vmatprep.subr.mxu0 0.0
  %400 = vmatpush1.msra.mxu0 0.0
  %401 = vmatprep.subr.mxu0 0.0
  %402 = vmatpush1.msra.mxu0 0.0
  %403 = vmatprep.subr.mxu0 0.0
  %404 = vmatpush1.msra.mxu0 0.0
  %405 = vmatprep.subr.mxu0 0.0
  %406 = vmatpush1.msra.mxu0 0.0
  %407 = vmatprep.subr.mxu0 0.0
  %408 = vmatpush1.msra.mxu0 0.0
  %409 = vmatprep.subr.mxu0 0.0
  %410 = vmatpush1.msra.mxu0 0.0
  %411 = vmatprep.subr.mxu0 0.0
  %412 = vmatpush1.msra.mxu0 0.0
  %413 = vmatprep.subr.mxu0 0.0
  %414 = vmatpush1.msra.mxu0 0.0
  %415 = vmatprep.subr.mxu0 0.0
  %416 = vmatpush1.msra.mxu0 0.0
  %417 = vmatprep.subr.mxu0 0.0
  %418 = vmatpush1.msra.mxu0 0.0
  %419 = vmatprep.subr.mxu0 0.0
  %420 = vmatpush1.msra.mxu0 %v387
  %421 = vmatprep.subr.mxu0 0.0
  %422 = vmatpush2.msra.mxu0 0.0
  %423 = vmatprep.subr.mxu0 0.0
  %424 = vmatpush2.msra.mxu0 0.0
  %425 = vmatprep.subr.mxu0 0.0
  %426 = vmatpush2.msra.mxu0 0.0
  %427 = vmatprep.subr.mxu0 0.0
  %428 = vmatpush2.msra.mxu0 0.0
  %429 = vmatprep.subr.mxu0 0.0
  %430 = vmatpush2.msra.mxu0 0.0
  %431 = vmatprep.subr.mxu0 0.0
  %432 = vmatpush2.msra.mxu0 0.0
  %433 = vmatprep.subr.mxu0 0.0
  %434 = vmatpush2.msra.mxu0 0.0
  %435 = vmatprep.subr.mxu0 0.0
  %436 = vmatpush2.msra.mxu0 0.0
  %437 = vmatprep.subr.mxu0 0.0
  %438 = vmatpush2.msra.mxu0 0.0
  %439 = vmatprep.subr.mxu0 0.0
  %440 = vmatpush2.msra.mxu0 0.0
  %441 = vmatprep.subr.mxu0 0.0
  %442 = vmatpush2.msra.mxu0 0.0
  %443 = vmatprep.subr.mxu0 0.0
  %444 = vmatpush2.msra.mxu0 0.0
  %445 = vmatprep.subr.mxu0 0.0
  %446 = vmatpush2.msra.mxu0 0.0
  %447 = vmatprep.subr.mxu0 0.0
  %448 = vmatpush2.msra.mxu0 0.0
  %449 = vmatprep.subr.mxu0 0.0
  %450 = vmatpush2.msra.mxu0 0.0
  %451 = vmatprep.subr.mxu0 0.0
  %452 = vmatpush2.msra.mxu0 0.0
  %453 = vmatprep.mubr.f32.mxu0 0.0
  %454 = vmatmul.mubr.f32.gmra.mxu0 %v227
  %v455 = vpop.f32.mrf.mxu0
  %v456 = vadd.f32 0.0, %v455
  %v457 = vpop.f32.mrf.mxu0
  %458 = vdwg.mxu0
  %v459 = vmul.f32 %v309, %v456
  %461 = vset.pattern.permute.xlu0 0
  %462 = vperm.xlu0 %461, %v459
  %v463 = vpop.permute.xlu0 %462
  %v465 = vmul.f32 %v463, %v42
  %466 = vmatprep.subr.mxu0 0.0
  %467 = vmatpush1.msra.mxu0 0.0
  %468 = vmatprep.subr.mxu0 0.0
  %469 = vmatpush1.msra.mxu0 0.0
  %470 = vmatprep.subr.mxu0 0.0
  %471 = vmatpush1.msra.mxu0 0.0
  %472 = vmatprep.subr.mxu0 0.0
  %473 = vmatpush1.msra.mxu0 0.0
  %474 = vmatprep.subr.mxu0 0.0
  %475 = vmatpush1.msra.mxu0 0.0
  %476 = vmatprep.subr.mxu0 0.0
  %477 = vmatpush1.msra.mxu0 0.0
  %478 = vmatprep.subr.mxu0 0.0
  %479 = vmatpush1.msra.mxu0 0.0
  %480 = vmatprep.subr.mxu0 0.0
  %481 = vmatpush1.msra.mxu0 0.0
  %482 = vmatprep.subr.mxu0 0.0
  %483 = vmatpush1.msra.mxu0 0.0
  %484 = vmatprep.subr.mxu0 0.0
  %485 = vmatpush1.msra.mxu0 0.0
  %486 = vmatprep.subr.mxu0 0.0
  %487 = vmatpush1.msra.mxu0 0.0
  %488 = vmatprep.subr.mxu0 0.0
  %489 = vmatpush1.msra.mxu0 0.0
  %490 = vmatprep.subr.mxu0 0.0
  %491 = vmatpush1.msra.mxu0 0.0
  %492 = vmatprep.subr.mxu0 0.0
  %493 = vmatpush1.msra.mxu0 0.0
  %494 = vmatprep.subr.mxu0 0.0
  %495 = vmatpush1.msra.mxu0 0.0
  %496 = vmatprep.subr.mxu0 0.0
  %497 = vmatpush1.msra.mxu0 %v465
  %498 = vmatprep.subr.mxu0 0.0
  %499 = vmatpush2.msra.mxu0 0.0
  %500 = vmatprep.subr.mxu0 0.0
  %501 = vmatpush2.msra.mxu0 0.0
  %502 = vmatprep.subr.mxu0 0.0
  %503 = vmatpush2.msra.mxu0 0.0
  %504 = vmatprep.subr.mxu0 0.0
  %505 = vmatpush2.msra.mxu0 0.0
  %506 = vmatprep.subr.mxu0 0.0
  %507 = vmatpush2.msra.mxu0 0.0
  %508 = vmatprep.subr.mxu0 0.0
  %509 = vmatpush2.msra.mxu0 0.0
  %510 = vmatprep.subr.mxu0 0.0
  %511 = vmatpush2.msra.mxu0 0.0
  %512 = vmatprep.subr.mxu0 0.0
  %513 = vmatpush2.msra.mxu0 0.0
  %514 = vmatprep.subr.mxu0 0.0
  %515 = vmatpush2.msra.mxu0 0.0
  %516 = vmatprep.subr.mxu0 0.0
  %517 = vmatpush2.msra.mxu0 0.0
  %518 = vmatprep.subr.mxu0 0.0
  %519 = vmatpush2.msra.mxu0 0.0
  %520 = vmatprep.subr.mxu0 0.0
  %521 = vmatpush2.msra.mxu0 0.0
  %522 = vmatprep.subr.mxu0 0.0
  %523 = vmatpush2.msra.mxu0 0.0
  %524 = vmatprep.subr.mxu0 0.0
  %525 = vmatpush2.msra.mxu0 0.0
  %526 = vmatprep.subr.mxu0 0.0
  %527 = vmatpush2.msra.mxu0 0.0
  %528 = vmatprep.subr.mxu0 0.0
  %529 = vmatpush2.msra.mxu0 0.0
  %530 = vmatprep.mubr.f32.mxu0 0.0
  %531 = vmatmul.mubr.f32.gmra.mxu0 %v312
  %v532 = vpop.f32.mrf.mxu0
  %v533 = vadd.f32 0.0, %v532
  %v534 = vpop.f32.mrf.mxu0
  %535 = vdwg.mxu0
  %v536 = vld [vmem:[%s9] sm:$0xff]
  %v537 = vld [vmem:[%s9 + $0x8] sm:$0xff]
  %v538 = vld [vmem:[%s9 + $0x10] sm:$0xff]
  %v539 = vld [vmem:[%s9 + $0x18] sm:$0xff]
  %v540 = vld [vmem:[%s9 + $0x20] sm:$0xff]
  %v541 = vld [vmem:[%s9 + $0x28] sm:$0xff]
  %v542 = vld [vmem:[%s9 + $0x30] sm:$0xff]
  %v543 = vld [vmem:[%s9 + $0x38] sm:$0xff]
  %v544 = vld [vmem:[#allocation3] sm:$0x1]
  %v546 = vlaneseq
  %v547 = vshrl.u32 %v546, 7
  %v548 = vsub.s32 0, %v547
  %v549 = vrot.slane %v544, %v548
  %v552 = vsel %vm58, %v533, 0
  %554 = vmatprep.subr.mxu0 0.0
  %555 = vmatpush1.msra.mxu0 0.0
  %556 = vmatprep.subr.mxu0 0.0
  %557 = vmatpush1.msra.mxu0 0.0
  %558 = vmatprep.subr.mxu0 0.0
  %559 = vmatpush1.msra.mxu0 0.0
  %560 = vmatprep.subr.mxu0 0.0
  %561 = vmatpush1.msra.mxu0 0.0
  %562 = vmatprep.subr.mxu0 0.0
  %563 = vmatpush1.msra.mxu0 0.0
  %564 = vmatprep.subr.mxu0 0.0
  %565 = vmatpush1.msra.mxu0 0.0
  %566 = vmatprep.subr.mxu0 0.0
  %567 = vmatpush1.msra.mxu0 0.0
  %568 = vmatprep.subr.mxu0 0.0
  %569 = vmatpush1.msra.mxu0 0.0
  %570 = vmatprep.subr.mxu0 0.0
  %571 = vmatpush1.msra.mxu0 %v543
  %572 = vmatprep.subr.mxu0 0.0
  %573 = vmatpush1.msra.mxu0 %v542
  %574 = vmatprep.subr.mxu0 0.0
  %575 = vmatpush1.msra.mxu0 %v541
  %576 = vmatprep.subr.mxu0 0.0
  %577 = vmatpush1.msra.mxu0 %v540
  %578 = vmatprep.subr.mxu0 0.0
  %579 = vmatpush1.msra.mxu0 %v539
  %580 = vmatprep.subr.mxu0 0.0
  %581 = vmatpush1.msra.mxu0 %v538
  %582 = vmatprep.subr.mxu0 0.0
  %583 = vmatpush1.msra.mxu0 %v537
  %584 = vmatprep.subr.mxu0 0.0
  %585 = vmatpush1.msra.mxu0 %v536
  %586 = vmatprep.subr.mxu0 0.0
  %587 = vmatpush2.msra.mxu0 0.0
  %588 = vmatprep.subr.mxu0 0.0
  %589 = vmatpush2.msra.mxu0 0.0
  %590 = vmatprep.subr.mxu0 0.0
  %591 = vmatpush2.msra.mxu0 0.0
  %592 = vmatprep.subr.mxu0 0.0
  %593 = vmatpush2.msra.mxu0 0.0
  %594 = vmatprep.subr.mxu0 0.0
  %595 = vmatpush2.msra.mxu0 0.0
  %596 = vmatprep.subr.mxu0 0.0
  %597 = vmatpush2.msra.mxu0 0.0
  %598 = vmatprep.subr.mxu0 0.0
  %599 = vmatpush2.msra.mxu0 0.0
  %600 = vmatprep.subr.mxu0 0.0
  %601 = vmatpush2.msra.mxu0 0.0
  %602 = vmatprep.subr.mxu0 0.0
  %603 = vmatpush2.msra.mxu0 0.0
  %604 = vmatprep.subr.mxu0 0.0
  %605 = vmatpush2.msra.mxu0 0.0
  %606 = vmatprep.subr.mxu0 0.0
  %607 = vmatpush2.msra.mxu0 0.0
  %608 = vmatprep.subr.mxu0 0.0
  %609 = vmatpush2.msra.mxu0 0.0
  %610 = vmatprep.subr.mxu0 0.0
  %611 = vmatpush2.msra.mxu0 0.0
  %612 = vmatprep.subr.mxu0 0.0
  %613 = vmatpush2.msra.mxu0 0.0
  %614 = vmatprep.subr.mxu0 0.0
  %615 = vmatpush2.msra.mxu0 0.0
  %616 = vmatprep.subr.mxu0 0.0
  %617 = vmatpush2.msra.mxu0 0.0
  %618 = vmatprep.mubr.f32.mxu0 0.0
  %619 = vmatmul.mubr.f32.gmra.mxu0 %v552
  %v620 = vpop.f32.mrf.mxu0
  %v621 = vadd.f32 %v549, %v620
  %v622 = vpop.f32.mrf.mxu0
  %623 = vdwg.mxu0
  %v624 = vmax.f32 %v621, 0.0
  %vm625 = vcmask 1024
  %626 = vst.msk [vmem:[%s11] sm:$0x3] %vm625, %v624
  // Predicated region
  $region46: #{han_forward.13} parent=0 // pred_check
    _
  $region47: #{han_forward.13} parent=0 // pred_check_branch
    %628 = sbr.rel (0) target = $region49
  $region48: #{han_forward.13} parent=0 // pred_region
    _
  $region49: #{han_forward.13} parent=0 // pred_fallthru
    _
  // Predicated region
  $region50: #{han_forward.13} parent=0 // pred_check
    _
  $region51: #{han_forward.13} parent=0 // pred_check_branch
    %630 = sbr.rel (0) target = $region53
  $region52: #{han_forward.13} parent=0 // pred_region
    _
  $region53: #{han_forward.13} parent=0 // pred_fallthru
    _

</llo_original>
